<compile_context>
chip_gen: v7x
topology: tpu7x:2x2x1
jax: 0.10.0
libtpu: 0.0.40
codegen_flags: <defaults>
</compile_context>

<pallas_src>
import functools

import jax
import jax.numpy as jnp
import numpy as np
from jax.experimental import pallas as pl
from jax.experimental.pallas import tpu as pltpu


# ---------------------------------------------------------------------------
# Kernel: one conv layer tile = single matmul + bias (+ LeakyReLU + BN partial
# sums).  BN normalization itself is folded into the NEXT layer by the wrapper.
# ---------------------------------------------------------------------------
def _layer_kernel(p_ref, w_ref, b_ref, *out_refs, apply_act: bool):
    """One M-tile of a decoder conv layer.

    p_ref : (TM, 9*Cin)  bf16   im2col patches for this row-tile
    w_ref : (9*Cin, Cout) bf16  resident (same block every grid step)
    b_ref : (1, Cout)    f32    resident bias
    out_refs:
      y_ref    : (TM, Cout) f32          conv(+bias)(+LeakyReLU) output
      stat_ref : (1, 2, Cout) f32        per-tile [sum(y), sum(y*y)]  (only if
                                         apply_act, i.e. layers with BN)
    """
    # Single K = 9*Cin matmul on the MXU, f32 accumulation.
    y = jnp.dot(p_ref[...], w_ref[...], preferred_element_type=jnp.float32)
    y = y + b_ref[...]                       # broadcast (1, Cout) over rows

    if apply_act:
        # LeakyReLU (negative_slope=0.01, PyTorch default) — f32 on the VPU.
        y = jnp.where(y > 0, y, 0.01 * y)
        y_ref, stat_ref = out_refs
        y_ref[...] = y
        # Per-tile partial sums for single-pass BN stats (E[y^2] - E[y]^2).
        s1 = jnp.sum(y, axis=0, keepdims=True)        # (1, Cout)
        s2 = jnp.sum(y * y, axis=0, keepdims=True)    # (1, Cout)
        stat_ref[...] = jnp.concatenate([s1, s2], axis=0)[None]   # (1, 2, Cout)
    else:
        out_refs[0][...] = y


def _pick_block_rows(m):
    """Largest tile (multiple of 8, divisor of M) that still gives >=2 grid
    steps, so pipelining / megacore sharding engage.  Falls back to M."""
    for t in (1024, 512, 256, 128, 64, 32, 16, 8):
        if m % t == 0 and m // t >= 2:
            return t
    return m


def _conv_layer(x_nhwc, w, b, *, apply_act, block_rows=None):
    """x_nhwc: (N, H, W, Cin) f32; w: (3,3,Cin,Cout); b: (Cout,).

    Returns (y2d, stats):
      y2d   : (M, Cout) f32 (final layer: already sliced to the real Cout)
      stats : (num_tiles, 2, Cout) f32 partial sums, or None for the last layer
    """
    n, h, wd, cin = x_nhwc.shape
    cout = w.shape[-1]
    m = n * h * wd
    k = 9 * cin

    # Lane-dense output for the final (no-BN) layer: pad Cout=4 -> 128 so the
    # out stores are unmasked vst; real channels sliced below.
    cout_p = cout
    if not apply_act and cout % 128 != 0:
        cout_p = ((cout + 127) // 128) * 128
        w = jnp.pad(w, ((0, 0), (0, 0), (0, 0), (0, cout_p - cout)))
        b = jnp.pad(b, (0, cout_p - cout))

    # Glue (XLA): zero-pad spatially and build ONE packed (M, 9*Cin) im2col
    # matrix in bf16.  Column order (dy, dx, cin) matches w.reshape below.
    xp = jnp.pad(x_nhwc, ((0, 0), (1, 1), (1, 1), (0, 0)))
    patches = jnp.concatenate(
        [xp[:, dy:dy + h, dx:dx + wd, :] for dy in range(3) for dx in range(3)],
        axis=-1).reshape(m, k).astype(jnp.bfloat16)
    w2d = w.reshape(k, cout_p).astype(jnp.bfloat16)
    b2d = b.reshape(1, cout_p).astype(jnp.float32)

    tm = block_rows if block_rows is not None else _pick_block_rows(m)
    assert m % tm == 0, (m, tm)
    nt = m // tm

    kern = functools.partial(_layer_kernel, apply_act=apply_act)

    in_specs = [
        pl.BlockSpec((tm, k), lambda i: (i, 0)),        # patches: tiled over M
        pl.BlockSpec((k, cout_p), lambda i: (0, 0)),    # weights: resident
        pl.BlockSpec((1, cout_p), lambda i: (0, 0)),    # bias: resident
    ]
    if apply_act:
        out_shape = (jax.ShapeDtypeStruct((m, cout_p), jnp.float32),
                     jax.ShapeDtypeStruct((nt, 2, cout_p), jnp.float32))
        out_specs = (pl.BlockSpec((tm, cout_p), lambda i: (i, 0)),
                     pl.BlockSpec((1, 2, cout_p), lambda i: (i, 0, 0)))
    else:
        out_shape = jax.ShapeDtypeStruct((m, cout_p), jnp.float32)
        out_specs = pl.BlockSpec((tm, cout_p), lambda i: (i, 0))

    out = pl.pallas_call(
        kern,
        out_shape=out_shape,
        grid=(nt,),
        in_specs=in_specs,
        out_specs=out_specs,
        compiler_params=pltpu.CompilerParams(
            # M-tiles are independent (stats are per-tile partial sums reduced
            # later in XLA) -> parallel, so v7x's 2 TCs split the grid.
            dimension_semantics=("parallel",),
            # Working set per step is ~1-2 MiB; 32 MiB cap is safe on all of
            # v5e / v6e / v7x (v7x physical VMEM is 64 MiB).
            vmem_limit_bytes=32 * 1024 * 1024),
    )(patches, w2d, b2d)

    if apply_act:
        y2d, stats = out
        return y2d, stats
    y2d = out[:, :cout] if cout_p != cout else out
    return y2d, None


def init_params(key, data_depth, hidden_size):
    """Deterministic synthetic params. Conv weights stored as (3, 3, Cin, Cout)."""
    dims = [(3, hidden_size), (hidden_size, hidden_size),
            (hidden_size, hidden_size), (hidden_size, data_depth)]
    params = []
    for i, (cin, cout) in enumerate(dims):
        key, kw, kb = jax.random.split(key, 3)
        w = 0.1 * jax.random.normal(kw, (3, 3, cin, cout), jnp.float32)
        b = 0.05 * jax.random.normal(kb, (cout,), jnp.float32)
        gamma = jnp.ones((cout,), jnp.float32)   # BN affine (unused for layer 4)
        beta = jnp.zeros((cout,), jnp.float32)
        params.append((w, b, gamma, beta))
    return params


def basic_decoder_forward(image_nchw, params, *, block_rows=None):
    """image_nchw: (N, 3, H, W) -> (N, D, H, W), matching BasicDecoder.forward."""
    n, _, h, wd = image_nchw.shape
    m = n * h * wd
    x = jnp.transpose(image_nchw, (0, 2, 3, 1)).astype(jnp.float32)   # NHWC
    last = len(params) - 1

    for i, (w, b, gamma, beta) in enumerate(params):
        apply_act = (i != last)
        y2d, stats = _conv_layer(x, w, b, apply_act=apply_act,
                                 block_rows=block_rows)
        cout = w.shape[-1]
        if apply_act:
            # Global BN stats (training mode, biased var, eps=1e-5) from the
            # per-tile partial sums — identical to whole-batch statistics.
            sums = stats.sum(axis=0)                       # (2, Cout)
            mean = sums[0] / m
            var = jnp.maximum(sums[1] / m - mean * mean, 0.0)
            scale = gamma * jax.lax.rsqrt(var + 1e-5)
            shift = beta - mean * scale
            # Fold BN normalization into the next layer's input; applied before
            # the next layer's zero-padding (so padded pixels are 0 in the
            # normalized space, exactly as in the reference) and fused by XLA
            # into that layer's im2col patch construction.
            x = (y2d * scale + shift).reshape(n, h, wd, cout)
        else:
            x = y2d.reshape(n, h, wd, cout)

    return jnp.transpose(x, (0, 3, 1, 2))                  # NHWC -> NCHW


# ---------------------------------------------------------------------------
# Pure-JAX f32 reference (same math, XLA conv) for a correctness sanity check.
# ---------------------------------------------------------------------------
def _ref_forward(image_nchw, params):
    def conv(x, w, b):
        w_oihw = jnp.transpose(w, (3, 2, 0, 1))
        y = jax.lax.conv_general_dilated(
            x, w_oihw, (1, 1), 'SAME',
            dimension_numbers=('NCHW', 'OIHW', 'NCHW'))
        return y + b[None, :, None, None]

    def bn(x, g, be):
        mean = x.mean(axis=(0, 2, 3), keepdims=True)
        var = ((x - mean) ** 2).mean(axis=(0, 2, 3), keepdims=True)
        return ((x - mean) * jax.lax.rsqrt(var + 1e-5)
                * g[None, :, None, None] + be[None, :, None, None])

    x = image_nchw
    for i, (w, b, g, be) in enumerate(params):
        x = conv(x, w, b)
        if i < len(params) - 1:
            x = jnp.where(x > 0, x, 0.01 * x)
            x = bn(x, g, be)
    return x


if __name__ == "__main__":
    data_depth = 4
    hidden_size = 32
    N, H, W = 2, 16, 16          # M = 512 -> 2 grid tiles of 256 rows

    key = jax.random.PRNGKey(0)
    key, kx = jax.random.split(key)
    image = jax.random.normal(kx, (N, 3, H, W), jnp.float32)
    params = init_params(key, data_depth, hidden_size)

    fwd = jax.jit(basic_decoder_forward)
    out = jax.block_until_ready(fwd(image, params))

    assert out.shape == (N, data_depth, H, W), out.shape

    # Tolerance reflects bf16 MXU inputs (accumulation is f32); reference is
    # full f32.
    ref = _ref_forward(image, params)
    np.testing.assert_allclose(np.asarray(out), np.asarray(ref),
                               rtol=5e-2, atol=5e-2)

    print("KERNEL_OK")
</pallas_src>

<mosaic_0001>
module attributes {stable_mosaic.version = 11 : i64} {
  func.func @_layer_kernel(%arg0: i32, %arg1: memref<256x27xbf16, #tpu.memory_space<vmem>>, %arg2: memref<27x32xbf16, #tpu.memory_space<vmem>>, %arg3: memref<1x32xf32, #tpu.memory_space<vmem>>, %arg4: memref<256x32xf32, #tpu.memory_space<vmem>>, %arg5: memref<1x2x32xf32, #tpu.memory_space<vmem>>) attributes {dimension_semantics = [#tpu.dimension_semantics<parallel>], iteration_bounds = array<i64: 2>, scalar_prefetch = 0 : i64, scratch_operands = 0 : i64, tpu.core_type = #tpu.core_type<tc>, window_params = [{transform_indices = @transform_0, window_bounds = array<i64: 256, 27>}, {pipeline_mode = #tpu.pipeline_mode<synchronous>, transform_indices = @transform_1, window_bounds = array<i64: 27, 32>}, {pipeline_mode = #tpu.pipeline_mode<synchronous>, transform_indices = @transform_2, window_bounds = array<i64: 1, 32>}, {transform_indices = @transform_3, window_bounds = array<i64: 256, 32>}, {transform_indices = @transform_4, window_bounds = array<i64: 1, 2, 32>}]} {
    %c0 = arith.constant 0 : index
    %c0_0 = arith.constant 0 : index
    %0 = vector.load %arg1[%c0, %c0_0] : memref<256x27xbf16, #tpu.memory_space<vmem>>, vector<256x27xbf16>
    %c0_1 = arith.constant 0 : index
    %c0_2 = arith.constant 0 : index
    %1 = vector.load %arg2[%c0_1, %c0_2] : memref<27x32xbf16, #tpu.memory_space<vmem>>, vector<27x32xbf16>
    %cst = arith.constant dense<0.000000e+00> : vector<256x32xf32>
    %2 = tpu.matmul %0, %1, %cst {dimension_numbers = #tpu.dot_dimension_numbers<[1], [0], [0], [1], [0, 0, 1, 1], [], []>} : vector<256x27xbf16>, vector<27x32xbf16>, vector<256x32xf32> -> vector<256x32xf32>
    %c0_3 = arith.constant 0 : index
    %c0_4 = arith.constant 0 : index
    %3 = vector.load %arg3[%c0_3, %c0_4] : memref<1x32xf32, #tpu.memory_space<vmem>>, vector<1x32xf32>
    %4 = vector.broadcast %3 : vector<1x32xf32> to vector<256x32xf32>
    %5 = arith.addf %2, %4 : vector<256x32xf32>
    %cst_5 = arith.constant 0.000000e+00 : f32
    %6 = vector.broadcast %cst_5 : f32 to vector<256x32xf32>
    %7 = arith.cmpf ogt, %5, %6 : vector<256x32xf32>
    %cst_6 = arith.constant 0.00999999977 : f32
    %8 = vector.broadcast %cst_6 : f32 to vector<256x32xf32>
    %9 = arith.mulf %8, %5 : vector<256x32xf32>
    %10 = arith.select %7, %5, %9 : vector<256x32xi1>, vector<256x32xf32>
    %c0_7 = arith.constant 0 : index
    %c0_8 = arith.constant 0 : index
    %11 = vector.load %arg4[%c0_7, %c0_8] : memref<256x32xf32, #tpu.memory_space<vmem>>, vector<256x32xf32>
    tpu.vector_store %arg4[%c0_7, %c0_8], %10 {strides = array<i32>} : memref<256x32xf32, #tpu.memory_space<vmem>>, vector<256x32xf32>,
    %cst_9 = arith.constant dense<0.000000e+00> : vector<32xf32>
    %12 = vector.multi_reduction <add>, %10, %cst_9 [0] : vector<256x32xf32> to vector<32xf32>
    %13 = vector.shape_cast %12 : vector<32xf32> to vector<1x32xf32>
    %14 = arith.mulf %10, %10 : vector<256x32xf32>
    %cst_10 = arith.constant dense<0.000000e+00> : vector<32xf32>
    %15 = vector.multi_reduction <add>, %14, %cst_10 [0] : vector<256x32xf32> to vector<32xf32>
    %16 = vector.shape_cast %15 : vector<32xf32> to vector<1x32xf32>
    %17 = tpu.concatenate %13, %16 in 0 : vector<1x32xf32>, vector<1x32xf32> -> vector<2x32xf32>
    %18 = vector.shape_cast %17 : vector<2x32xf32> to vector<1x2x32xf32>
    %c0_11 = arith.constant 0 : index
    %c0_12 = arith.constant 0 : index
    %c0_13 = arith.constant 0 : index
    %19 = vector.load %arg5[%c0_11, %c0_12, %c0_13] : memref<1x2x32xf32, #tpu.memory_space<vmem>>, vector<1x2x32xf32>
    tpu.vector_store %arg5[%c0_11, %c0_12, %c0_13], %18 {strides = array<i32>} : memref<1x2x32xf32, #tpu.memory_space<vmem>>, vector<1x2x32xf32>,
    return
  }
  func.func @transform_0(%arg0: i32) -> (i32, i32) {
    %c0_i32 = arith.constant 0 : i32
    %c0_i32_0 = arith.constant 0 : i32
    return %arg0, %c0_i32 : i32, i32
  }
  func.func @transform_1(%arg0: i32) -> (i32, i32) {
    %c0_i32 = arith.constant 0 : i32
    %c0_i32_0 = arith.constant 0 : i32
    %c0_i32_1 = arith.constant 0 : i32
    return %c0_i32, %c0_i32_0 : i32, i32
  }
  func.func @transform_2(%arg0: i32) -> (i32, i32) {
    %c0_i32 = arith.constant 0 : i32
    %c0_i32_0 = arith.constant 0 : i32
    %c0_i32_1 = arith.constant 0 : i32
    return %c0_i32, %c0_i32_0 : i32, i32
  }
  func.func @transform_3(%arg0: i32) -> (i32, i32) {
    %c0_i32 = arith.constant 0 : i32
    %c0_i32_0 = arith.constant 0 : i32
    return %arg0, %c0_i32 : i32, i32
  }
  func.func @transform_4(%arg0: i32) -> (i32, i32, i32) {
    %c0_i32 = arith.constant 0 : i32
    %c0_i32_0 = arith.constant 0 : i32
    %c0_i32_1 = arith.constant 0 : i32
    return %arg0, %c0_i32, %c0_i32_0 : i32, i32, i32
  }
}

module attributes {stable_mosaic.version = 11 : i64} {
  func.func @_layer_kernel(%arg0: i32, %arg1: memref<256x288xbf16, #tpu.memory_space<vmem>>, %arg2: memref<288x32xbf16, #tpu.memory_space<vmem>>, %arg3: memref<1x32xf32, #tpu.memory_space<vmem>>, %arg4: memref<256x32xf32, #tpu.memory_space<vmem>>, %arg5: memref<1x2x32xf32, #tpu.memory_space<vmem>>) attributes {dimension_semantics = [#tpu.dimension_semantics<parallel>], iteration_bounds = array<i64: 2>, scalar_prefetch = 0 : i64, scratch_operands = 0 : i64, tpu.core_type = #tpu.core_type<tc>, window_params = [{transform_indices = @transform_0, window_bounds = array<i64: 256, 288>}, {pipeline_mode = #tpu.pipeline_mode<synchronous>, transform_indices = @transform_1, window_bounds = array<i64: 288, 32>}, {pipeline_mode = #tpu.pipeline_mode<synchronous>, transform_indices = @transform_2, window_bounds = array<i64: 1, 32>}, {transform_indices = @transform_3, window_bounds = array<i64: 256, 32>}, {transform_indices = @transform_4, window_bounds = array<i64: 1, 2, 32>}]} {
    %c0 = arith.constant 0 : index
    %c0_0 = arith.constant 0 : index
    %0 = vector.load %arg1[%c0, %c0_0] : memref<256x288xbf16, #tpu.memory_space<vmem>>, vector<256x288xbf16>
    %c0_1 = arith.constant 0 : index
    %c0_2 = arith.constant 0 : index
    %1 = vector.load %arg2[%c0_1, %c0_2] : memref<288x32xbf16, #tpu.memory_space<vmem>>, vector<288x32xbf16>
    %cst = arith.constant dense<0.000000e+00> : vector<256x32xf32>
    %2 = tpu.matmul %0, %1, %cst {dimension_numbers = #tpu.dot_dimension_numbers<[1], [0], [0], [1], [0, 0, 1, 1], [], []>} : vector<256x288xbf16>, vector<288x32xbf16>, vector<256x32xf32> -> vector<256x32xf32>
    %c0_3 = arith.constant 0 : index
    %c0_4 = arith.constant 0 : index
    %3 = vector.load %arg3[%c0_3, %c0_4] : memref<1x32xf32, #tpu.memory_space<vmem>>, vector<1x32xf32>
    %4 = vector.broadcast %3 : vector<1x32xf32> to vector<256x32xf32>
    %5 = arith.addf %2, %4 : vector<256x32xf32>
    %cst_5 = arith.constant 0.000000e+00 : f32
    %6 = vector.broadcast %cst_5 : f32 to vector<256x32xf32>
    %7 = arith.cmpf ogt, %5, %6 : vector<256x32xf32>
    %cst_6 = arith.constant 0.00999999977 : f32
    %8 = vector.broadcast %cst_6 : f32 to vector<256x32xf32>
    %9 = arith.mulf %8, %5 : vector<256x32xf32>
    %10 = arith.select %7, %5, %9 : vector<256x32xi1>, vector<256x32xf32>
    %c0_7 = arith.constant 0 : index
    %c0_8 = arith.constant 0 : index
    %11 = vector.load %arg4[%c0_7, %c0_8] : memref<256x32xf32, #tpu.memory_space<vmem>>, vector<256x32xf32>
    tpu.vector_store %arg4[%c0_7, %c0_8], %10 {strides = array<i32>} : memref<256x32xf32, #tpu.memory_space<vmem>>, vector<256x32xf32>,
    %cst_9 = arith.constant dense<0.000000e+00> : vector<32xf32>
    %12 = vector.multi_reduction <add>, %10, %cst_9 [0] : vector<256x32xf32> to vector<32xf32>
    %13 = vector.shape_cast %12 : vector<32xf32> to vector<1x32xf32>
    %14 = arith.mulf %10, %10 : vector<256x32xf32>
    %cst_10 = arith.constant dense<0.000000e+00> : vector<32xf32>
    %15 = vector.multi_reduction <add>, %14, %cst_10 [0] : vector<256x32xf32> to vector<32xf32>
    %16 = vector.shape_cast %15 : vector<32xf32> to vector<1x32xf32>
    %17 = tpu.concatenate %13, %16 in 0 : vector<1x32xf32>, vector<1x32xf32> -> vector<2x32xf32>
    %18 = vector.shape_cast %17 : vector<2x32xf32> to vector<1x2x32xf32>
    %c0_11 = arith.constant 0 : index
    %c0_12 = arith.constant 0 : index
    %c0_13 = arith.constant 0 : index
    %19 = vector.load %arg5[%c0_11, %c0_12, %c0_13] : memref<1x2x32xf32, #tpu.memory_space<vmem>>, vector<1x2x32xf32>
    tpu.vector_store %arg5[%c0_11, %c0_12, %c0_13], %18 {strides = array<i32>} : memref<1x2x32xf32, #tpu.memory_space<vmem>>, vector<1x2x32xf32>,
    return
  }
  func.func @transform_0(%arg0: i32) -> (i32, i32) {
    %c0_i32 = arith.constant 0 : i32
    %c0_i32_0 = arith.constant 0 : i32
    return %arg0, %c0_i32 : i32, i32
  }
  func.func @transform_1(%arg0: i32) -> (i32, i32) {
    %c0_i32 = arith.constant 0 : i32
    %c0_i32_0 = arith.constant 0 : i32
    %c0_i32_1 = arith.constant 0 : i32
    return %c0_i32, %c0_i32_0 : i32, i32
  }
  func.func @transform_2(%arg0: i32) -> (i32, i32) {
    %c0_i32 = arith.constant 0 : i32
    %c0_i32_0 = arith.constant 0 : i32
    %c0_i32_1 = arith.constant 0 : i32
    return %c0_i32, %c0_i32_0 : i32, i32
  }
  func.func @transform_3(%arg0: i32) -> (i32, i32) {
    %c0_i32 = arith.constant 0 : i32
    %c0_i32_0 = arith.constant 0 : i32
    return %arg0, %c0_i32 : i32, i32
  }
  func.func @transform_4(%arg0: i32) -> (i32, i32, i32) {
    %c0_i32 = arith.constant 0 : i32
    %c0_i32_0 = arith.constant 0 : i32
    %c0_i32_1 = arith.constant 0 : i32
    return %arg0, %c0_i32, %c0_i32_0 : i32, i32, i32
  }
}

module attributes {stable_mosaic.version = 11 : i64} {
  func.func @_layer_kernel(%arg0: i32, %arg1: memref<256x288xbf16, #tpu.memory_space<vmem>>, %arg2: memref<288x128xbf16, #tpu.memory_space<vmem>>, %arg3: memref<1x128xf32, #tpu.memory_space<vmem>>, %arg4: memref<256x128xf32, #tpu.memory_space<vmem>>) attributes {dimension_semantics = [#tpu.dimension_semantics<parallel>], iteration_bounds = array<i64: 2>, scalar_prefetch = 0 : i64, scratch_operands = 0 : i64, tpu.core_type = #tpu.core_type<tc>, window_params = [{transform_indices = @transform_0, window_bounds = array<i64: 256, 288>}, {pipeline_mode = #tpu.pipeline_mode<synchronous>, transform_indices = @transform_1, window_bounds = array<i64: 288, 128>}, {pipeline_mode = #tpu.pipeline_mode<synchronous>, transform_indices = @transform_2, window_bounds = array<i64: 1, 128>}, {transform_indices = @transform_3, window_bounds = array<i64: 256, 128>}]} {
    %c0 = arith.constant 0 : index
    %c0_0 = arith.constant 0 : index
    %0 = vector.load %arg1[%c0, %c0_0] : memref<256x288xbf16, #tpu.memory_space<vmem>>, vector<256x288xbf16>
    %c0_1 = arith.constant 0 : index
    %c0_2 = arith.constant 0 : index
    %1 = vector.load %arg2[%c0_1, %c0_2] : memref<288x128xbf16, #tpu.memory_space<vmem>>, vector<288x128xbf16>
    %cst = arith.constant dense<0.000000e+00> : vector<256x128xf32>
    %2 = tpu.matmul %0, %1, %cst {dimension_numbers = #tpu.dot_dimension_numbers<[1], [0], [0], [1], [0, 0, 1, 1], [], []>} : vector<256x288xbf16>, vector<288x128xbf16>, vector<256x128xf32> -> vector<256x128xf32>
    %c0_3 = arith.constant 0 : index
    %c0_4 = arith.constant 0 : index
    %3 = vector.load %arg3[%c0_3, %c0_4] : memref<1x128xf32, #tpu.memory_space<vmem>>, vector<1x128xf32>
    %4 = vector.broadcast %3 : vector<1x128xf32> to vector<256x128xf32>
    %5 = arith.addf %2, %4 : vector<256x128xf32>
    %c0_5 = arith.constant 0 : index
    %c0_6 = arith.constant 0 : index
    %6 = vector.load %arg4[%c0_5, %c0_6] : memref<256x128xf32, #tpu.memory_space<vmem>>, vector<256x128xf32>
    tpu.vector_store %arg4[%c0_5, %c0_6], %5 {strides = array<i32>} : memref<256x128xf32, #tpu.memory_space<vmem>>, vector<256x128xf32>,
    return
  }
  func.func @transform_0(%arg0: i32) -> (i32, i32) {
    %c0_i32 = arith.constant 0 : i32
    %c0_i32_0 = arith.constant 0 : i32
    return %arg0, %c0_i32 : i32, i32
  }
  func.func @transform_1(%arg0: i32) -> (i32, i32) {
    %c0_i32 = arith.constant 0 : i32
    %c0_i32_0 = arith.constant 0 : i32
    %c0_i32_1 = arith.constant 0 : i32
    return %c0_i32, %c0_i32_0 : i32, i32
  }
  func.func @transform_2(%arg0: i32) -> (i32, i32) {
    %c0_i32 = arith.constant 0 : i32
    %c0_i32_0 = arith.constant 0 : i32
    %c0_i32_1 = arith.constant 0 : i32
    return %c0_i32, %c0_i32_0 : i32, i32
  }
  func.func @transform_3(%arg0: i32) -> (i32, i32) {
    %c0_i32 = arith.constant 0 : i32
    %c0_i32_0 = arith.constant 0 : i32
    return %arg0, %c0_i32 : i32, i32
  }
}

</mosaic_0001>

<llo_original>
// kernel: basic_decoder_forward.4
$region0: #{basic_decoder_forward.4}
  #allocation0 [shape = 'u32[]', space=smem, size = 0x4, offset = 0x4, fixed_abs, tag = 'smem constant byte address 0x4 - core index']
  #allocation1 [shape = 'u32[144,128]{1,0:T(1,128)}', space=vmem, size = 0x12000, scoped, tag = 'internal scratch']
  %s0 = inlined_call_operand.vmem [shape: bf16[512,27], index: 0, kind: input, shape index: {}]
  %s1 = inlined_call_operand.vmem [shape: bf16[27,32], index: 1, kind: input, shape index: {}]
  %s2 = inlined_call_operand.vmem [shape: f32[1,32], index: 2, kind: input, shape index: {}]
  %s3 = inlined_call_operand.vmem [shape: f32[512,32], index: 3, kind: output, shape index: {0}]
  %s4 = inlined_call_operand.vmem [shape: f32[2,2,32], index: 4, kind: output, shape index: {1}]
  %5 = xla_tuple %s3, %s4
  %s6 = sld [smem:[#allocation0]]
  $region53: #{basic_decoder_forward.4} parent=0
    _
  %s8 = ssub.s32 1, %s6
  %s9 = scalar_select 0, %s8, %s6
  loop: start=0, step=1, limit=4
  $region2: #{basic_decoder_forward.4} parent=0 // loop_pre_header
    _
  $region3: #{basic_decoder_forward.4} parent=0 // loop_header
    %s11 = sphi 0, %s15
    %p12 = scmp.ge.s32.totalorder %s11, 4
    %s21 = sphi 0, %s23
    %s24 = sphi 0, %s21
    %s25 = sphi 0, %s24
    %s41 = sphi 0, %s25
    %s45 = sphi 0, %s45
    %s47 = sphi 0, %s45
    %s48 = sphi 0, %s47
    %s62 = sphi 0, %s48
    %s66 = sphi 0, %s66
    %s68 = sphi 0, %s66
    %s69 = sphi 0, %s68
    %s83 = sphi 0, %s69
    %s89 = sphi 0, %s91
    %s92 = sphi 0, %s89
    %s93 = sphi 0, %s92
    %s109 = sphi 0, %s93
    %s115 = sphi 0, %s117
    %s118 = sphi 0, %s115
    %s119 = sphi 0, %s118
    %s135 = sphi 0, %s119
  $region4: #{basic_decoder_forward.4} parent=0 // loop_header_branch
    %14 = sbr.rel (%p12) target = $region8
  $region5: #{basic_decoder_forward.4} parent=0 // loop_body
    %s16 = ssub.s32 %s11, 1
    %s17 = ssub.s32 %s11, 2
    %s18 = sadd.s32 %s11, 1
    %s19 = ssub.s32 %s11, %s18
    %p20 = scmp.eq.s32.totalorder %s19, 0
    %s22 = sadd.s32 %s21, 1
    %s23 = scalar_select %p20, %s21, %s22
    %p26 = pneg %p20
    %p27 = scmp.eq.s32.totalorder %s11, 1
    %p28 = por %p26, %p27
    %p29 = scmp.ne.s32.totalorder %s21, %s24
    %p30 = scmp.eq.s32.totalorder %s11, 0
    %p31 = por %p29, %p30
    %p32 = scmp.ne.s32.totalorder %s21, %s24
    %p33 = scmp.eq.s32.totalorder %s16, 1
    %p34 = por %p32, %p33
    %p35 = scmp.ne.s32.totalorder %s24, %s25
    %p36 = scmp.eq.s32.totalorder %s16, 0
    %p37 = por %p35, %p36
    %p38 = scmp.ne.s32.totalorder %s24, %s25
    %p39 = scmp.eq.s32.totalorder %s17, 1
    %p40 = por %p38, %p39
    %p42 = scmp.ne.s32.totalorder %s25, %s41
    %p43 = scmp.eq.s32.totalorder %s17, 0
    %p44 = por %p42, %p43
    %s46 = sadd.s32 %s45, 1
    %p49 = scmp.eq.s32.totalorder %s11, 1
    %p50 = scmp.ne.s32.totalorder %s45, %s47
    %p51 = scmp.eq.s32.totalorder %s11, 0
    %p52 = por %p50, %p51
    %p53 = scmp.ne.s32.totalorder %s45, %s47
    %p54 = scmp.eq.s32.totalorder %s16, 1
    %p55 = por %p53, %p54
    %p56 = scmp.ne.s32.totalorder %s47, %s48
    %p57 = scmp.eq.s32.totalorder %s16, 0
    %p58 = por %p56, %p57
    %p59 = scmp.ne.s32.totalorder %s47, %s48
    %p60 = scmp.eq.s32.totalorder %s17, 1
    %p61 = por %p59, %p60
    %p63 = scmp.ne.s32.totalorder %s48, %s62
    %p64 = scmp.eq.s32.totalorder %s17, 0
    %p65 = por %p63, %p64
    %s67 = sadd.s32 %s66, 1
    %p70 = scmp.eq.s32.totalorder %s11, 1
    %p71 = scmp.ne.s32.totalorder %s66, %s68
    %p72 = scmp.eq.s32.totalorder %s11, 0
    %p73 = por %p71, %p72
    %p74 = scmp.ne.s32.totalorder %s66, %s68
    %p75 = scmp.eq.s32.totalorder %s16, 1
    %p76 = por %p74, %p75
    %p77 = scmp.ne.s32.totalorder %s68, %s69
    %p78 = scmp.eq.s32.totalorder %s16, 0
    %p79 = por %p77, %p78
    %p80 = scmp.ne.s32.totalorder %s68, %s69
    %p81 = scmp.eq.s32.totalorder %s17, 1
    %p82 = por %p80, %p81
    %p84 = scmp.ne.s32.totalorder %s69, %s83
    %p85 = scmp.eq.s32.totalorder %s17, 0
    %p86 = por %p84, %p85
    %s87 = ssub.s32 %s11, %s18
    %p88 = scmp.eq.s32.totalorder %s87, 0
    %s90 = sadd.s32 %s89, 1
    %s91 = scalar_select %p88, %s89, %s90
    %p94 = pneg %p88
    %p95 = scmp.eq.s32.totalorder %s11, 1
    %p96 = por %p94, %p95
    %p97 = scmp.ne.s32.totalorder %s89, %s92
    %p98 = scmp.eq.s32.totalorder %s11, 0
    %p99 = por %p97, %p98
    %p100 = scmp.ne.s32.totalorder %s89, %s92
    %p101 = scmp.eq.s32.totalorder %s16, 1
    %p102 = por %p100, %p101
    %p103 = scmp.ne.s32.totalorder %s92, %s93
    %p104 = scmp.eq.s32.totalorder %s16, 0
    %p105 = por %p103, %p104
    %p106 = scmp.ne.s32.totalorder %s92, %s93
    %p107 = scmp.eq.s32.totalorder %s17, 1
    %p108 = por %p106, %p107
    %p110 = scmp.ne.s32.totalorder %s93, %s109
    %p111 = scmp.eq.s32.totalorder %s17, 0
    %p112 = por %p110, %p111
    %s113 = ssub.s32 %s11, %s18
    %p114 = scmp.eq.s32.totalorder %s113, 0
    %s116 = sadd.s32 %s115, 1
    %s117 = scalar_select %p114, %s115, %s116
    %p120 = pneg %p114
    %p121 = scmp.eq.s32.totalorder %s11, 1
    %p122 = por %p120, %p121
    %p123 = scmp.ne.s32.totalorder %s115, %s118
    %p124 = scmp.eq.s32.totalorder %s11, 0
    %p125 = por %p123, %p124
    %p126 = scmp.ne.s32.totalorder %s115, %s118
    %p127 = scmp.eq.s32.totalorder %s16, 1
    %p128 = por %p126, %p127
    %p129 = scmp.ne.s32.totalorder %s118, %s119
    %p130 = scmp.eq.s32.totalorder %s16, 0
    %p131 = por %p129, %p130
    %p132 = scmp.ne.s32.totalorder %s118, %s119
    %p133 = scmp.eq.s32.totalorder %s17, 1
    %p134 = por %p132, %p133
    %p136 = scmp.ne.s32.totalorder %s119, %s135
    %p137 = scmp.eq.s32.totalorder %s17, 0
    %p138 = por %p136, %p137
    %p139 = scmp.le.s32.totalorder 1, %s11
    %p140 = scmp.lt.s32.totalorder %s11, 3
    %p141 = pnand %p139, %p140
    %p142 = pneg %p141
    // Predicated region
    $region9: #{basic_decoder_forward.4} parent=5 // pred_check
      _
    $region10: #{basic_decoder_forward.4} parent=5 // pred_check_branch
      %144 = sbr.rel (%p141) target = $region12
    $region11: #{basic_decoder_forward.4} parent=5 // pred_region
      %s145 = ssub.s32 %s11, 1
      // Predicated region
      $region13: #{basic_decoder_forward.4} parent=11 // pred_check
        %p146 = pneg %p58
      $region14: #{basic_decoder_forward.4} parent=11 // pred_check_branch
        %148 = sbr.rel (%p146) target = $region16
      $region15: #{basic_decoder_forward.4} parent=11 // pred_region
        _
      $region16: #{basic_decoder_forward.4} parent=11 // pred_fallthru
        _
      // Predicated region
      $region17: #{basic_decoder_forward.4} parent=11 // pred_check
        %p149 = pneg %p79
      $region18: #{basic_decoder_forward.4} parent=11 // pred_check_branch
        %151 = sbr.rel (%p149) target = $region20
      $region19: #{basic_decoder_forward.4} parent=11 // pred_region
        _
      $region20: #{basic_decoder_forward.4} parent=11 // pred_fallthru
        _
    $region12: #{basic_decoder_forward.4} parent=5 // pred_fallthru
      _
    %p152 = scmp.lt.s32.totalorder %s11, 2
    // Predicated region
    $region21: #{basic_decoder_forward.4} parent=5 // pred_check
      %p153 = pneg %p152
    $region22: #{basic_decoder_forward.4} parent=5 // pred_check_branch
      %155 = sbr.rel (%p153) target = $region24
    $region23: #{basic_decoder_forward.4} parent=5 // pred_region
      // Predicated region
      $region25: #{basic_decoder_forward.4} parent=23 // pred_check
        %p156 = pneg %p31
      $region26: #{basic_decoder_forward.4} parent=23 // pred_check_branch
        %158 = sbr.rel (%p156) target = $region28
      $region27: #{basic_decoder_forward.4} parent=23 // pred_region
        %s159 = smul.u32 32, %s11
        %p160 = scmp.lt.s32.totalorder %s159, 63
        %s161 = scalar_select %p160, %s159, 63
        %s162 = smul.addr %s161, 4
        %s163 = scalar_lea.vmem %s0, %s162
        %s164 = smul.u32 32, %s11
      $region28: #{basic_decoder_forward.4} parent=23 // pred_fallthru
        _
    $region24: #{basic_decoder_forward.4} parent=5 // pred_fallthru
      _
    %p165 = scmp.le.s32.totalorder 1, %s11
    %p166 = scmp.lt.s32.totalorder %s11, 3
    %p167 = pnand %p165, %p166
    %p168 = pneg %p167
    // Predicated region
    $region29: #{basic_decoder_forward.4} parent=5 // pred_check
      _
    $region30: #{basic_decoder_forward.4} parent=5 // pred_check_branch
      %170 = sbr.rel (%p167) target = $region32
    $region31: #{basic_decoder_forward.4} parent=5 // pred_region
      %s171 = ssub.s32 %s11, 1
      %s172 = smul.u32 32, %s16
      %p173 = scmp.lt.s32.totalorder %s172, 63
      %s174 = scalar_select %p173, %s172, 63
      %s175 = smul.addr %s174, 4
      %s176 = scalar_lea.vmem %s0, %s175
      %p177 = pneg %p37
      %p178 = pneg %p34
      %p179 = pneg %p58
      %p180 = pneg %p55
      %p181 = pneg %p79
      %p182 = pneg %p76
      %p183 = pneg %p105
      %p184 = pneg %p102
      %s185 = smul.u32 32, %s16
      %p186 = scmp.lt.s32.totalorder %s185, 63
      %s187 = scalar_select %p186, %s185, 63
      %s188 = smul.addr %s187, 8
      %s189 = scalar_lea.vmem %s3, %s188
      %p190 = pneg %p131
      %p191 = pneg %p128
      %p192 = scmp.lt.s32.totalorder %s16, 1
      %s193 = scalar_select %p192, %s16, 1
      %s194 = smul.addr %s193, 2
      %s195 = scalar_lea.vmem %s4, %s194
      %s196 = smul.u32 32, %s16
      %p197 = scmp.lt.s32.totalorder %s196, 63
      %s198 = scalar_select %p197, %s196, 63
      %s199 = smul.addr %s198, 4
      %s200 = scalar_lea.vmem %s0, %s199
      %s201 = smul.u32 32, %s16
      %s202 = smul.u32 32, %s16
      %p203 = scmp.lt.s32.totalorder %s202, 63
      %s204 = scalar_select %p203, %s202, 63
      %s205 = smul.addr %s204, 8
      %s206 = scalar_lea.vmem %s3, %s205
      %s207 = smul.u32 32, %s16
      %p208 = scmp.lt.s32.totalorder %s16, 1
      %s209 = scalar_select %p208, %s16, 1
      %s210 = smul.addr %s209, 2
      %s211 = scalar_lea.vmem %s4, %s210
      %v213 = vld [vmem:[%s200] sm:$0xf]
      %v214 = vld [vmem:[%s200 + $0x4] sm:$0xf]
      %v215 = vld [vmem:[%s200 + $0x8] sm:$0xf]
      %v216 = vld [vmem:[%s200 + $0xc] sm:$0xf]
      %v217 = vld [vmem:[%s200 + $0x10] sm:$0xf]
      %v218 = vld [vmem:[%s200 + $0x14] sm:$0xf]
      %v219 = vld [vmem:[%s200 + $0x18] sm:$0xf]
      %v220 = vld [vmem:[%s200 + $0x1c] sm:$0xf]
      %v221 = vld [vmem:[%s200 + $0x20] sm:$0xf]
      %v222 = vld [vmem:[%s200 + $0x24] sm:$0xf]
      %v223 = vld [vmem:[%s200 + $0x28] sm:$0xf]
      %v224 = vld [vmem:[%s200 + $0x2c] sm:$0xf]
      %v225 = vld [vmem:[%s200 + $0x30] sm:$0xf]
      %v226 = vld [vmem:[%s200 + $0x34] sm:$0xf]
      %v227 = vld [vmem:[%s200 + $0x38] sm:$0xf]
      %v228 = vld [vmem:[%s200 + $0x3c] sm:$0xf]
      %v229 = vld [vmem:[%s200 + $0x40] sm:$0xf]
      %v230 = vld [vmem:[%s200 + $0x44] sm:$0xf]
      %v231 = vld [vmem:[%s200 + $0x48] sm:$0xf]
      %v232 = vld [vmem:[%s200 + $0x4c] sm:$0xf]
      %v233 = vld [vmem:[%s200 + $0x50] sm:$0xf]
      %v234 = vld [vmem:[%s200 + $0x54] sm:$0xf]
      %v235 = vld [vmem:[%s200 + $0x58] sm:$0xf]
      %v236 = vld [vmem:[%s200 + $0x5c] sm:$0xf]
      %v237 = vld [vmem:[%s200 + $0x60] sm:$0xf]
      %v238 = vld [vmem:[%s200 + $0x64] sm:$0xf]
      %v239 = vld [vmem:[%s200 + $0x68] sm:$0xf]
      %v240 = vld [vmem:[%s200 + $0x6c] sm:$0xf]
      %v241 = vld [vmem:[%s200 + $0x70] sm:$0xf]
      %v242 = vld [vmem:[%s200 + $0x74] sm:$0xf]
      %v243 = vld [vmem:[%s200 + $0x78] sm:$0xf]
      %v244 = vld [vmem:[%s200 + $0x7c] sm:$0xf]
      %v245 = vld [vmem:[%s1] sm:$0xf]
      %v246 = vld [vmem:[%s1 + $0x4] sm:$0xf]
      %v247 = vld [vmem:[%s1 + $0x8] sm:$0xf]
      %v248 = vld [vmem:[%s1 + $0xc] sm:$0x3]
      %v249 = vld [vmem:[%s2] sm:$0x1]
      %v251 = vlaneseq
      %v252 = vshrl.u32 %v251, 7
      %v253 = vsub.s32 0, %v252
      %v254 = vrot.slane %v249, %v253
      %v288 = vunpack.c.l.b16 %v213
      %v289 = vunpack.c.l.b16 %v214
      %v290 = vunpack.c.l.b16 %v215
      %v291 = vunpack.c.l.b16 %v216
      %v292 = vunpack.c.l.b16 %v217
      %v293 = vunpack.c.l.b16 %v218
      %v294 = vunpack.c.l.b16 %v219
      %v295 = vunpack.c.l.b16 %v220
      %v296 = vunpack.c.l.b16 %v221
      %v297 = vunpack.c.l.b16 %v222
      %v298 = vunpack.c.l.b16 %v223
      %v299 = vunpack.c.l.b16 %v224
      %v300 = vunpack.c.l.b16 %v225
      %v301 = vunpack.c.l.b16 %v226
      %v302 = vunpack.c.l.b16 %v227
      %v303 = vunpack.c.l.b16 %v228
      %v304 = vunpack.c.l.b16 %v229
      %v305 = vunpack.c.l.b16 %v230
      %v306 = vunpack.c.l.b16 %v231
      %v307 = vunpack.c.l.b16 %v232
      %v308 = vunpack.c.l.b16 %v233
      %v309 = vunpack.c.l.b16 %v234
      %v310 = vunpack.c.l.b16 %v235
      %v311 = vunpack.c.l.b16 %v236
      %v312 = vunpack.c.l.b16 %v237
      %v313 = vunpack.c.l.b16 %v238
      %v314 = vunpack.c.l.b16 %v239
      %v315 = vunpack.c.l.b16 %v240
      %v316 = vunpack.c.l.b16 %v241
      %v317 = vunpack.c.l.b16 %v242
      %v318 = vunpack.c.l.b16 %v243
      %v319 = vunpack.c.l.b16 %v244
      %v320 = vpack.c.b16 %v289, %v288
      %v321 = vpack.c.b16 %v291, %v290
      %v322 = vpack.c.b16 %v293, %v292
      %v323 = vpack.c.b16 %v295, %v294
      %v324 = vpack.c.b16 %v297, %v296
      %v325 = vpack.c.b16 %v299, %v298
      %v326 = vpack.c.b16 %v301, %v300
      %v327 = vpack.c.b16 %v303, %v302
      %v328 = vpack.c.b16 %v305, %v304
      %v329 = vpack.c.b16 %v307, %v306
      %v330 = vpack.c.b16 %v309, %v308
      %v331 = vpack.c.b16 %v311, %v310
      %v332 = vpack.c.b16 %v313, %v312
      %v333 = vpack.c.b16 %v315, %v314
      %v334 = vpack.c.b16 %v317, %v316
      %v335 = vpack.c.b16 %v319, %v318
      %v340 = vunpack.c.l.b16 %v245
      %v341 = vunpack.c.l.b16 %v246
      %v342 = vunpack.c.l.b16 %v247
      %v343 = vunpack.c.l.b16 %v248
      %v344 = vpack.c.b16 %v341, %v340
      %v345 = vpack.c.b16 %v343, %v342
      %vm347 = vcmask 220160
      %v349 = vsel %vm347, %v320, 0
      %v352 = vsel %vm347, %v321, 0
      %v355 = vsel %vm347, %v322, 0
      %v358 = vsel %vm347, %v323, 0
      %v361 = vsel %vm347, %v324, 0
      %v364 = vsel %vm347, %v325, 0
      %v367 = vsel %vm347, %v326, 0
      %v370 = vsel %vm347, %v327, 0
      %v373 = vsel %vm347, %v328, 0
      %v376 = vsel %vm347, %v329, 0
      %v379 = vsel %vm347, %v330, 0
      %v382 = vsel %vm347, %v331, 0
      %v385 = vsel %vm347, %v332, 0
      %v388 = vsel %vm347, %v333, 0
      %v391 = vsel %vm347, %v334, 0
      %v394 = vsel %vm347, %v335, 0
      %vm396 = vcmask 1044480
      %vm397 = vcmask 1045504
      %v398 = vsel %vm396, 4294967295, 65535
      %v399 = vsel %vm397, %v398, 0
      %v401 = vand.u32 %v345, %v399
      %403 = vmatprep.subr.bf16.mxu0 0
      %404 = vmatpush1.bf16.msra.mxu0 %v344
      %405 = vmatprep.subr.bf16.mxu0 0
      %406 = vmatpush1.bf16.msra.mxu0 %v401
      %407 = vmatprep.subr.bf16.mxu0 0
      %408 = vmatpush1.bf16.msra.mxu0 0
      %409 = vmatprep.subr.bf16.mxu0 0
      %410 = vmatpush1.bf16.msra.mxu0 0
      %411 = vmatprep.subr.bf16.mxu0 0
      %412 = vmatpush1.bf16.msra.mxu0 0
      %413 = vmatprep.subr.bf16.mxu0 0
      %414 = vmatpush1.bf16.msra.mxu0 0
      %415 = vmatprep.subr.bf16.mxu0 0
      %416 = vmatpush1.bf16.msra.mxu0 0
      %417 = vmatprep.subr.bf16.mxu0 0
      %418 = vmatpush1.bf16.msra.mxu0 0
      %419 = vmatprep.subr.bf16.mxu0 0
      %420 = vmatpush1.bf16.msra.mxu0 0
      %421 = vmatprep.subr.bf16.mxu0 0
      %422 = vmatpush1.bf16.msra.mxu0 0
      %423 = vmatprep.subr.bf16.mxu0 0
      %424 = vmatpush1.bf16.msra.mxu0 0
      %425 = vmatprep.subr.bf16.mxu0 0
      %426 = vmatpush1.bf16.msra.mxu0 0
      %427 = vmatprep.subr.bf16.mxu0 0
      %428 = vmatpush1.bf16.msra.mxu0 0
      %429 = vmatprep.subr.bf16.mxu0 0
      %430 = vmatpush1.bf16.msra.mxu0 0
      %431 = vmatprep.subr.bf16.mxu0 0
      %432 = vmatpush1.bf16.msra.mxu0 0
      %433 = vmatprep.subr.bf16.mxu0 0
      %434 = vmatpush1.bf16.msra.mxu0 0
      %435 = vmatprep.mubr.bf16.mxu0 0
      %436 = vmatmul.mubr.bf16.gmra.mrb[0].mxu0 %v349
      %v437 = vpop.f32.mrb[0].mxu0
      %v438 = vadd.f32 %v254, %v437
      %v439 = vpop.f32.mrb[0].mxu0
      %v440 = vpop.f32.mrb[0].mxu0
      %v441 = vadd.f32 %v254, %v440
      %v442 = vpop.f32.mrb[0].mxu0
      %443 = vmatprep.mubr.bf16.mxu0 0
      %444 = vmatmul.mubr.bf16.gmra.mrb[0].mxu0 %v352
      %v445 = vpop.f32.mrb[0].mxu0
      %v446 = vadd.f32 %v254, %v445
      %v447 = vpop.f32.mrb[0].mxu0
      %v448 = vpop.f32.mrb[0].mxu0
      %v449 = vadd.f32 %v254, %v448
      %v450 = vpop.f32.mrb[0].mxu0
      %451 = vmatprep.mubr.bf16.mxu0 0
      %452 = vmatmul.mubr.bf16.gmra.mrb[0].mxu0 %v355
      %v453 = vpop.f32.mrb[0].mxu0
      %v454 = vadd.f32 %v254, %v453
      %v455 = vpop.f32.mrb[0].mxu0
      %v456 = vpop.f32.mrb[0].mxu0
      %v457 = vadd.f32 %v254, %v456
      %v458 = vpop.f32.mrb[0].mxu0
      %459 = vmatprep.mubr.bf16.mxu0 0
      %460 = vmatmul.mubr.bf16.gmra.mrb[0].mxu0 %v358
      %v461 = vpop.f32.mrb[0].mxu0
      %v462 = vadd.f32 %v254, %v461
      %v463 = vpop.f32.mrb[0].mxu0
      %v464 = vpop.f32.mrb[0].mxu0
      %v465 = vadd.f32 %v254, %v464
      %v466 = vpop.f32.mrb[0].mxu0
      %467 = vmatprep.mubr.bf16.mxu0 0
      %468 = vmatmul.mubr.bf16.gmra.mrb[0].mxu0 %v361
      %v469 = vpop.f32.mrb[0].mxu0
      %v470 = vadd.f32 %v254, %v469
      %v471 = vpop.f32.mrb[0].mxu0
      %v472 = vpop.f32.mrb[0].mxu0
      %v473 = vadd.f32 %v254, %v472
      %v474 = vpop.f32.mrb[0].mxu0
      %475 = vmatprep.mubr.bf16.mxu0 0
      %476 = vmatmul.mubr.bf16.gmra.mrb[0].mxu0 %v364
      %v477 = vpop.f32.mrb[0].mxu0
      %v478 = vadd.f32 %v254, %v477
      %v479 = vpop.f32.mrb[0].mxu0
      %v480 = vpop.f32.mrb[0].mxu0
      %v481 = vadd.f32 %v254, %v480
      %v482 = vpop.f32.mrb[0].mxu0
      %483 = vmatprep.mubr.bf16.mxu0 0
      %484 = vmatmul.mubr.bf16.gmra.mrb[0].mxu0 %v367
      %v485 = vpop.f32.mrb[0].mxu0
      %v486 = vadd.f32 %v254, %v485
      %v487 = vpop.f32.mrb[0].mxu0
      %v488 = vpop.f32.mrb[0].mxu0
      %v489 = vadd.f32 %v254, %v488
      %v490 = vpop.f32.mrb[0].mxu0
      %491 = vmatprep.mubr.bf16.mxu0 0
      %492 = vmatmul.mubr.bf16.gmra.mrb[0].mxu0 %v370
      %v493 = vpop.f32.mrb[0].mxu0
      %v494 = vadd.f32 %v254, %v493
      %v495 = vpop.f32.mrb[0].mxu0
      %v496 = vpop.f32.mrb[0].mxu0
      %v497 = vadd.f32 %v254, %v496
      %v498 = vpop.f32.mrb[0].mxu0
      %499 = vmatprep.mubr.bf16.mxu0 0
      %500 = vmatmul.mubr.bf16.gmra.mrb[0].mxu0 %v373
      %v501 = vpop.f32.mrb[0].mxu0
      %v502 = vadd.f32 %v254, %v501
      %v503 = vpop.f32.mrb[0].mxu0
      %v504 = vpop.f32.mrb[0].mxu0
      %v505 = vadd.f32 %v254, %v504
      %v506 = vpop.f32.mrb[0].mxu0
      %507 = vmatprep.mubr.bf16.mxu0 0
      %508 = vmatmul.mubr.bf16.gmra.mrb[0].mxu0 %v376
      %v509 = vpop.f32.mrb[0].mxu0
      %v510 = vadd.f32 %v254, %v509
      %v511 = vpop.f32.mrb[0].mxu0
      %v512 = vpop.f32.mrb[0].mxu0
      %v513 = vadd.f32 %v254, %v512
      %v514 = vpop.f32.mrb[0].mxu0
      %515 = vmatprep.mubr.bf16.mxu0 0
      %516 = vmatmul.mubr.bf16.gmra.mrb[0].mxu0 %v379
      %v517 = vpop.f32.mrb[0].mxu0
      %v518 = vadd.f32 %v254, %v517
      %v519 = vpop.f32.mrb[0].mxu0
      %v520 = vpop.f32.mrb[0].mxu0
      %v521 = vadd.f32 %v254, %v520
      %v522 = vpop.f32.mrb[0].mxu0
      %523 = vmatprep.mubr.bf16.mxu0 0
      %524 = vmatmul.mubr.bf16.gmra.mrb[0].mxu0 %v382
      %v525 = vpop.f32.mrb[0].mxu0
      %v526 = vadd.f32 %v254, %v525
      %v527 = vpop.f32.mrb[0].mxu0
      %v528 = vpop.f32.mrb[0].mxu0
      %v529 = vadd.f32 %v254, %v528
      %v530 = vpop.f32.mrb[0].mxu0
      %531 = vmatprep.mubr.bf16.mxu0 0
      %532 = vmatmul.mubr.bf16.gmra.mrb[0].mxu0 %v385
      %v533 = vpop.f32.mrb[0].mxu0
      %v534 = vadd.f32 %v254, %v533
      %v535 = vpop.f32.mrb[0].mxu0
      %v536 = vpop.f32.mrb[0].mxu0
      %v537 = vadd.f32 %v254, %v536
      %v538 = vpop.f32.mrb[0].mxu0
      %539 = vmatprep.mubr.bf16.mxu0 0
      %540 = vmatmul.mubr.bf16.gmra.mrb[0].mxu0 %v388
      %v541 = vpop.f32.mrb[0].mxu0
      %v542 = vadd.f32 %v254, %v541
      %v543 = vpop.f32.mrb[0].mxu0
      %v544 = vpop.f32.mrb[0].mxu0
      %v545 = vadd.f32 %v254, %v544
      %v546 = vpop.f32.mrb[0].mxu0
      %547 = vmatprep.mubr.bf16.mxu0 0
      %548 = vmatmul.mubr.bf16.gmra.mrb[0].mxu0 %v391
      %v549 = vpop.f32.mrb[0].mxu0
      %v550 = vadd.f32 %v254, %v549
      %v551 = vpop.f32.mrb[0].mxu0
      %v552 = vpop.f32.mrb[0].mxu0
      %v553 = vadd.f32 %v254, %v552
      %v554 = vpop.f32.mrb[0].mxu0
      %555 = vmatprep.mubr.bf16.mxu0 0
      %556 = vmatmul.mubr.bf16.gmra.mrb[0].mxu0 %v394
      %v557 = vpop.f32.mrb[0].mxu0
      %v558 = vadd.f32 %v254, %v557
      %v559 = vpop.f32.mrb[0].mxu0
      %v560 = vpop.f32.mrb[0].mxu0
      %v561 = vadd.f32 %v254, %v560
      %v562 = vpop.f32.mrb[0].mxu0
      %563 = vdwg.mxu0
      %vm564 = vcmp.gt.f32.partialorder %v438, 0.0
      %vm565 = vcmp.gt.f32.partialorder %v441, 0.0
      %vm566 = vcmp.gt.f32.partialorder %v446, 0.0
      %vm567 = vcmp.gt.f32.partialorder %v449, 0.0
      %vm568 = vcmp.gt.f32.partialorder %v454, 0.0
      %vm569 = vcmp.gt.f32.partialorder %v457, 0.0
      %vm570 = vcmp.gt.f32.partialorder %v462, 0.0
      %vm571 = vcmp.gt.f32.partialorder %v465, 0.0
      %vm572 = vcmp.gt.f32.partialorder %v470, 0.0
      %vm573 = vcmp.gt.f32.partialorder %v473, 0.0
      %vm574 = vcmp.gt.f32.partialorder %v478, 0.0
      %vm575 = vcmp.gt.f32.partialorder %v481, 0.0
      %vm576 = vcmp.gt.f32.partialorder %v486, 0.0
      %vm577 = vcmp.gt.f32.partialorder %v489, 0.0
      %vm578 = vcmp.gt.f32.partialorder %v494, 0.0
      %vm579 = vcmp.gt.f32.partialorder %v497, 0.0
      %vm580 = vcmp.gt.f32.partialorder %v502, 0.0
      %vm581 = vcmp.gt.f32.partialorder %v505, 0.0
      %vm582 = vcmp.gt.f32.partialorder %v510, 0.0
      %vm583 = vcmp.gt.f32.partialorder %v513, 0.0
      %vm584 = vcmp.gt.f32.partialorder %v518, 0.0
      %vm585 = vcmp.gt.f32.partialorder %v521, 0.0
      %vm586 = vcmp.gt.f32.partialorder %v526, 0.0
      %vm587 = vcmp.gt.f32.partialorder %v529, 0.0
      %vm588 = vcmp.gt.f32.partialorder %v534, 0.0
      %vm589 = vcmp.gt.f32.partialorder %v537, 0.0
      %vm590 = vcmp.gt.f32.partialorder %v542, 0.0
      %vm591 = vcmp.gt.f32.partialorder %v545, 0.0
      %vm592 = vcmp.gt.f32.partialorder %v550, 0.0
      %vm593 = vcmp.gt.f32.partialorder %v553, 0.0
      %vm594 = vcmp.gt.f32.partialorder %v558, 0.0
      %vm595 = vcmp.gt.f32.partialorder %v561, 0.0
      %v596 = vmul.f32 %v438, 0.01
      %v597 = vmul.f32 %v441, 0.01
      %v598 = vmul.f32 %v446, 0.01
      %v599 = vmul.f32 %v449, 0.01
      %v600 = vmul.f32 %v454, 0.01
      %v601 = vmul.f32 %v457, 0.01
      %v602 = vmul.f32 %v462, 0.01
      %v603 = vmul.f32 %v465, 0.01
      %v604 = vmul.f32 %v470, 0.01
      %v605 = vmul.f32 %v473, 0.01
      %v606 = vmul.f32 %v478, 0.01
      %v607 = vmul.f32 %v481, 0.01
      %v608 = vmul.f32 %v486, 0.01
      %v609 = vmul.f32 %v489, 0.01
      %v610 = vmul.f32 %v494, 0.01
      %v611 = vmul.f32 %v497, 0.01
      %v612 = vmul.f32 %v502, 0.01
      %v613 = vmul.f32 %v505, 0.01
      %v614 = vmul.f32 %v510, 0.01
      %v615 = vmul.f32 %v513, 0.01
      %v616 = vmul.f32 %v518, 0.01
      %v617 = vmul.f32 %v521, 0.01
      %v618 = vmul.f32 %v526, 0.01
      %v619 = vmul.f32 %v529, 0.01
      %v620 = vmul.f32 %v534, 0.01
      %v621 = vmul.f32 %v537, 0.01
      %v622 = vmul.f32 %v542, 0.01
      %v623 = vmul.f32 %v545, 0.01
      %v624 = vmul.f32 %v550, 0.01
      %v625 = vmul.f32 %v553, 0.01
      %v626 = vmul.f32 %v558, 0.01
      %v627 = vmul.f32 %v561, 0.01
      %v628 = vsel %vm564, %v438, %v596
      %v629 = vsel %vm565, %v441, %v597
      %v630 = vsel %vm566, %v446, %v598
      %v631 = vsel %vm567, %v449, %v599
      %v632 = vsel %vm568, %v454, %v600
      %v633 = vsel %vm569, %v457, %v601
      %v634 = vsel %vm570, %v462, %v602
      %v635 = vsel %vm571, %v465, %v603
      %v636 = vsel %vm572, %v470, %v604
      %v637 = vsel %vm573, %v473, %v605
      %v638 = vsel %vm574, %v478, %v606
      %v639 = vsel %vm575, %v481, %v607
      %v640 = vsel %vm576, %v486, %v608
      %v641 = vsel %vm577, %v489, %v609
      %v642 = vsel %vm578, %v494, %v610
      %v643 = vsel %vm579, %v497, %v611
      %v644 = vsel %vm580, %v502, %v612
      %v645 = vsel %vm581, %v505, %v613
      %v646 = vsel %vm582, %v510, %v614
      %v647 = vsel %vm583, %v513, %v615
      %v648 = vsel %vm584, %v518, %v616
      %v649 = vsel %vm585, %v521, %v617
      %v650 = vsel %vm586, %v526, %v618
      %v651 = vsel %vm587, %v529, %v619
      %v652 = vsel %vm588, %v534, %v620
      %v653 = vsel %vm589, %v537, %v621
      %v654 = vsel %vm590, %v542, %v622
      %v655 = vsel %vm591, %v545, %v623
      %v656 = vsel %vm592, %v550, %v624
      %v657 = vsel %vm593, %v553, %v625
      %v658 = vsel %vm594, %v558, %v626
      %v659 = vsel %vm595, %v561, %v627
      %vm660 = vcmask 261120
      %661 = vst.msk [vmem:[%s206] sm:$0xff] %vm660, %v628
      %662 = vst.msk [vmem:[%s206 + $0x8] sm:$0xff] %vm660, %v629
      %663 = vst.msk [vmem:[%s206 + $0x10] sm:$0xff] %vm660, %v630
      %664 = vst.msk [vmem:[%s206 + $0x18] sm:$0xff] %vm660, %v631
      %665 = vst.msk [vmem:[%s206 + $0x20] sm:$0xff] %vm660, %v632
      %666 = vst.msk [vmem:[%s206 + $0x28] sm:$0xff] %vm660, %v633
      %667 = vst.msk [vmem:[%s206 + $0x30] sm:$0xff] %vm660, %v634
      %668 = vst.msk [vmem:[%s206 + $0x38] sm:$0xff] %vm660, %v635
      %669 = vst.msk [vmem:[%s206 + $0x40] sm:$0xff] %vm660, %v636
      %670 = vst.msk [vmem:[%s206 + $0x48] sm:$0xff] %vm660, %v637
      %671 = vst.msk [vmem:[%s206 + $0x50] sm:$0xff] %vm660, %v638
      %672 = vst.msk [vmem:[%s206 + $0x58] sm:$0xff] %vm660, %v639
      %673 = vst.msk [vmem:[%s206 + $0x60] sm:$0xff] %vm660, %v640
      %674 = vst.msk [vmem:[%s206 + $0x68] sm:$0xff] %vm660, %v641
      %675 = vst.msk [vmem:[%s206 + $0x70] sm:$0xff] %vm660, %v642
      %676 = vst.msk [vmem:[%s206 + $0x78] sm:$0xff] %vm660, %v643
      %677 = vst.msk [vmem:[%s206 + $0x80] sm:$0xff] %vm660, %v644
      %678 = vst.msk [vmem:[%s206 + $0x88] sm:$0xff] %vm660, %v645
      %679 = vst.msk [vmem:[%s206 + $0x90] sm:$0xff] %vm660, %v646
      %680 = vst.msk [vmem:[%s206 + $0x98] sm:$0xff] %vm660, %v647
      %681 = vst.msk [vmem:[%s206 + $0xa0] sm:$0xff] %vm660, %v648
      %682 = vst.msk [vmem:[%s206 + $0xa8] sm:$0xff] %vm660, %v649
      %683 = vst.msk [vmem:[%s206 + $0xb0] sm:$0xff] %vm660, %v650
      %684 = vst.msk [vmem:[%s206 + $0xb8] sm:$0xff] %vm660, %v651
      %685 = vst.msk [vmem:[%s206 + $0xc0] sm:$0xff] %vm660, %v652
      %686 = vst.msk [vmem:[%s206 + $0xc8] sm:$0xff] %vm660, %v653
      %687 = vst.msk [vmem:[%s206 + $0xd0] sm:$0xff] %vm660, %v654
      %688 = vst.msk [vmem:[%s206 + $0xd8] sm:$0xff] %vm660, %v655
      %689 = vst.msk [vmem:[%s206 + $0xe0] sm:$0xff] %vm660, %v656
      %690 = vst.msk [vmem:[%s206 + $0xe8] sm:$0xff] %vm660, %v657
      %691 = vst.msk [vmem:[%s206 + $0xf0] sm:$0xff] %vm660, %v658
      %692 = vst.msk [vmem:[%s206 + $0xf8] sm:$0xff] %vm660, %v659
      %v693 = vsel %vm660, %v628, 0.0
      %v694 = vsel %vm660, %v629, 0.0
      %v695 = vadd.f32 %v693, %v694
      %v696 = vsel %vm660, %v630, 0.0
      %v697 = vadd.f32 %v695, %v696
      %v698 = vsel %vm660, %v631, 0.0
      %v699 = vadd.f32 %v697, %v698
      %v700 = vsel %vm660, %v632, 0.0
      %v701 = vadd.f32 %v699, %v700
      %v702 = vsel %vm660, %v633, 0.0
      %v703 = vadd.f32 %v701, %v702
      %v704 = vsel %vm660, %v634, 0.0
      %v705 = vadd.f32 %v703, %v704
      %v706 = vsel %vm660, %v635, 0.0
      %v707 = vadd.f32 %v705, %v706
      %v708 = vsel %vm660, %v636, 0.0
      %v709 = vadd.f32 %v707, %v708
      %v710 = vsel %vm660, %v637, 0.0
      %v711 = vadd.f32 %v709, %v710
      %v712 = vsel %vm660, %v638, 0.0
      %v713 = vadd.f32 %v711, %v712
      %v714 = vsel %vm660, %v639, 0.0
      %v715 = vadd.f32 %v713, %v714
      %v716 = vsel %vm660, %v640, 0.0
      %v717 = vadd.f32 %v715, %v716
      %v718 = vsel %vm660, %v641, 0.0
      %v719 = vadd.f32 %v717, %v718
      %v720 = vsel %vm660, %v642, 0.0
      %v721 = vadd.f32 %v719, %v720
      %v722 = vsel %vm660, %v643, 0.0
      %v723 = vadd.f32 %v721, %v722
      %v724 = vsel %vm660, %v644, 0.0
      %v725 = vadd.f32 %v723, %v724
      %v726 = vsel %vm660, %v645, 0.0
      %v727 = vadd.f32 %v725, %v726
      %v728 = vsel %vm660, %v646, 0.0
      %v729 = vadd.f32 %v727, %v728
      %v730 = vsel %vm660, %v647, 0.0
      %v731 = vadd.f32 %v729, %v730
      %v732 = vsel %vm660, %v648, 0.0
      %v733 = vadd.f32 %v731, %v732
      %v734 = vsel %vm660, %v649, 0.0
      %v735 = vadd.f32 %v733, %v734
      %v736 = vsel %vm660, %v650, 0.0
      %v737 = vadd.f32 %v735, %v736
      %v738 = vsel %vm660, %v651, 0.0
      %v739 = vadd.f32 %v737, %v738
      %v740 = vsel %vm660, %v652, 0.0
      %v741 = vadd.f32 %v739, %v740
      %v742 = vsel %vm660, %v653, 0.0
      %v743 = vadd.f32 %v741, %v742
      %v744 = vsel %vm660, %v654, 0.0
      %v745 = vadd.f32 %v743, %v744
      %v746 = vsel %vm660, %v655, 0.0
      %v747 = vadd.f32 %v745, %v746
      %v748 = vsel %vm660, %v656, 0.0
      %v749 = vadd.f32 %v747, %v748
      %v750 = vsel %vm660, %v657, 0.0
      %v751 = vadd.f32 %v749, %v750
      %v752 = vsel %vm660, %v658, 0.0
      %v753 = vadd.f32 %v751, %v752
      %v754 = vsel %vm660, %v659, 0.0
      %v755 = vadd.f32 %v753, %v754
      %v756 = vrot.slane %v755, 4
      %v757 = vadd.f32 %v755, %v756
      %v758 = vrot.slane %v757, 2
      %v759 = vadd.f32 %v757, %v758
      %v760 = vrot.slane %v759, 1
      %v761 = vadd.f32 %v759, %v760
      %v762 = vmul.f32 %v628, %v628
      %v763 = vmul.f32 %v629, %v629
      %v764 = vmul.f32 %v630, %v630
      %v765 = vmul.f32 %v631, %v631
      %v766 = vmul.f32 %v632, %v632
      %v767 = vmul.f32 %v633, %v633
      %v768 = vmul.f32 %v634, %v634
      %v769 = vmul.f32 %v635, %v635
      %v770 = vmul.f32 %v636, %v636
      %v771 = vmul.f32 %v637, %v637
      %v772 = vmul.f32 %v638, %v638
      %v773 = vmul.f32 %v639, %v639
      %v774 = vmul.f32 %v640, %v640
      %v775 = vmul.f32 %v641, %v641
      %v776 = vmul.f32 %v642, %v642
      %v777 = vmul.f32 %v643, %v643
      %v778 = vmul.f32 %v644, %v644
      %v779 = vmul.f32 %v645, %v645
      %v780 = vmul.f32 %v646, %v646
      %v781 = vmul.f32 %v647, %v647
      %v782 = vmul.f32 %v648, %v648
      %v783 = vmul.f32 %v649, %v649
      %v784 = vmul.f32 %v650, %v650
      %v785 = vmul.f32 %v651, %v651
      %v786 = vmul.f32 %v652, %v652
      %v787 = vmul.f32 %v653, %v653
      %v788 = vmul.f32 %v654, %v654
      %v789 = vmul.f32 %v655, %v655
      %v790 = vmul.f32 %v656, %v656
      %v791 = vmul.f32 %v657, %v657
      %v792 = vmul.f32 %v658, %v658
      %v793 = vmul.f32 %v659, %v659
      %v794 = vsel %vm660, %v762, 0.0
      %v795 = vsel %vm660, %v763, 0.0
      %v796 = vadd.f32 %v794, %v795
      %v797 = vsel %vm660, %v764, 0.0
      %v798 = vadd.f32 %v796, %v797
      %v799 = vsel %vm660, %v765, 0.0
      %v800 = vadd.f32 %v798, %v799
      %v801 = vsel %vm660, %v766, 0.0
      %v802 = vadd.f32 %v800, %v801
      %v803 = vsel %vm660, %v767, 0.0
      %v804 = vadd.f32 %v802, %v803
      %v805 = vsel %vm660, %v768, 0.0
      %v806 = vadd.f32 %v804, %v805
      %v807 = vsel %vm660, %v769, 0.0
      %v808 = vadd.f32 %v806, %v807
      %v809 = vsel %vm660, %v770, 0.0
      %v810 = vadd.f32 %v808, %v809
      %v811 = vsel %vm660, %v771, 0.0
      %v812 = vadd.f32 %v810, %v811
      %v813 = vsel %vm660, %v772, 0.0
      %v814 = vadd.f32 %v812, %v813
      %v815 = vsel %vm660, %v773, 0.0
      %v816 = vadd.f32 %v814, %v815
      %v817 = vsel %vm660, %v774, 0.0
      %v818 = vadd.f32 %v816, %v817
      %v819 = vsel %vm660, %v775, 0.0
      %v820 = vadd.f32 %v818, %v819
      %v821 = vsel %vm660, %v776, 0.0
      %v822 = vadd.f32 %v820, %v821
      %v823 = vsel %vm660, %v777, 0.0
      %v824 = vadd.f32 %v822, %v823
      %v825 = vsel %vm660, %v778, 0.0
      %v826 = vadd.f32 %v824, %v825
      %v827 = vsel %vm660, %v779, 0.0
      %v828 = vadd.f32 %v826, %v827
      %v829 = vsel %vm660, %v780, 0.0
      %v830 = vadd.f32 %v828, %v829
      %v831 = vsel %vm660, %v781, 0.0
      %v832 = vadd.f32 %v830, %v831
      %v833 = vsel %vm660, %v782, 0.0
      %v834 = vadd.f32 %v832, %v833
      %v835 = vsel %vm660, %v783, 0.0
      %v836 = vadd.f32 %v834, %v835
      %v837 = vsel %vm660, %v784, 0.0
      %v838 = vadd.f32 %v836, %v837
      %v839 = vsel %vm660, %v785, 0.0
      %v840 = vadd.f32 %v838, %v839
      %v841 = vsel %vm660, %v786, 0.0
      %v842 = vadd.f32 %v840, %v841
      %v843 = vsel %vm660, %v787, 0.0
      %v844 = vadd.f32 %v842, %v843
      %v845 = vsel %vm660, %v788, 0.0
      %v846 = vadd.f32 %v844, %v845
      %v847 = vsel %vm660, %v789, 0.0
      %v848 = vadd.f32 %v846, %v847
      %v849 = vsel %vm660, %v790, 0.0
      %v850 = vadd.f32 %v848, %v849
      %v851 = vsel %vm660, %v791, 0.0
      %v852 = vadd.f32 %v850, %v851
      %v853 = vsel %vm660, %v792, 0.0
      %v854 = vadd.f32 %v852, %v853
      %v855 = vsel %vm660, %v793, 0.0
      %v856 = vadd.f32 %v854, %v855
      %v857 = vrot.slane %v856, 4
      %v858 = vadd.f32 %v856, %v857
      %v859 = vrot.slane %v858, 2
      %v860 = vadd.f32 %v858, %v859
      %v861 = vrot.slane %v860, 1
      %v862 = vadd.f32 %v860, %v861
      %vm863 = vcmask 1040384
      %v864 = vsel %vm863, %v761, %v862
      %vm865 = vcmask 254976
      %866 = vst.msk [vmem:[%s211] sm:$0x3] %vm865, %v864
      %s867 = smul.u32 32, %s16
      %p868 = scmp.lt.s32.totalorder %s867, 63
      %s869 = scalar_select %p868, %s867, 63
      %s870 = smul.addr %s869, 8
      %s871 = scalar_lea.vmem %s3, %s870
      %p872 = scmp.lt.s32.totalorder %s16, 1
      %s873 = scalar_select %p872, %s16, 1
      %s874 = smul.addr %s873, 2
      %s875 = scalar_lea.vmem %s4, %s874
      // Predicated region
      $region33: #{basic_decoder_forward.4} parent=31 // pred_check
        %p876 = pneg %p102
      $region34: #{basic_decoder_forward.4} parent=31 // pred_check_branch
        %878 = sbr.rel (%p876) target = $region36
      $region35: #{basic_decoder_forward.4} parent=31 // pred_region
        %s879 = smul.u32 32, %s16
      $region36: #{basic_decoder_forward.4} parent=31 // pred_fallthru
        _
      // Predicated region
      $region37: #{basic_decoder_forward.4} parent=31 // pred_check
        %p880 = pneg %p128
      $region38: #{basic_decoder_forward.4} parent=31 // pred_check_branch
        %882 = sbr.rel (%p880) target = $region40
      $region39: #{basic_decoder_forward.4} parent=31 // pred_region
        _
      $region40: #{basic_decoder_forward.4} parent=31 // pred_fallthru
        _
    $region32: #{basic_decoder_forward.4} parent=5 // pred_fallthru
      _
    %p883 = scmp.le.s32.totalorder 2, %s11
    // Predicated region
    $region41: #{basic_decoder_forward.4} parent=5 // pred_check
      %p884 = pneg %p883
    $region42: #{basic_decoder_forward.4} parent=5 // pred_check_branch
      %886 = sbr.rel (%p884) target = $region44
    $region43: #{basic_decoder_forward.4} parent=5 // pred_region
      %s887 = ssub.s32 %s11, 2
      // Predicated region
      $region45: #{basic_decoder_forward.4} parent=43 // pred_check
        %p888 = pneg %p108
      $region46: #{basic_decoder_forward.4} parent=43 // pred_check_branch
        %890 = sbr.rel (%p888) target = $region48
      $region47: #{basic_decoder_forward.4} parent=43 // pred_region
        %s891 = smul.u32 32, %s17
        %p892 = scmp.lt.s32.totalorder %s891, 63
        %s893 = scalar_select %p892, %s891, 63
        %s894 = smul.addr %s893, 8
        %s895 = scalar_lea.vmem %s3, %s894
      $region48: #{basic_decoder_forward.4} parent=43 // pred_fallthru
        _
      // Predicated region
      $region49: #{basic_decoder_forward.4} parent=43 // pred_check
        %p896 = pneg %p134
      $region50: #{basic_decoder_forward.4} parent=43 // pred_check_branch
        %898 = sbr.rel (%p896) target = $region52
      $region51: #{basic_decoder_forward.4} parent=43 // pred_region
        %p899 = scmp.lt.s32.totalorder %s17, 1
        %s900 = scalar_select %p899, %s17, 1
        %s901 = smul.addr %s900, 2
        %s902 = scalar_lea.vmem %s4, %s901
      $region52: #{basic_decoder_forward.4} parent=43 // pred_fallthru
        _
    $region44: #{basic_decoder_forward.4} parent=5 // pred_fallthru
      _
  $region6: #{basic_decoder_forward.4} parent=0 // loop_footer
    %s15 = sadd.s32 1, %s11
  $region7: #{basic_decoder_forward.4} parent=0 // loop_footer_branch
    %10 = sbr.rel target = $region3
  $region8: #{basic_decoder_forward.4} parent=0 // loop_exit
    _

// kernel: basic_decoder_forward.5
$region0: #{basic_decoder_forward.5}
  #allocation0 [shape = 'u32[]', space=smem, size = 0x4, offset = 0x4, fixed_abs, tag = 'smem constant byte address 0x4 - core index']
  #allocation1 [shape = 'u32[144,128]{1,0:T(1,128)}', space=vmem, size = 0x12000, scoped, tag = 'internal scratch']
  %s0 = inlined_call_operand.vmem [shape: bf16[512,288], index: 0, kind: input, shape index: {}]
  %s1 = inlined_call_operand.vmem [shape: bf16[288,32], index: 1, kind: input, shape index: {}]
  %s2 = inlined_call_operand.vmem [shape: f32[1,32], index: 2, kind: input, shape index: {}]
  %s3 = inlined_call_operand.vmem [shape: f32[512,32], index: 3, kind: output, shape index: {0}]
  %s4 = inlined_call_operand.vmem [shape: f32[2,2,32], index: 4, kind: output, shape index: {1}]
  %5 = xla_tuple %s3, %s4
  %s6 = sld [smem:[#allocation0]]
  $region53: #{basic_decoder_forward.5} parent=0
    _
  %s8 = ssub.s32 1, %s6
  %s9 = scalar_select 0, %s8, %s6
  loop: start=0, step=1, limit=4
  $region2: #{basic_decoder_forward.5} parent=0 // loop_pre_header
    _
  $region3: #{basic_decoder_forward.5} parent=0 // loop_header
    %s11 = sphi 0, %s15
    %p12 = scmp.ge.s32.totalorder %s11, 4
    %s21 = sphi 0, %s23
    %s24 = sphi 0, %s21
    %s25 = sphi 0, %s24
    %s41 = sphi 0, %s25
    %s45 = sphi 0, %s45
    %s47 = sphi 0, %s45
    %s48 = sphi 0, %s47
    %s62 = sphi 0, %s48
    %s66 = sphi 0, %s66
    %s68 = sphi 0, %s66
    %s69 = sphi 0, %s68
    %s83 = sphi 0, %s69
    %s89 = sphi 0, %s91
    %s92 = sphi 0, %s89
    %s93 = sphi 0, %s92
    %s109 = sphi 0, %s93
    %s115 = sphi 0, %s117
    %s118 = sphi 0, %s115
    %s119 = sphi 0, %s118
    %s135 = sphi 0, %s119
  $region4: #{basic_decoder_forward.5} parent=0 // loop_header_branch
    %14 = sbr.rel (%p12) target = $region8
  $region5: #{basic_decoder_forward.5} parent=0 // loop_body
    %s16 = ssub.s32 %s11, 1
    %s17 = ssub.s32 %s11, 2
    %s18 = sadd.s32 %s11, 1
    %s19 = ssub.s32 %s11, %s18
    %p20 = scmp.eq.s32.totalorder %s19, 0
    %s22 = sadd.s32 %s21, 1
    %s23 = scalar_select %p20, %s21, %s22
    %p26 = pneg %p20
    %p27 = scmp.eq.s32.totalorder %s11, 1
    %p28 = por %p26, %p27
    %p29 = scmp.ne.s32.totalorder %s21, %s24
    %p30 = scmp.eq.s32.totalorder %s11, 0
    %p31 = por %p29, %p30
    %p32 = scmp.ne.s32.totalorder %s21, %s24
    %p33 = scmp.eq.s32.totalorder %s16, 1
    %p34 = por %p32, %p33
    %p35 = scmp.ne.s32.totalorder %s24, %s25
    %p36 = scmp.eq.s32.totalorder %s16, 0
    %p37 = por %p35, %p36
    %p38 = scmp.ne.s32.totalorder %s24, %s25
    %p39 = scmp.eq.s32.totalorder %s17, 1
    %p40 = por %p38, %p39
    %p42 = scmp.ne.s32.totalorder %s25, %s41
    %p43 = scmp.eq.s32.totalorder %s17, 0
    %p44 = por %p42, %p43
    %s46 = sadd.s32 %s45, 1
    %p49 = scmp.eq.s32.totalorder %s11, 1
    %p50 = scmp.ne.s32.totalorder %s45, %s47
    %p51 = scmp.eq.s32.totalorder %s11, 0
    %p52 = por %p50, %p51
    %p53 = scmp.ne.s32.totalorder %s45, %s47
    %p54 = scmp.eq.s32.totalorder %s16, 1
    %p55 = por %p53, %p54
    %p56 = scmp.ne.s32.totalorder %s47, %s48
    %p57 = scmp.eq.s32.totalorder %s16, 0
    %p58 = por %p56, %p57
    %p59 = scmp.ne.s32.totalorder %s47, %s48
    %p60 = scmp.eq.s32.totalorder %s17, 1
    %p61 = por %p59, %p60
    %p63 = scmp.ne.s32.totalorder %s48, %s62
    %p64 = scmp.eq.s32.totalorder %s17, 0
    %p65 = por %p63, %p64
    %s67 = sadd.s32 %s66, 1
    %p70 = scmp.eq.s32.totalorder %s11, 1
    %p71 = scmp.ne.s32.totalorder %s66, %s68
    %p72 = scmp.eq.s32.totalorder %s11, 0
    %p73 = por %p71, %p72
    %p74 = scmp.ne.s32.totalorder %s66, %s68
    %p75 = scmp.eq.s32.totalorder %s16, 1
    %p76 = por %p74, %p75
    %p77 = scmp.ne.s32.totalorder %s68, %s69
    %p78 = scmp.eq.s32.totalorder %s16, 0
    %p79 = por %p77, %p78
    %p80 = scmp.ne.s32.totalorder %s68, %s69
    %p81 = scmp.eq.s32.totalorder %s17, 1
    %p82 = por %p80, %p81
    %p84 = scmp.ne.s32.totalorder %s69, %s83
    %p85 = scmp.eq.s32.totalorder %s17, 0
    %p86 = por %p84, %p85
    %s87 = ssub.s32 %s11, %s18
    %p88 = scmp.eq.s32.totalorder %s87, 0
    %s90 = sadd.s32 %s89, 1
    %s91 = scalar_select %p88, %s89, %s90
    %p94 = pneg %p88
    %p95 = scmp.eq.s32.totalorder %s11, 1
    %p96 = por %p94, %p95
    %p97 = scmp.ne.s32.totalorder %s89, %s92
    %p98 = scmp.eq.s32.totalorder %s11, 0
    %p99 = por %p97, %p98
    %p100 = scmp.ne.s32.totalorder %s89, %s92
    %p101 = scmp.eq.s32.totalorder %s16, 1
    %p102 = por %p100, %p101
    %p103 = scmp.ne.s32.totalorder %s92, %s93
    %p104 = scmp.eq.s32.totalorder %s16, 0
    %p105 = por %p103, %p104
    %p106 = scmp.ne.s32.totalorder %s92, %s93
    %p107 = scmp.eq.s32.totalorder %s17, 1
    %p108 = por %p106, %p107
    %p110 = scmp.ne.s32.totalorder %s93, %s109
    %p111 = scmp.eq.s32.totalorder %s17, 0
    %p112 = por %p110, %p111
    %s113 = ssub.s32 %s11, %s18
    %p114 = scmp.eq.s32.totalorder %s113, 0
    %s116 = sadd.s32 %s115, 1
    %s117 = scalar_select %p114, %s115, %s116
    %p120 = pneg %p114
    %p121 = scmp.eq.s32.totalorder %s11, 1
    %p122 = por %p120, %p121
    %p123 = scmp.ne.s32.totalorder %s115, %s118
    %p124 = scmp.eq.s32.totalorder %s11, 0
    %p125 = por %p123, %p124
    %p126 = scmp.ne.s32.totalorder %s115, %s118
    %p127 = scmp.eq.s32.totalorder %s16, 1
    %p128 = por %p126, %p127
    %p129 = scmp.ne.s32.totalorder %s118, %s119
    %p130 = scmp.eq.s32.totalorder %s16, 0
    %p131 = por %p129, %p130
    %p132 = scmp.ne.s32.totalorder %s118, %s119
    %p133 = scmp.eq.s32.totalorder %s17, 1
    %p134 = por %p132, %p133
    %p136 = scmp.ne.s32.totalorder %s119, %s135
    %p137 = scmp.eq.s32.totalorder %s17, 0
    %p138 = por %p136, %p137
    %p139 = scmp.le.s32.totalorder 1, %s11
    %p140 = scmp.lt.s32.totalorder %s11, 3
    %p141 = pnand %p139, %p140
    %p142 = pneg %p141
    // Predicated region
    $region9: #{basic_decoder_forward.5} parent=5 // pred_check
      _
    $region10: #{basic_decoder_forward.5} parent=5 // pred_check_branch
      %144 = sbr.rel (%p141) target = $region12
    $region11: #{basic_decoder_forward.5} parent=5 // pred_region
      %s145 = ssub.s32 %s11, 1
      // Predicated region
      $region13: #{basic_decoder_forward.5} parent=11 // pred_check
        %p146 = pneg %p58
      $region14: #{basic_decoder_forward.5} parent=11 // pred_check_branch
        %148 = sbr.rel (%p146) target = $region16
      $region15: #{basic_decoder_forward.5} parent=11 // pred_region
        _
      $region16: #{basic_decoder_forward.5} parent=11 // pred_fallthru
        _
      // Predicated region
      $region17: #{basic_decoder_forward.5} parent=11 // pred_check
        %p149 = pneg %p79
      $region18: #{basic_decoder_forward.5} parent=11 // pred_check_branch
        %151 = sbr.rel (%p149) target = $region20
      $region19: #{basic_decoder_forward.5} parent=11 // pred_region
        _
      $region20: #{basic_decoder_forward.5} parent=11 // pred_fallthru
        _
    $region12: #{basic_decoder_forward.5} parent=5 // pred_fallthru
      _
    %p152 = scmp.lt.s32.totalorder %s11, 2
    // Predicated region
    $region21: #{basic_decoder_forward.5} parent=5 // pred_check
      %p153 = pneg %p152
    $region22: #{basic_decoder_forward.5} parent=5 // pred_check_branch
      %155 = sbr.rel (%p153) target = $region24
    $region23: #{basic_decoder_forward.5} parent=5 // pred_region
      // Predicated region
      $region25: #{basic_decoder_forward.5} parent=23 // pred_check
        %p156 = pneg %p31
      $region26: #{basic_decoder_forward.5} parent=23 // pred_check_branch
        %158 = sbr.rel (%p156) target = $region28
      $region27: #{basic_decoder_forward.5} parent=23 // pred_region
        %s159 = smul.u32 32, %s11
        %p160 = scmp.lt.s32.totalorder %s159, 63
        %s161 = scalar_select %p160, %s159, 63
        %s162 = smul.addr %s161, 3
        %s163 = smul.addr %s162, 4
        %s164 = scalar_lea.vmem %s0, %s163
        %s165 = smul.u32 32, %s11
      $region28: #{basic_decoder_forward.5} parent=23 // pred_fallthru
        _
    $region24: #{basic_decoder_forward.5} parent=5 // pred_fallthru
      _
    %p166 = scmp.le.s32.totalorder 1, %s11
    %p167 = scmp.lt.s32.totalorder %s11, 3
    %p168 = pnand %p166, %p167
    %p169 = pneg %p168
    // Predicated region
    $region29: #{basic_decoder_forward.5} parent=5 // pred_check
      _
    $region30: #{basic_decoder_forward.5} parent=5 // pred_check_branch
      %171 = sbr.rel (%p168) target = $region32
    $region31: #{basic_decoder_forward.5} parent=5 // pred_region
      %s172 = ssub.s32 %s11, 1
      %s173 = smul.u32 32, %s16
      %p174 = scmp.lt.s32.totalorder %s173, 63
      %s175 = scalar_select %p174, %s173, 63
      %s176 = smul.addr %s175, 3
      %s177 = smul.addr %s176, 4
      %s178 = scalar_lea.vmem %s0, %s177
      %p179 = pneg %p37
      %p180 = pneg %p34
      %p181 = pneg %p58
      %p182 = pneg %p55
      %p183 = pneg %p79
      %p184 = pneg %p76
      %p185 = pneg %p105
      %p186 = pneg %p102
      %s187 = smul.u32 32, %s16
      %p188 = scmp.lt.s32.totalorder %s187, 63
      %s189 = scalar_select %p188, %s187, 63
      %s190 = smul.addr %s189, 8
      %s191 = scalar_lea.vmem %s3, %s190
      %p192 = pneg %p131
      %p193 = pneg %p128
      %p194 = scmp.lt.s32.totalorder %s16, 1
      %s195 = scalar_select %p194, %s16, 1
      %s196 = smul.addr %s195, 2
      %s197 = scalar_lea.vmem %s4, %s196
      %s198 = smul.u32 32, %s16
      %p199 = scmp.lt.s32.totalorder %s198, 63
      %s200 = scalar_select %p199, %s198, 63
      %s201 = smul.addr %s200, 3
      %s202 = smul.addr %s201, 4
      %s203 = scalar_lea.vmem %s0, %s202
      %s204 = smul.u32 32, %s16
      %s205 = smul.u32 32, %s16
      %p206 = scmp.lt.s32.totalorder %s205, 63
      %s207 = scalar_select %p206, %s205, 63
      %s208 = smul.addr %s207, 8
      %s209 = scalar_lea.vmem %s3, %s208
      %s210 = smul.u32 32, %s16
      %p211 = scmp.lt.s32.totalorder %s16, 1
      %s212 = scalar_select %p211, %s16, 1
      %s213 = smul.addr %s212, 2
      %s214 = scalar_lea.vmem %s4, %s213
      %v216 = vld [vmem:[%s203] sm:$0xff]
      %v217 = vld [vmem:[%s203 + $0x8] sm:$0xf]
      %v218 = vld [vmem:[%s203 + $0xc] sm:$0xff]
      %v219 = vld [vmem:[%s203 + $0x14] sm:$0xf]
      %v220 = vld [vmem:[%s203 + $0x18] sm:$0xff]
      %v221 = vld [vmem:[%s203 + $0x20] sm:$0xf]
      %v222 = vld [vmem:[%s203 + $0x24] sm:$0xff]
      %v223 = vld [vmem:[%s203 + $0x2c] sm:$0xf]
      %v224 = vld [vmem:[%s203 + $0x30] sm:$0xff]
      %v225 = vld [vmem:[%s203 + $0x38] sm:$0xf]
      %v226 = vld [vmem:[%s203 + $0x3c] sm:$0xff]
      %v227 = vld [vmem:[%s203 + $0x44] sm:$0xf]
      %v228 = vld [vmem:[%s203 + $0x48] sm:$0xff]
      %v229 = vld [vmem:[%s203 + $0x50] sm:$0xf]
      %v230 = vld [vmem:[%s203 + $0x54] sm:$0xff]
      %v231 = vld [vmem:[%s203 + $0x5c] sm:$0xf]
      %v232 = vld [vmem:[%s203 + $0x60] sm:$0xff]
      %v233 = vld [vmem:[%s203 + $0x68] sm:$0xf]
      %v234 = vld [vmem:[%s203 + $0x6c] sm:$0xff]
      %v235 = vld [vmem:[%s203 + $0x74] sm:$0xf]
      %v236 = vld [vmem:[%s203 + $0x78] sm:$0xff]
      %v237 = vld [vmem:[%s203 + $0x80] sm:$0xf]
      %v238 = vld [vmem:[%s203 + $0x84] sm:$0xff]
      %v239 = vld [vmem:[%s203 + $0x8c] sm:$0xf]
      %v240 = vld [vmem:[%s203 + $0x90] sm:$0xff]
      %v241 = vld [vmem:[%s203 + $0x98] sm:$0xf]
      %v242 = vld [vmem:[%s203 + $0x9c] sm:$0xff]
      %v243 = vld [vmem:[%s203 + $0xa4] sm:$0xf]
      %v244 = vld [vmem:[%s203 + $0xa8] sm:$0xff]
      %v245 = vld [vmem:[%s203 + $0xb0] sm:$0xf]
      %v246 = vld [vmem:[%s203 + $0xb4] sm:$0xff]
      %v247 = vld [vmem:[%s203 + $0xbc] sm:$0xf]
      %v248 = vld [vmem:[%s203 + $0xc0] sm:$0xff]
      %v249 = vld [vmem:[%s203 + $0xc8] sm:$0xf]
      %v250 = vld [vmem:[%s203 + $0xcc] sm:$0xff]
      %v251 = vld [vmem:[%s203 + $0xd4] sm:$0xf]
      %v252 = vld [vmem:[%s203 + $0xd8] sm:$0xff]
      %v253 = vld [vmem:[%s203 + $0xe0] sm:$0xf]
      %v254 = vld [vmem:[%s203 + $0xe4] sm:$0xff]
      %v255 = vld [vmem:[%s203 + $0xec] sm:$0xf]
      %v256 = vld [vmem:[%s203 + $0xf0] sm:$0xff]
      %v257 = vld [vmem:[%s203 + $0xf8] sm:$0xf]
      %v258 = vld [vmem:[%s203 + $0xfc] sm:$0xff]
      %v259 = vld [vmem:[%s203 + $0x104] sm:$0xf]
      %v260 = vld [vmem:[%s203 + $0x108] sm:$0xff]
      %v261 = vld [vmem:[%s203 + $0x110] sm:$0xf]
      %v262 = vld [vmem:[%s203 + $0x114] sm:$0xff]
      %v263 = vld [vmem:[%s203 + $0x11c] sm:$0xf]
      %v264 = vld [vmem:[%s203 + $0x120] sm:$0xff]
      %v265 = vld [vmem:[%s203 + $0x128] sm:$0xf]
      %v266 = vld [vmem:[%s203 + $0x12c] sm:$0xff]
      %v267 = vld [vmem:[%s203 + $0x134] sm:$0xf]
      %v268 = vld [vmem:[%s203 + $0x138] sm:$0xff]
      %v269 = vld [vmem:[%s203 + $0x140] sm:$0xf]
      %v270 = vld [vmem:[%s203 + $0x144] sm:$0xff]
      %v271 = vld [vmem:[%s203 + $0x14c] sm:$0xf]
      %v272 = vld [vmem:[%s203 + $0x150] sm:$0xff]
      %v273 = vld [vmem:[%s203 + $0x158] sm:$0xf]
      %v274 = vld [vmem:[%s203 + $0x15c] sm:$0xff]
      %v275 = vld [vmem:[%s203 + $0x164] sm:$0xf]
      %v276 = vld [vmem:[%s203 + $0x168] sm:$0xff]
      %v277 = vld [vmem:[%s203 + $0x170] sm:$0xf]
      %v278 = vld [vmem:[%s203 + $0x174] sm:$0xff]
      %v279 = vld [vmem:[%s203 + $0x17c] sm:$0xf]
      %v280 = vld [vmem:[%s1] sm:$0xf]
      %v281 = vld [vmem:[%s1 + $0x4] sm:$0xf]
      %v282 = vld [vmem:[%s1 + $0x8] sm:$0xf]
      %v283 = vld [vmem:[%s1 + $0xc] sm:$0xf]
      %v284 = vld [vmem:[%s1 + $0x10] sm:$0xf]
      %v285 = vld [vmem:[%s1 + $0x14] sm:$0xf]
      %v286 = vld [vmem:[%s1 + $0x18] sm:$0xf]
      %v287 = vld [vmem:[%s1 + $0x1c] sm:$0xf]
      %v288 = vld [vmem:[%s1 + $0x20] sm:$0xf]
      %v289 = vld [vmem:[%s1 + $0x24] sm:$0xf]
      %v290 = vld [vmem:[%s1 + $0x28] sm:$0xf]
      %v291 = vld [vmem:[%s1 + $0x2c] sm:$0xf]
      %v292 = vld [vmem:[%s1 + $0x30] sm:$0xf]
      %v293 = vld [vmem:[%s1 + $0x34] sm:$0xf]
      %v294 = vld [vmem:[%s1 + $0x38] sm:$0xf]
      %v295 = vld [vmem:[%s1 + $0x3c] sm:$0xf]
      %v296 = vld [vmem:[%s1 + $0x40] sm:$0xf]
      %v297 = vld [vmem:[%s1 + $0x44] sm:$0xf]
      %v298 = vld [vmem:[%s1 + $0x48] sm:$0xf]
      %v299 = vld [vmem:[%s1 + $0x4c] sm:$0xf]
      %v300 = vld [vmem:[%s1 + $0x50] sm:$0xf]
      %v301 = vld [vmem:[%s1 + $0x54] sm:$0xf]
      %v302 = vld [vmem:[%s1 + $0x58] sm:$0xf]
      %v303 = vld [vmem:[%s1 + $0x5c] sm:$0xf]
      %v304 = vld [vmem:[%s1 + $0x60] sm:$0xf]
      %v305 = vld [vmem:[%s1 + $0x64] sm:$0xf]
      %v306 = vld [vmem:[%s1 + $0x68] sm:$0xf]
      %v307 = vld [vmem:[%s1 + $0x6c] sm:$0xf]
      %v308 = vld [vmem:[%s1 + $0x70] sm:$0xf]
      %v309 = vld [vmem:[%s1 + $0x74] sm:$0xf]
      %v310 = vld [vmem:[%s1 + $0x78] sm:$0xf]
      %v311 = vld [vmem:[%s1 + $0x7c] sm:$0xf]
      %v312 = vld [vmem:[%s1 + $0x80] sm:$0xf]
      %v313 = vld [vmem:[%s1 + $0x84] sm:$0xf]
      %v314 = vld [vmem:[%s1 + $0x88] sm:$0xf]
      %v315 = vld [vmem:[%s1 + $0x8c] sm:$0xf]
      %v316 = vld [vmem:[%s2] sm:$0x1]
      %v318 = vlaneseq
      %v319 = vshrl.u32 %v318, 7
      %v320 = vsub.s32 0, %v319
      %v321 = vrot.slane %v316, %v320
      %v387 = vunpack.c.l.b16 %v216
      %v388 = vunpack.c.h.b16 %v216
      %v389 = vunpack.c.l.b16 %v217
      %v390 = vunpack.c.l.b16 %v218
      %v391 = vunpack.c.h.b16 %v218
      %v392 = vunpack.c.l.b16 %v219
      %v393 = vunpack.c.l.b16 %v220
      %v394 = vunpack.c.h.b16 %v220
      %v395 = vunpack.c.l.b16 %v221
      %v396 = vunpack.c.l.b16 %v222
      %v397 = vunpack.c.h.b16 %v222
      %v398 = vunpack.c.l.b16 %v223
      %v399 = vunpack.c.l.b16 %v224
      %v400 = vunpack.c.h.b16 %v224
      %v401 = vunpack.c.l.b16 %v225
      %v402 = vunpack.c.l.b16 %v226
      %v403 = vunpack.c.h.b16 %v226
      %v404 = vunpack.c.l.b16 %v227
      %v405 = vunpack.c.l.b16 %v228
      %v406 = vunpack.c.h.b16 %v228
      %v407 = vunpack.c.l.b16 %v229
      %v408 = vunpack.c.l.b16 %v230
      %v409 = vunpack.c.h.b16 %v230
      %v410 = vunpack.c.l.b16 %v231
      %v411 = vunpack.c.l.b16 %v232
      %v412 = vunpack.c.h.b16 %v232
      %v413 = vunpack.c.l.b16 %v233
      %v414 = vunpack.c.l.b16 %v234
      %v415 = vunpack.c.h.b16 %v234
      %v416 = vunpack.c.l.b16 %v235
      %v417 = vunpack.c.l.b16 %v236
      %v418 = vunpack.c.h.b16 %v236
      %v419 = vunpack.c.l.b16 %v237
      %v420 = vunpack.c.l.b16 %v238
      %v421 = vunpack.c.h.b16 %v238
      %v422 = vunpack.c.l.b16 %v239
      %v423 = vunpack.c.l.b16 %v240
      %v424 = vunpack.c.h.b16 %v240
      %v425 = vunpack.c.l.b16 %v241
      %v426 = vunpack.c.l.b16 %v242
      %v427 = vunpack.c.h.b16 %v242
      %v428 = vunpack.c.l.b16 %v243
      %v429 = vunpack.c.l.b16 %v244
      %v430 = vunpack.c.h.b16 %v244
      %v431 = vunpack.c.l.b16 %v245
      %v432 = vunpack.c.l.b16 %v246
      %v433 = vunpack.c.h.b16 %v246
      %v434 = vunpack.c.l.b16 %v247
      %v435 = vunpack.c.l.b16 %v248
      %v436 = vunpack.c.h.b16 %v248
      %v437 = vunpack.c.l.b16 %v249
      %v438 = vunpack.c.l.b16 %v250
      %v439 = vunpack.c.h.b16 %v250
      %v440 = vunpack.c.l.b16 %v251
      %v441 = vunpack.c.l.b16 %v252
      %v442 = vunpack.c.h.b16 %v252
      %v443 = vunpack.c.l.b16 %v253
      %v444 = vunpack.c.l.b16 %v254
      %v445 = vunpack.c.h.b16 %v254
      %v446 = vunpack.c.l.b16 %v255
      %v447 = vunpack.c.l.b16 %v256
      %v448 = vunpack.c.h.b16 %v256
      %v449 = vunpack.c.l.b16 %v257
      %v450 = vunpack.c.l.b16 %v258
      %v451 = vunpack.c.h.b16 %v258
      %v452 = vunpack.c.l.b16 %v259
      %v453 = vunpack.c.l.b16 %v260
      %v454 = vunpack.c.h.b16 %v260
      %v455 = vunpack.c.l.b16 %v261
      %v456 = vunpack.c.l.b16 %v262
      %v457 = vunpack.c.h.b16 %v262
      %v458 = vunpack.c.l.b16 %v263
      %v459 = vunpack.c.l.b16 %v264
      %v460 = vunpack.c.h.b16 %v264
      %v461 = vunpack.c.l.b16 %v265
      %v462 = vunpack.c.l.b16 %v266
      %v463 = vunpack.c.h.b16 %v266
      %v464 = vunpack.c.l.b16 %v267
      %v465 = vunpack.c.l.b16 %v268
      %v466 = vunpack.c.h.b16 %v268
      %v467 = vunpack.c.l.b16 %v269
      %v468 = vunpack.c.l.b16 %v270
      %v469 = vunpack.c.h.b16 %v270
      %v470 = vunpack.c.l.b16 %v271
      %v471 = vunpack.c.l.b16 %v272
      %v472 = vunpack.c.h.b16 %v272
      %v473 = vunpack.c.l.b16 %v273
      %v474 = vunpack.c.l.b16 %v274
      %v475 = vunpack.c.h.b16 %v274
      %v476 = vunpack.c.l.b16 %v275
      %v477 = vunpack.c.l.b16 %v276
      %v478 = vunpack.c.h.b16 %v276
      %v479 = vunpack.c.l.b16 %v277
      %v480 = vunpack.c.l.b16 %v278
      %v481 = vunpack.c.h.b16 %v278
      %v482 = vunpack.c.l.b16 %v279
      %v483 = vpack.c.b16 %v390, %v387
      %v484 = vpack.c.b16 %v391, %v388
      %v485 = vpack.c.b16 %v392, %v389
      %v486 = vpack.c.b16 %v396, %v393
      %v487 = vpack.c.b16 %v397, %v394
      %v488 = vpack.c.b16 %v398, %v395
      %v489 = vpack.c.b16 %v402, %v399
      %v490 = vpack.c.b16 %v403, %v400
      %v491 = vpack.c.b16 %v404, %v401
      %v492 = vpack.c.b16 %v408, %v405
      %v493 = vpack.c.b16 %v409, %v406
      %v494 = vpack.c.b16 %v410, %v407
      %v495 = vpack.c.b16 %v414, %v411
      %v496 = vpack.c.b16 %v415, %v412
      %v497 = vpack.c.b16 %v416, %v413
      %v498 = vpack.c.b16 %v420, %v417
      %v499 = vpack.c.b16 %v421, %v418
      %v500 = vpack.c.b16 %v422, %v419
      %v501 = vpack.c.b16 %v426, %v423
      %v502 = vpack.c.b16 %v427, %v424
      %v503 = vpack.c.b16 %v428, %v425
      %v504 = vpack.c.b16 %v432, %v429
      %v505 = vpack.c.b16 %v433, %v430
      %v506 = vpack.c.b16 %v434, %v431
      %v507 = vpack.c.b16 %v438, %v435
      %v508 = vpack.c.b16 %v439, %v436
      %v509 = vpack.c.b16 %v440, %v437
      %v510 = vpack.c.b16 %v444, %v441
      %v511 = vpack.c.b16 %v445, %v442
      %v512 = vpack.c.b16 %v446, %v443
      %v513 = vpack.c.b16 %v450, %v447
      %v514 = vpack.c.b16 %v451, %v448
      %v515 = vpack.c.b16 %v452, %v449
      %v516 = vpack.c.b16 %v456, %v453
      %v517 = vpack.c.b16 %v457, %v454
      %v518 = vpack.c.b16 %v458, %v455
      %v519 = vpack.c.b16 %v462, %v459
      %v520 = vpack.c.b16 %v463, %v460
      %v521 = vpack.c.b16 %v464, %v461
      %v522 = vpack.c.b16 %v468, %v465
      %v523 = vpack.c.b16 %v469, %v466
      %v524 = vpack.c.b16 %v470, %v467
      %v525 = vpack.c.b16 %v474, %v471
      %v526 = vpack.c.b16 %v475, %v472
      %v527 = vpack.c.b16 %v476, %v473
      %v528 = vpack.c.b16 %v480, %v477
      %v529 = vpack.c.b16 %v481, %v478
      %v530 = vpack.c.b16 %v482, %v479
      %v599 = vunpack.c.l.b16 %v280
      %v600 = vunpack.c.l.b16 %v281
      %v601 = vunpack.c.l.b16 %v282
      %v602 = vunpack.c.l.b16 %v283
      %v603 = vunpack.c.l.b16 %v284
      %v604 = vunpack.c.l.b16 %v285
      %v605 = vunpack.c.l.b16 %v286
      %v606 = vunpack.c.l.b16 %v287
      %v607 = vunpack.c.l.b16 %v288
      %v608 = vunpack.c.l.b16 %v289
      %v609 = vunpack.c.l.b16 %v290
      %v610 = vunpack.c.l.b16 %v291
      %v611 = vunpack.c.l.b16 %v292
      %v612 = vunpack.c.l.b16 %v293
      %v613 = vunpack.c.l.b16 %v294
      %v614 = vunpack.c.l.b16 %v295
      %v615 = vunpack.c.l.b16 %v296
      %v616 = vunpack.c.l.b16 %v297
      %v617 = vunpack.c.l.b16 %v298
      %v618 = vunpack.c.l.b16 %v299
      %v619 = vunpack.c.l.b16 %v300
      %v620 = vunpack.c.l.b16 %v301
      %v621 = vunpack.c.l.b16 %v302
      %v622 = vunpack.c.l.b16 %v303
      %v623 = vunpack.c.l.b16 %v304
      %v624 = vunpack.c.l.b16 %v305
      %v625 = vunpack.c.l.b16 %v306
      %v626 = vunpack.c.l.b16 %v307
      %v627 = vunpack.c.l.b16 %v308
      %v628 = vunpack.c.l.b16 %v309
      %v629 = vunpack.c.l.b16 %v310
      %v630 = vunpack.c.l.b16 %v311
      %v631 = vunpack.c.l.b16 %v312
      %v632 = vunpack.c.l.b16 %v313
      %v633 = vunpack.c.l.b16 %v314
      %v634 = vunpack.c.l.b16 %v315
      %v635 = vpack.c.b16 %v600, %v599
      %v636 = vpack.c.b16 %v602, %v601
      %v637 = vpack.c.b16 %v604, %v603
      %v638 = vpack.c.b16 %v606, %v605
      %v639 = vpack.c.b16 %v608, %v607
      %v640 = vpack.c.b16 %v610, %v609
      %v641 = vpack.c.b16 %v612, %v611
      %v642 = vpack.c.b16 %v614, %v613
      %v643 = vpack.c.b16 %v616, %v615
      %v644 = vpack.c.b16 %v618, %v617
      %v645 = vpack.c.b16 %v620, %v619
      %v646 = vpack.c.b16 %v622, %v621
      %v647 = vpack.c.b16 %v624, %v623
      %v648 = vpack.c.b16 %v626, %v625
      %v649 = vpack.c.b16 %v628, %v627
      %v650 = vpack.c.b16 %v630, %v629
      %v651 = vpack.c.b16 %v632, %v631
      %v652 = vpack.c.b16 %v634, %v633
      %vm671 = vcmask 261120
      %v673 = vsel %vm671, %v485, 0
      %v676 = vsel %vm671, %v488, 0
      %v679 = vsel %vm671, %v491, 0
      %v682 = vsel %vm671, %v494, 0
      %v685 = vsel %vm671, %v497, 0
      %v688 = vsel %vm671, %v500, 0
      %v691 = vsel %vm671, %v503, 0
      %v694 = vsel %vm671, %v506, 0
      %v697 = vsel %vm671, %v509, 0
      %v700 = vsel %vm671, %v512, 0
      %v703 = vsel %vm671, %v515, 0
      %v706 = vsel %vm671, %v518, 0
      %v709 = vsel %vm671, %v521, 0
      %v712 = vsel %vm671, %v524, 0
      %v715 = vsel %vm671, %v527, 0
      %v718 = vsel %vm671, %v530, 0
      %720 = vmatprep.subr.bf16.mxu0 0
      %721 = vmatpush1.bf16.msra.mxu0 %v635
      %722 = vmatprep.subr.bf16.mxu0 0
      %723 = vmatpush1.bf16.msra.mxu0 %v636
      %724 = vmatprep.subr.bf16.mxu0 0
      %725 = vmatpush1.bf16.msra.mxu0 %v637
      %726 = vmatprep.subr.bf16.mxu0 0
      %727 = vmatpush1.bf16.msra.mxu0 %v638
      %728 = vmatprep.subr.bf16.mxu0 0
      %729 = vmatpush1.bf16.msra.mxu0 %v639
      %730 = vmatprep.subr.bf16.mxu0 0
      %731 = vmatpush1.bf16.msra.mxu0 %v640
      %732 = vmatprep.subr.bf16.mxu0 0
      %733 = vmatpush1.bf16.msra.mxu0 %v641
      %734 = vmatprep.subr.bf16.mxu0 0
      %735 = vmatpush1.bf16.msra.mxu0 %v642
      %736 = vmatprep.subr.bf16.mxu0 0
      %737 = vmatpush1.bf16.msra.mxu0 %v643
      %738 = vmatprep.subr.bf16.mxu0 0
      %739 = vmatpush1.bf16.msra.mxu0 %v644
      %740 = vmatprep.subr.bf16.mxu0 0
      %741 = vmatpush1.bf16.msra.mxu0 %v645
      %742 = vmatprep.subr.bf16.mxu0 0
      %743 = vmatpush1.bf16.msra.mxu0 %v646
      %744 = vmatprep.subr.bf16.mxu0 0
      %745 = vmatpush1.bf16.msra.mxu0 %v647
      %746 = vmatprep.subr.bf16.mxu0 0
      %747 = vmatpush1.bf16.msra.mxu0 %v648
      %748 = vmatprep.subr.bf16.mxu0 0
      %749 = vmatpush1.bf16.msra.mxu0 %v649
      %750 = vmatprep.subr.bf16.mxu0 0
      %751 = vmatpush1.bf16.msra.mxu0 %v650
      %752 = vmatprep.mubr.bf16.mxu0 %v484
      %753 = vmatmul.mubr.bf16.gmra.mrb[0].mxu0 %v483
      %v754 = vpop.f32.mrb[0].mxu0
      %v755 = vadd.f32 %v321, %v754
      %v756 = vpop.f32.mrb[0].mxu0
      %v757 = vpop.f32.mrb[0].mxu0
      %v758 = vadd.f32 %v321, %v757
      %v759 = vpop.f32.mrb[0].mxu0
      %760 = vmatprep.mubr.bf16.mxu0 %v487
      %761 = vmatmul.mubr.bf16.gmra.mrb[0].mxu0 %v486
      %v762 = vpop.f32.mrb[0].mxu0
      %v763 = vadd.f32 %v321, %v762
      %v764 = vpop.f32.mrb[0].mxu0
      %v765 = vpop.f32.mrb[0].mxu0
      %v766 = vadd.f32 %v321, %v765
      %v767 = vpop.f32.mrb[0].mxu0
      %768 = vmatprep.mubr.bf16.mxu0 %v490
      %769 = vmatmul.mubr.bf16.gmra.mrb[0].mxu0 %v489
      %v770 = vpop.f32.mrb[0].mxu0
      %v771 = vadd.f32 %v321, %v770
      %v772 = vpop.f32.mrb[0].mxu0
      %v773 = vpop.f32.mrb[0].mxu0
      %v774 = vadd.f32 %v321, %v773
      %v775 = vpop.f32.mrb[0].mxu0
      %776 = vmatprep.mubr.bf16.mxu0 %v493
      %777 = vmatmul.mubr.bf16.gmra.mrb[0].mxu0 %v492
      %v778 = vpop.f32.mrb[0].mxu0
      %v779 = vadd.f32 %v321, %v778
      %v780 = vpop.f32.mrb[0].mxu0
      %v781 = vpop.f32.mrb[0].mxu0
      %v782 = vadd.f32 %v321, %v781
      %v783 = vpop.f32.mrb[0].mxu0
      %784 = vmatprep.mubr.bf16.mxu0 %v496
      %785 = vmatmul.mubr.bf16.gmra.mrb[0].mxu0 %v495
      %v786 = vpop.f32.mrb[0].mxu0
      %v787 = vadd.f32 %v321, %v786
      %v788 = vpop.f32.mrb[0].mxu0
      %v789 = vpop.f32.mrb[0].mxu0
      %v790 = vadd.f32 %v321, %v789
      %v791 = vpop.f32.mrb[0].mxu0
      %792 = vmatprep.mubr.bf16.mxu0 %v499
      %793 = vmatmul.mubr.bf16.gmra.mrb[0].mxu0 %v498
      %v794 = vpop.f32.mrb[0].mxu0
      %v795 = vadd.f32 %v321, %v794
      %v796 = vpop.f32.mrb[0].mxu0
      %v797 = vpop.f32.mrb[0].mxu0
      %v798 = vadd.f32 %v321, %v797
      %v799 = vpop.f32.mrb[0].mxu0
      %800 = vmatprep.mubr.bf16.mxu0 %v502
      %801 = vmatmul.mubr.bf16.gmra.mrb[0].mxu0 %v501
      %v802 = vpop.f32.mrb[0].mxu0
      %v803 = vadd.f32 %v321, %v802
      %v804 = vpop.f32.mrb[0].mxu0
      %v805 = vpop.f32.mrb[0].mxu0
      %v806 = vadd.f32 %v321, %v805
      %v807 = vpop.f32.mrb[0].mxu0
      %808 = vmatprep.mubr.bf16.mxu0 %v505
      %809 = vmatmul.mubr.bf16.gmra.mrb[0].mxu0 %v504
      %v810 = vpop.f32.mrb[0].mxu0
      %v811 = vadd.f32 %v321, %v810
      %v812 = vpop.f32.mrb[0].mxu0
      %v813 = vpop.f32.mrb[0].mxu0
      %v814 = vadd.f32 %v321, %v813
      %v815 = vpop.f32.mrb[0].mxu0
      %816 = vmatprep.mubr.bf16.mxu0 %v508
      %817 = vmatmul.mubr.bf16.gmra.mrb[0].mxu0 %v507
      %v818 = vpop.f32.mrb[0].mxu0
      %v819 = vadd.f32 %v321, %v818
      %v820 = vpop.f32.mrb[0].mxu0
      %v821 = vpop.f32.mrb[0].mxu0
      %v822 = vadd.f32 %v321, %v821
      %v823 = vpop.f32.mrb[0].mxu0
      %824 = vmatprep.mubr.bf16.mxu0 %v511
      %825 = vmatmul.mubr.bf16.gmra.mrb[0].mxu0 %v510
      %v826 = vpop.f32.mrb[0].mxu0
      %v827 = vadd.f32 %v321, %v826
      %v828 = vpop.f32.mrb[0].mxu0
      %v829 = vpop.f32.mrb[0].mxu0
      %v830 = vadd.f32 %v321, %v829
      %v831 = vpop.f32.mrb[0].mxu0
      %832 = vmatprep.mubr.bf16.mxu0 %v514
      %833 = vmatmul.mubr.bf16.gmra.mrb[0].mxu0 %v513
      %v834 = vpop.f32.mrb[0].mxu0
      %v835 = vadd.f32 %v321, %v834
      %v836 = vpop.f32.mrb[0].mxu0
      %v837 = vpop.f32.mrb[0].mxu0
      %v838 = vadd.f32 %v321, %v837
      %v839 = vpop.f32.mrb[0].mxu0
      %840 = vmatprep.mubr.bf16.mxu0 %v517
      %841 = vmatmul.mubr.bf16.gmra.mrb[0].mxu0 %v516
      %v842 = vpop.f32.mrb[0].mxu0
      %v843 = vadd.f32 %v321, %v842
      %v844 = vpop.f32.mrb[0].mxu0
      %v845 = vpop.f32.mrb[0].mxu0
      %v846 = vadd.f32 %v321, %v845
      %v847 = vpop.f32.mrb[0].mxu0
      %848 = vmatprep.mubr.bf16.mxu0 %v520
      %849 = vmatmul.mubr.bf16.gmra.mrb[0].mxu0 %v519
      %v850 = vpop.f32.mrb[0].mxu0
      %v851 = vadd.f32 %v321, %v850
      %v852 = vpop.f32.mrb[0].mxu0
      %v853 = vpop.f32.mrb[0].mxu0
      %v854 = vadd.f32 %v321, %v853
      %v855 = vpop.f32.mrb[0].mxu0
      %856 = vmatprep.mubr.bf16.mxu0 %v523
      %857 = vmatmul.mubr.bf16.gmra.mrb[0].mxu0 %v522
      %v858 = vpop.f32.mrb[0].mxu0
      %v859 = vadd.f32 %v321, %v858
      %v860 = vpop.f32.mrb[0].mxu0
      %v861 = vpop.f32.mrb[0].mxu0
      %v862 = vadd.f32 %v321, %v861
      %v863 = vpop.f32.mrb[0].mxu0
      %864 = vmatprep.mubr.bf16.mxu0 %v526
      %865 = vmatmul.mubr.bf16.gmra.mrb[0].mxu0 %v525
      %v866 = vpop.f32.mrb[0].mxu0
      %v867 = vadd.f32 %v321, %v866
      %v868 = vpop.f32.mrb[0].mxu0
      %v869 = vpop.f32.mrb[0].mxu0
      %v870 = vadd.f32 %v321, %v869
      %v871 = vpop.f32.mrb[0].mxu0
      %872 = vmatprep.mubr.bf16.mxu0 %v529
      %873 = vmatmul.mubr.bf16.gmra.mrb[0].mxu0 %v528
      %v874 = vpop.f32.mrb[0].mxu0
      %v875 = vadd.f32 %v321, %v874
      %v876 = vpop.f32.mrb[0].mxu0
      %v877 = vpop.f32.mrb[0].mxu0
      %v878 = vadd.f32 %v321, %v877
      %v879 = vpop.f32.mrb[0].mxu0
      %880 = vdwg.mxu0
      %881 = vmatprep.subr.bf16.mxu0 0
      %882 = vmatpush1.bf16.msra.mxu0 %v651
      %883 = vmatprep.subr.bf16.mxu0 0
      %884 = vmatpush1.bf16.msra.mxu0 %v652
      %885 = vmatprep.subr.bf16.mxu0 0
      %886 = vmatpush1.bf16.msra.mxu0 0
      %887 = vmatprep.subr.bf16.mxu0 0
      %888 = vmatpush1.bf16.msra.mxu0 0
      %889 = vmatprep.subr.bf16.mxu0 0
      %890 = vmatpush1.bf16.msra.mxu0 0
      %891 = vmatprep.subr.bf16.mxu0 0
      %892 = vmatpush1.bf16.msra.mxu0 0
      %893 = vmatprep.subr.bf16.mxu0 0
      %894 = vmatpush1.bf16.msra.mxu0 0
      %895 = vmatprep.subr.bf16.mxu0 0
      %896 = vmatpush1.bf16.msra.mxu0 0
      %897 = vmatprep.subr.bf16.mxu0 0
      %898 = vmatpush1.bf16.msra.mxu0 0
      %899 = vmatprep.subr.bf16.mxu0 0
      %900 = vmatpush1.bf16.msra.mxu0 0
      %901 = vmatprep.subr.bf16.mxu0 0
      %902 = vmatpush1.bf16.msra.mxu0 0
      %903 = vmatprep.subr.bf16.mxu0 0
      %904 = vmatpush1.bf16.msra.mxu0 0
      %905 = vmatprep.subr.bf16.mxu0 0
      %906 = vmatpush1.bf16.msra.mxu0 0
      %907 = vmatprep.subr.bf16.mxu0 0
      %908 = vmatpush1.bf16.msra.mxu0 0
      %909 = vmatprep.subr.bf16.mxu0 0
      %910 = vmatpush1.bf16.msra.mxu0 0
      %911 = vmatprep.subr.bf16.mxu0 0
      %912 = vmatpush1.bf16.msra.mxu0 0
      %913 = vmatprep.mubr.bf16.mxu0 0
      %914 = vmatmul.mubr.bf16.gmra.mrb[0].mxu0 %v673
      %v915 = vpop.f32.mrb[0].mxu0
      %v916 = vadd.f32 %v755, %v915
      %v917 = vpop.f32.mrb[0].mxu0
      %v918 = vpop.f32.mrb[0].mxu0
      %v919 = vadd.f32 %v758, %v918
      %v920 = vpop.f32.mrb[0].mxu0
      %921 = vmatprep.mubr.bf16.mxu0 0
      %922 = vmatmul.mubr.bf16.gmra.mrb[0].mxu0 %v676
      %v923 = vpop.f32.mrb[0].mxu0
      %v924 = vadd.f32 %v763, %v923
      %v925 = vpop.f32.mrb[0].mxu0
      %v926 = vpop.f32.mrb[0].mxu0
      %v927 = vadd.f32 %v766, %v926
      %v928 = vpop.f32.mrb[0].mxu0
      %929 = vmatprep.mubr.bf16.mxu0 0
      %930 = vmatmul.mubr.bf16.gmra.mrb[0].mxu0 %v679
      %v931 = vpop.f32.mrb[0].mxu0
      %v932 = vadd.f32 %v771, %v931
      %v933 = vpop.f32.mrb[0].mxu0
      %v934 = vpop.f32.mrb[0].mxu0
      %v935 = vadd.f32 %v774, %v934
      %v936 = vpop.f32.mrb[0].mxu0
      %937 = vmatprep.mubr.bf16.mxu0 0
      %938 = vmatmul.mubr.bf16.gmra.mrb[0].mxu0 %v682
      %v939 = vpop.f32.mrb[0].mxu0
      %v940 = vadd.f32 %v779, %v939
      %v941 = vpop.f32.mrb[0].mxu0
      %v942 = vpop.f32.mrb[0].mxu0
      %v943 = vadd.f32 %v782, %v942
      %v944 = vpop.f32.mrb[0].mxu0
      %945 = vmatprep.mubr.bf16.mxu0 0
      %946 = vmatmul.mubr.bf16.gmra.mrb[0].mxu0 %v685
      %v947 = vpop.f32.mrb[0].mxu0
      %v948 = vadd.f32 %v787, %v947
      %v949 = vpop.f32.mrb[0].mxu0
      %v950 = vpop.f32.mrb[0].mxu0
      %v951 = vadd.f32 %v790, %v950
      %v952 = vpop.f32.mrb[0].mxu0
      %953 = vmatprep.mubr.bf16.mxu0 0
      %954 = vmatmul.mubr.bf16.gmra.mrb[0].mxu0 %v688
      %v955 = vpop.f32.mrb[0].mxu0
      %v956 = vadd.f32 %v795, %v955
      %v957 = vpop.f32.mrb[0].mxu0
      %v958 = vpop.f32.mrb[0].mxu0
      %v959 = vadd.f32 %v798, %v958
      %v960 = vpop.f32.mrb[0].mxu0
      %961 = vmatprep.mubr.bf16.mxu0 0
      %962 = vmatmul.mubr.bf16.gmra.mrb[0].mxu0 %v691
      %v963 = vpop.f32.mrb[0].mxu0
      %v964 = vadd.f32 %v803, %v963
      %v965 = vpop.f32.mrb[0].mxu0
      %v966 = vpop.f32.mrb[0].mxu0
      %v967 = vadd.f32 %v806, %v966
      %v968 = vpop.f32.mrb[0].mxu0
      %969 = vmatprep.mubr.bf16.mxu0 0
      %970 = vmatmul.mubr.bf16.gmra.mrb[0].mxu0 %v694
      %v971 = vpop.f32.mrb[0].mxu0
      %v972 = vadd.f32 %v811, %v971
      %v973 = vpop.f32.mrb[0].mxu0
      %v974 = vpop.f32.mrb[0].mxu0
      %v975 = vadd.f32 %v814, %v974
      %v976 = vpop.f32.mrb[0].mxu0
      %977 = vmatprep.mubr.bf16.mxu0 0
      %978 = vmatmul.mubr.bf16.gmra.mrb[0].mxu0 %v697
      %v979 = vpop.f32.mrb[0].mxu0
      %v980 = vadd.f32 %v819, %v979
      %v981 = vpop.f32.mrb[0].mxu0
      %v982 = vpop.f32.mrb[0].mxu0
      %v983 = vadd.f32 %v822, %v982
      %v984 = vpop.f32.mrb[0].mxu0
      %985 = vmatprep.mubr.bf16.mxu0 0
      %986 = vmatmul.mubr.bf16.gmra.mrb[0].mxu0 %v700
      %v987 = vpop.f32.mrb[0].mxu0
      %v988 = vadd.f32 %v827, %v987
      %v989 = vpop.f32.mrb[0].mxu0
      %v990 = vpop.f32.mrb[0].mxu0
      %v991 = vadd.f32 %v830, %v990
      %v992 = vpop.f32.mrb[0].mxu0
      %993 = vmatprep.mubr.bf16.mxu0 0
      %994 = vmatmul.mubr.bf16.gmra.mrb[0].mxu0 %v703
      %v995 = vpop.f32.mrb[0].mxu0
      %v996 = vadd.f32 %v835, %v995
      %v997 = vpop.f32.mrb[0].mxu0
      %v998 = vpop.f32.mrb[0].mxu0
      %v999 = vadd.f32 %v838, %v998
      %v1000 = vpop.f32.mrb[0].mxu0
      %1001 = vmatprep.mubr.bf16.mxu0 0
      %1002 = vmatmul.mubr.bf16.gmra.mrb[0].mxu0 %v706
      %v1003 = vpop.f32.mrb[0].mxu0
      %v1004 = vadd.f32 %v843, %v1003
      %v1005 = vpop.f32.mrb[0].mxu0
      %v1006 = vpop.f32.mrb[0].mxu0
      %v1007 = vadd.f32 %v846, %v1006
      %v1008 = vpop.f32.mrb[0].mxu0
      %1009 = vmatprep.mubr.bf16.mxu0 0
      %1010 = vmatmul.mubr.bf16.gmra.mrb[0].mxu0 %v709
      %v1011 = vpop.f32.mrb[0].mxu0
      %v1012 = vadd.f32 %v851, %v1011
      %v1013 = vpop.f32.mrb[0].mxu0
      %v1014 = vpop.f32.mrb[0].mxu0
      %v1015 = vadd.f32 %v854, %v1014
      %v1016 = vpop.f32.mrb[0].mxu0
      %1017 = vmatprep.mubr.bf16.mxu0 0
      %1018 = vmatmul.mubr.bf16.gmra.mrb[0].mxu0 %v712
      %v1019 = vpop.f32.mrb[0].mxu0
      %v1020 = vadd.f32 %v859, %v1019
      %v1021 = vpop.f32.mrb[0].mxu0
      %v1022 = vpop.f32.mrb[0].mxu0
      %v1023 = vadd.f32 %v862, %v1022
      %v1024 = vpop.f32.mrb[0].mxu0
      %1025 = vmatprep.mubr.bf16.mxu0 0
      %1026 = vmatmul.mubr.bf16.gmra.mrb[0].mxu0 %v715
      %v1027 = vpop.f32.mrb[0].mxu0
      %v1028 = vadd.f32 %v867, %v1027
      %v1029 = vpop.f32.mrb[0].mxu0
      %v1030 = vpop.f32.mrb[0].mxu0
      %v1031 = vadd.f32 %v870, %v1030
      %v1032 = vpop.f32.mrb[0].mxu0
      %1033 = vmatprep.mubr.bf16.mxu0 0
      %1034 = vmatmul.mubr.bf16.gmra.mrb[0].mxu0 %v718
      %v1035 = vpop.f32.mrb[0].mxu0
      %v1036 = vadd.f32 %v875, %v1035
      %v1037 = vpop.f32.mrb[0].mxu0
      %v1038 = vpop.f32.mrb[0].mxu0
      %v1039 = vadd.f32 %v878, %v1038
      %v1040 = vpop.f32.mrb[0].mxu0
      %1041 = vdwg.mxu0
      %vm1042 = vcmp.gt.f32.partialorder %v916, 0.0
      %vm1043 = vcmp.gt.f32.partialorder %v919, 0.0
      %vm1044 = vcmp.gt.f32.partialorder %v924, 0.0
      %vm1045 = vcmp.gt.f32.partialorder %v927, 0.0
      %vm1046 = vcmp.gt.f32.partialorder %v932, 0.0
      %vm1047 = vcmp.gt.f32.partialorder %v935, 0.0
      %vm1048 = vcmp.gt.f32.partialorder %v940, 0.0
      %vm1049 = vcmp.gt.f32.partialorder %v943, 0.0
      %vm1050 = vcmp.gt.f32.partialorder %v948, 0.0
      %vm1051 = vcmp.gt.f32.partialorder %v951, 0.0
      %vm1052 = vcmp.gt.f32.partialorder %v956, 0.0
      %vm1053 = vcmp.gt.f32.partialorder %v959, 0.0
      %vm1054 = vcmp.gt.f32.partialorder %v964, 0.0
      %vm1055 = vcmp.gt.f32.partialorder %v967, 0.0
      %vm1056 = vcmp.gt.f32.partialorder %v972, 0.0
      %vm1057 = vcmp.gt.f32.partialorder %v975, 0.0
      %vm1058 = vcmp.gt.f32.partialorder %v980, 0.0
      %vm1059 = vcmp.gt.f32.partialorder %v983, 0.0
      %vm1060 = vcmp.gt.f32.partialorder %v988, 0.0
      %vm1061 = vcmp.gt.f32.partialorder %v991, 0.0
      %vm1062 = vcmp.gt.f32.partialorder %v996, 0.0
      %vm1063 = vcmp.gt.f32.partialorder %v999, 0.0
      %vm1064 = vcmp.gt.f32.partialorder %v1004, 0.0
      %vm1065 = vcmp.gt.f32.partialorder %v1007, 0.0
      %vm1066 = vcmp.gt.f32.partialorder %v1012, 0.0
      %vm1067 = vcmp.gt.f32.partialorder %v1015, 0.0
      %vm1068 = vcmp.gt.f32.partialorder %v1020, 0.0
      %vm1069 = vcmp.gt.f32.partialorder %v1023, 0.0
      %vm1070 = vcmp.gt.f32.partialorder %v1028, 0.0
      %vm1071 = vcmp.gt.f32.partialorder %v1031, 0.0
      %vm1072 = vcmp.gt.f32.partialorder %v1036, 0.0
      %vm1073 = vcmp.gt.f32.partialorder %v1039, 0.0
      %v1074 = vmul.f32 %v916, 0.01
      %v1075 = vmul.f32 %v919, 0.01
      %v1076 = vmul.f32 %v924, 0.01
      %v1077 = vmul.f32 %v927, 0.01
      %v1078 = vmul.f32 %v932, 0.01
      %v1079 = vmul.f32 %v935, 0.01
      %v1080 = vmul.f32 %v940, 0.01
      %v1081 = vmul.f32 %v943, 0.01
      %v1082 = vmul.f32 %v948, 0.01
      %v1083 = vmul.f32 %v951, 0.01
      %v1084 = vmul.f32 %v956, 0.01
      %v1085 = vmul.f32 %v959, 0.01
      %v1086 = vmul.f32 %v964, 0.01
      %v1087 = vmul.f32 %v967, 0.01
      %v1088 = vmul.f32 %v972, 0.01
      %v1089 = vmul.f32 %v975, 0.01
      %v1090 = vmul.f32 %v980, 0.01
      %v1091 = vmul.f32 %v983, 0.01
      %v1092 = vmul.f32 %v988, 0.01
      %v1093 = vmul.f32 %v991, 0.01
      %v1094 = vmul.f32 %v996, 0.01
      %v1095 = vmul.f32 %v999, 0.01
      %v1096 = vmul.f32 %v1004, 0.01
      %v1097 = vmul.f32 %v1007, 0.01
      %v1098 = vmul.f32 %v1012, 0.01
      %v1099 = vmul.f32 %v1015, 0.01
      %v1100 = vmul.f32 %v1020, 0.01
      %v1101 = vmul.f32 %v1023, 0.01
      %v1102 = vmul.f32 %v1028, 0.01
      %v1103 = vmul.f32 %v1031, 0.01
      %v1104 = vmul.f32 %v1036, 0.01
      %v1105 = vmul.f32 %v1039, 0.01
      %v1106 = vsel %vm1042, %v916, %v1074
      %v1107 = vsel %vm1043, %v919, %v1075
      %v1108 = vsel %vm1044, %v924, %v1076
      %v1109 = vsel %vm1045, %v927, %v1077
      %v1110 = vsel %vm1046, %v932, %v1078
      %v1111 = vsel %vm1047, %v935, %v1079
      %v1112 = vsel %vm1048, %v940, %v1080
      %v1113 = vsel %vm1049, %v943, %v1081
      %v1114 = vsel %vm1050, %v948, %v1082
      %v1115 = vsel %vm1051, %v951, %v1083
      %v1116 = vsel %vm1052, %v956, %v1084
      %v1117 = vsel %vm1053, %v959, %v1085
      %v1118 = vsel %vm1054, %v964, %v1086
      %v1119 = vsel %vm1055, %v967, %v1087
      %v1120 = vsel %vm1056, %v972, %v1088
      %v1121 = vsel %vm1057, %v975, %v1089
      %v1122 = vsel %vm1058, %v980, %v1090
      %v1123 = vsel %vm1059, %v983, %v1091
      %v1124 = vsel %vm1060, %v988, %v1092
      %v1125 = vsel %vm1061, %v991, %v1093
      %v1126 = vsel %vm1062, %v996, %v1094
      %v1127 = vsel %vm1063, %v999, %v1095
      %v1128 = vsel %vm1064, %v1004, %v1096
      %v1129 = vsel %vm1065, %v1007, %v1097
      %v1130 = vsel %vm1066, %v1012, %v1098
      %v1131 = vsel %vm1067, %v1015, %v1099
      %v1132 = vsel %vm1068, %v1020, %v1100
      %v1133 = vsel %vm1069, %v1023, %v1101
      %v1134 = vsel %vm1070, %v1028, %v1102
      %v1135 = vsel %vm1071, %v1031, %v1103
      %v1136 = vsel %vm1072, %v1036, %v1104
      %v1137 = vsel %vm1073, %v1039, %v1105
      %1138 = vst.msk [vmem:[%s209] sm:$0xff] %vm671, %v1106
      %1139 = vst.msk [vmem:[%s209 + $0x8] sm:$0xff] %vm671, %v1107
      %1140 = vst.msk [vmem:[%s209 + $0x10] sm:$0xff] %vm671, %v1108
      %1141 = vst.msk [vmem:[%s209 + $0x18] sm:$0xff] %vm671, %v1109
      %1142 = vst.msk [vmem:[%s209 + $0x20] sm:$0xff] %vm671, %v1110
      %1143 = vst.msk [vmem:[%s209 + $0x28] sm:$0xff] %vm671, %v1111
      %1144 = vst.msk [vmem:[%s209 + $0x30] sm:$0xff] %vm671, %v1112
      %1145 = vst.msk [vmem:[%s209 + $0x38] sm:$0xff] %vm671, %v1113
      %1146 = vst.msk [vmem:[%s209 + $0x40] sm:$0xff] %vm671, %v1114
      %1147 = vst.msk [vmem:[%s209 + $0x48] sm:$0xff] %vm671, %v1115
      %1148 = vst.msk [vmem:[%s209 + $0x50] sm:$0xff] %vm671, %v1116
      %1149 = vst.msk [vmem:[%s209 + $0x58] sm:$0xff] %vm671, %v1117
      %1150 = vst.msk [vmem:[%s209 + $0x60] sm:$0xff] %vm671, %v1118
      %1151 = vst.msk [vmem:[%s209 + $0x68] sm:$0xff] %vm671, %v1119
      %1152 = vst.msk [vmem:[%s209 + $0x70] sm:$0xff] %vm671, %v1120
      %1153 = vst.msk [vmem:[%s209 + $0x78] sm:$0xff] %vm671, %v1121
      %1154 = vst.msk [vmem:[%s209 + $0x80] sm:$0xff] %vm671, %v1122
      %1155 = vst.msk [vmem:[%s209 + $0x88] sm:$0xff] %vm671, %v1123
      %1156 = vst.msk [vmem:[%s209 + $0x90] sm:$0xff] %vm671, %v1124
      %1157 = vst.msk [vmem:[%s209 + $0x98] sm:$0xff] %vm671, %v1125
      %1158 = vst.msk [vmem:[%s209 + $0xa0] sm:$0xff] %vm671, %v1126
      %1159 = vst.msk [vmem:[%s209 + $0xa8] sm:$0xff] %vm671, %v1127
      %1160 = vst.msk [vmem:[%s209 + $0xb0] sm:$0xff] %vm671, %v1128
      %1161 = vst.msk [vmem:[%s209 + $0xb8] sm:$0xff] %vm671, %v1129
      %1162 = vst.msk [vmem:[%s209 + $0xc0] sm:$0xff] %vm671, %v1130
      %1163 = vst.msk [vmem:[%s209 + $0xc8] sm:$0xff] %vm671, %v1131
      %1164 = vst.msk [vmem:[%s209 + $0xd0] sm:$0xff] %vm671, %v1132
      %1165 = vst.msk [vmem:[%s209 + $0xd8] sm:$0xff] %vm671, %v1133
      %1166 = vst.msk [vmem:[%s209 + $0xe0] sm:$0xff] %vm671, %v1134
      %1167 = vst.msk [vmem:[%s209 + $0xe8] sm:$0xff] %vm671, %v1135
      %1168 = vst.msk [vmem:[%s209 + $0xf0] sm:$0xff] %vm671, %v1136
      %1169 = vst.msk [vmem:[%s209 + $0xf8] sm:$0xff] %vm671, %v1137
      %v1170 = vsel %vm671, %v1106, 0.0
      %v1171 = vsel %vm671, %v1107, 0.0
      %v1172 = vadd.f32 %v1170, %v1171
      %v1173 = vsel %vm671, %v1108, 0.0
      %v1174 = vadd.f32 %v1172, %v1173
      %v1175 = vsel %vm671, %v1109, 0.0
      %v1176 = vadd.f32 %v1174, %v1175
      %v1177 = vsel %vm671, %v1110, 0.0
      %v1178 = vadd.f32 %v1176, %v1177
      %v1179 = vsel %vm671, %v1111, 0.0
      %v1180 = vadd.f32 %v1178, %v1179
      %v1181 = vsel %vm671, %v1112, 0.0
      %v1182 = vadd.f32 %v1180, %v1181
      %v1183 = vsel %vm671, %v1113, 0.0
      %v1184 = vadd.f32 %v1182, %v1183
      %v1185 = vsel %vm671, %v1114, 0.0
      %v1186 = vadd.f32 %v1184, %v1185
      %v1187 = vsel %vm671, %v1115, 0.0
      %v1188 = vadd.f32 %v1186, %v1187
      %v1189 = vsel %vm671, %v1116, 0.0
      %v1190 = vadd.f32 %v1188, %v1189
      %v1191 = vsel %vm671, %v1117, 0.0
      %v1192 = vadd.f32 %v1190, %v1191
      %v1193 = vsel %vm671, %v1118, 0.0
      %v1194 = vadd.f32 %v1192, %v1193
      %v1195 = vsel %vm671, %v1119, 0.0
      %v1196 = vadd.f32 %v1194, %v1195
      %v1197 = vsel %vm671, %v1120, 0.0
      %v1198 = vadd.f32 %v1196, %v1197
      %v1199 = vsel %vm671, %v1121, 0.0
      %v1200 = vadd.f32 %v1198, %v1199
      %v1201 = vsel %vm671, %v1122, 0.0
      %v1202 = vadd.f32 %v1200, %v1201
      %v1203 = vsel %vm671, %v1123, 0.0
      %v1204 = vadd.f32 %v1202, %v1203
      %v1205 = vsel %vm671, %v1124, 0.0
      %v1206 = vadd.f32 %v1204, %v1205
      %v1207 = vsel %vm671, %v1125, 0.0
      %v1208 = vadd.f32 %v1206, %v1207
      %v1209 = vsel %vm671, %v1126, 0.0
      %v1210 = vadd.f32 %v1208, %v1209
      %v1211 = vsel %vm671, %v1127, 0.0
      %v1212 = vadd.f32 %v1210, %v1211
      %v1213 = vsel %vm671, %v1128, 0.0
      %v1214 = vadd.f32 %v1212, %v1213
      %v1215 = vsel %vm671, %v1129, 0.0
      %v1216 = vadd.f32 %v1214, %v1215
      %v1217 = vsel %vm671, %v1130, 0.0
      %v1218 = vadd.f32 %v1216, %v1217
      %v1219 = vsel %vm671, %v1131, 0.0
      %v1220 = vadd.f32 %v1218, %v1219
      %v1221 = vsel %vm671, %v1132, 0.0
      %v1222 = vadd.f32 %v1220, %v1221
      %v1223 = vsel %vm671, %v1133, 0.0
      %v1224 = vadd.f32 %v1222, %v1223
      %v1225 = vsel %vm671, %v1134, 0.0
      %v1226 = vadd.f32 %v1224, %v1225
      %v1227 = vsel %vm671, %v1135, 0.0
      %v1228 = vadd.f32 %v1226, %v1227
      %v1229 = vsel %vm671, %v1136, 0.0
      %v1230 = vadd.f32 %v1228, %v1229
      %v1231 = vsel %vm671, %v1137, 0.0
      %v1232 = vadd.f32 %v1230, %v1231
      %v1233 = vrot.slane %v1232, 4
      %v1234 = vadd.f32 %v1232, %v1233
      %v1235 = vrot.slane %v1234, 2
      %v1236 = vadd.f32 %v1234, %v1235
      %v1237 = vrot.slane %v1236, 1
      %v1238 = vadd.f32 %v1236, %v1237
      %v1239 = vmul.f32 %v1106, %v1106
      %v1240 = vmul.f32 %v1107, %v1107
      %v1241 = vmul.f32 %v1108, %v1108
      %v1242 = vmul.f32 %v1109, %v1109
      %v1243 = vmul.f32 %v1110, %v1110
      %v1244 = vmul.f32 %v1111, %v1111
      %v1245 = vmul.f32 %v1112, %v1112
      %v1246 = vmul.f32 %v1113, %v1113
      %v1247 = vmul.f32 %v1114, %v1114
      %v1248 = vmul.f32 %v1115, %v1115
      %v1249 = vmul.f32 %v1116, %v1116
      %v1250 = vmul.f32 %v1117, %v1117
      %v1251 = vmul.f32 %v1118, %v1118
      %v1252 = vmul.f32 %v1119, %v1119
      %v1253 = vmul.f32 %v1120, %v1120
      %v1254 = vmul.f32 %v1121, %v1121
      %v1255 = vmul.f32 %v1122, %v1122
      %v1256 = vmul.f32 %v1123, %v1123
      %v1257 = vmul.f32 %v1124, %v1124
      %v1258 = vmul.f32 %v1125, %v1125
      %v1259 = vmul.f32 %v1126, %v1126
      %v1260 = vmul.f32 %v1127, %v1127
      %v1261 = vmul.f32 %v1128, %v1128
      %v1262 = vmul.f32 %v1129, %v1129
      %v1263 = vmul.f32 %v1130, %v1130
      %v1264 = vmul.f32 %v1131, %v1131
      %v1265 = vmul.f32 %v1132, %v1132
      %v1266 = vmul.f32 %v1133, %v1133
      %v1267 = vmul.f32 %v1134, %v1134
      %v1268 = vmul.f32 %v1135, %v1135
      %v1269 = vmul.f32 %v1136, %v1136
      %v1270 = vmul.f32 %v1137, %v1137
      %v1271 = vsel %vm671, %v1239, 0.0
      %v1272 = vsel %vm671, %v1240, 0.0
      %v1273 = vadd.f32 %v1271, %v1272
      %v1274 = vsel %vm671, %v1241, 0.0
      %v1275 = vadd.f32 %v1273, %v1274
      %v1276 = vsel %vm671, %v1242, 0.0
      %v1277 = vadd.f32 %v1275, %v1276
      %v1278 = vsel %vm671, %v1243, 0.0
      %v1279 = vadd.f32 %v1277, %v1278
      %v1280 = vsel %vm671, %v1244, 0.0
      %v1281 = vadd.f32 %v1279, %v1280
      %v1282 = vsel %vm671, %v1245, 0.0
      %v1283 = vadd.f32 %v1281, %v1282
      %v1284 = vsel %vm671, %v1246, 0.0
      %v1285 = vadd.f32 %v1283, %v1284
      %v1286 = vsel %vm671, %v1247, 0.0
      %v1287 = vadd.f32 %v1285, %v1286
      %v1288 = vsel %vm671, %v1248, 0.0
      %v1289 = vadd.f32 %v1287, %v1288
      %v1290 = vsel %vm671, %v1249, 0.0
      %v1291 = vadd.f32 %v1289, %v1290
      %v1292 = vsel %vm671, %v1250, 0.0
      %v1293 = vadd.f32 %v1291, %v1292
      %v1294 = vsel %vm671, %v1251, 0.0
      %v1295 = vadd.f32 %v1293, %v1294
      %v1296 = vsel %vm671, %v1252, 0.0
      %v1297 = vadd.f32 %v1295, %v1296
      %v1298 = vsel %vm671, %v1253, 0.0
      %v1299 = vadd.f32 %v1297, %v1298
      %v1300 = vsel %vm671, %v1254, 0.0
      %v1301 = vadd.f32 %v1299, %v1300
      %v1302 = vsel %vm671, %v1255, 0.0
      %v1303 = vadd.f32 %v1301, %v1302
      %v1304 = vsel %vm671, %v1256, 0.0
      %v1305 = vadd.f32 %v1303, %v1304
      %v1306 = vsel %vm671, %v1257, 0.0
      %v1307 = vadd.f32 %v1305, %v1306
      %v1308 = vsel %vm671, %v1258, 0.0
      %v1309 = vadd.f32 %v1307, %v1308
      %v1310 = vsel %vm671, %v1259, 0.0
      %v1311 = vadd.f32 %v1309, %v1310
      %v1312 = vsel %vm671, %v1260, 0.0
      %v1313 = vadd.f32 %v1311, %v1312
      %v1314 = vsel %vm671, %v1261, 0.0
      %v1315 = vadd.f32 %v1313, %v1314
      %v1316 = vsel %vm671, %v1262, 0.0
      %v1317 = vadd.f32 %v1315, %v1316
      %v1318 = vsel %vm671, %v1263, 0.0
      %v1319 = vadd.f32 %v1317, %v1318
      %v1320 = vsel %vm671, %v1264, 0.0
      %v1321 = vadd.f32 %v1319, %v1320
      %v1322 = vsel %vm671, %v1265, 0.0
      %v1323 = vadd.f32 %v1321, %v1322
      %v1324 = vsel %vm671, %v1266, 0.0
      %v1325 = vadd.f32 %v1323, %v1324
      %v1326 = vsel %vm671, %v1267, 0.0
      %v1327 = vadd.f32 %v1325, %v1326
      %v1328 = vsel %vm671, %v1268, 0.0
      %v1329 = vadd.f32 %v1327, %v1328
      %v1330 = vsel %vm671, %v1269, 0.0
      %v1331 = vadd.f32 %v1329, %v1330
      %v1332 = vsel %vm671, %v1270, 0.0
      %v1333 = vadd.f32 %v1331, %v1332
      %v1334 = vrot.slane %v1333, 4
      %v1335 = vadd.f32 %v1333, %v1334
      %v1336 = vrot.slane %v1335, 2
      %v1337 = vadd.f32 %v1335, %v1336
      %v1338 = vrot.slane %v1337, 1
      %v1339 = vadd.f32 %v1337, %v1338
      %vm1340 = vcmask 1040384
      %v1341 = vsel %vm1340, %v1238, %v1339
      %vm1342 = vcmask 254976
      %1343 = vst.msk [vmem:[%s214] sm:$0x3] %vm1342, %v1341
      %s1344 = smul.u32 32, %s16
      %p1345 = scmp.lt.s32.totalorder %s1344, 63
      %s1346 = scalar_select %p1345, %s1344, 63
      %s1347 = smul.addr %s1346, 8
      %s1348 = scalar_lea.vmem %s3, %s1347
      %p1349 = scmp.lt.s32.totalorder %s16, 1
      %s1350 = scalar_select %p1349, %s16, 1
      %s1351 = smul.addr %s1350, 2
      %s1352 = scalar_lea.vmem %s4, %s1351
      // Predicated region
      $region33: #{basic_decoder_forward.5} parent=31 // pred_check
        %p1353 = pneg %p102
      $region34: #{basic_decoder_forward.5} parent=31 // pred_check_branch
        %1355 = sbr.rel (%p1353) target = $region36
      $region35: #{basic_decoder_forward.5} parent=31 // pred_region
        %s1356 = smul.u32 32, %s16
      $region36: #{basic_decoder_forward.5} parent=31 // pred_fallthru
        _
      // Predicated region
      $region37: #{basic_decoder_forward.5} parent=31 // pred_check
        %p1357 = pneg %p128
      $region38: #{basic_decoder_forward.5} parent=31 // pred_check_branch
        %1359 = sbr.rel (%p1357) target = $region40
      $region39: #{basic_decoder_forward.5} parent=31 // pred_region
        _
      $region40: #{basic_decoder_forward.5} parent=31 // pred_fallthru
        _
    $region32: #{basic_decoder_forward.5} parent=5 // pred_fallthru
      _
    %p1360 = scmp.le.s32.totalorder 2, %s11
    // Predicated region
    $region41: #{basic_decoder_forward.5} parent=5 // pred_check
      %p1361 = pneg %p1360
    $region42: #{basic_decoder_forward.5} parent=5 // pred_check_branch
      %1363 = sbr.rel (%p1361) target = $region44
    $region43: #{basic_decoder_forward.5} parent=5 // pred_region
      %s1364 = ssub.s32 %s11, 2
      // Predicated region
      $region45: #{basic_decoder_forward.5} parent=43 // pred_check
        %p1365 = pneg %p108
      $region46: #{basic_decoder_forward.5} parent=43 // pred_check_branch
        %1367 = sbr.rel (%p1365) target = $region48
      $region47: #{basic_decoder_forward.5} parent=43 // pred_region
        %s1368 = smul.u32 32, %s17
        %p1369 = scmp.lt.s32.totalorder %s1368, 63
        %s1370 = scalar_select %p1369, %s1368, 63
        %s1371 = smul.addr %s1370, 8
        %s1372 = scalar_lea.vmem %s3, %s1371
      $region48: #{basic_decoder_forward.5} parent=43 // pred_fallthru
        _
      // Predicated region
      $region49: #{basic_decoder_forward.5} parent=43 // pred_check
        %p1373 = pneg %p134
      $region50: #{basic_decoder_forward.5} parent=43 // pred_check_branch
        %1375 = sbr.rel (%p1373) target = $region52
      $region51: #{basic_decoder_forward.5} parent=43 // pred_region
        %p1376 = scmp.lt.s32.totalorder %s17, 1
        %s1377 = scalar_select %p1376, %s17, 1
        %s1378 = smul.addr %s1377, 2
        %s1379 = scalar_lea.vmem %s4, %s1378
      $region52: #{basic_decoder_forward.5} parent=43 // pred_fallthru
        _
    $region44: #{basic_decoder_forward.5} parent=5 // pred_fallthru
      _
  $region6: #{basic_decoder_forward.5} parent=0 // loop_footer
    %s15 = sadd.s32 1, %s11
  $region7: #{basic_decoder_forward.5} parent=0 // loop_footer_branch
    %10 = sbr.rel target = $region3
  $region8: #{basic_decoder_forward.5} parent=0 // loop_exit
    _

// kernel: basic_decoder_forward.7
$region0: #{basic_decoder_forward.7}
  #allocation0 [shape = 'u32[]', space=smem, size = 0x4, offset = 0x4, fixed_abs, tag = 'smem constant byte address 0x4 - core index']
  #allocation1 [shape = 'u32[144,128]{1,0:T(1,128)}', space=vmem, size = 0x12000, scoped, tag = 'internal scratch']
  %s0 = inlined_call_operand.vmem [shape: bf16[512,288], index: 0, kind: input, shape index: {}]
  %s1 = inlined_call_operand.vmem [shape: bf16[288,128], index: 1, kind: input, shape index: {}]
  %s2 = inlined_call_operand.vmem [shape: f32[1,128], index: 2, kind: input, shape index: {}]
  %s3 = inlined_call_operand.vmem [shape: f32[512,128], index: 3, kind: output, shape index: {}]
  %s4 = sld [smem:[#allocation0]]
  $region45: #{basic_decoder_forward.7} parent=0
    _
  %s6 = ssub.s32 1, %s4
  %s7 = scalar_select 0, %s6, %s4
  loop: start=0, step=1, limit=4
  $region2: #{basic_decoder_forward.7} parent=0 // loop_pre_header
    _
  $region3: #{basic_decoder_forward.7} parent=0 // loop_header
    %s9 = sphi 0, %s13
    %p10 = scmp.ge.s32.totalorder %s9, 4
    %s19 = sphi 0, %s21
    %s22 = sphi 0, %s19
    %s23 = sphi 0, %s22
    %s39 = sphi 0, %s23
    %s43 = sphi 0, %s43
    %s45 = sphi 0, %s43
    %s46 = sphi 0, %s45
    %s60 = sphi 0, %s46
    %s64 = sphi 0, %s64
    %s66 = sphi 0, %s64
    %s67 = sphi 0, %s66
    %s81 = sphi 0, %s67
    %s87 = sphi 0, %s89
    %s90 = sphi 0, %s87
    %s91 = sphi 0, %s90
    %s107 = sphi 0, %s91
  $region4: #{basic_decoder_forward.7} parent=0 // loop_header_branch
    %12 = sbr.rel (%p10) target = $region8
  $region5: #{basic_decoder_forward.7} parent=0 // loop_body
    %s14 = ssub.s32 %s9, 1
    %s15 = ssub.s32 %s9, 2
    %s16 = sadd.s32 %s9, 1
    %s17 = ssub.s32 %s9, %s16
    %p18 = scmp.eq.s32.totalorder %s17, 0
    %s20 = sadd.s32 %s19, 1
    %s21 = scalar_select %p18, %s19, %s20
    %p24 = pneg %p18
    %p25 = scmp.eq.s32.totalorder %s9, 1
    %p26 = por %p24, %p25
    %p27 = scmp.ne.s32.totalorder %s19, %s22
    %p28 = scmp.eq.s32.totalorder %s9, 0
    %p29 = por %p27, %p28
    %p30 = scmp.ne.s32.totalorder %s19, %s22
    %p31 = scmp.eq.s32.totalorder %s14, 1
    %p32 = por %p30, %p31
    %p33 = scmp.ne.s32.totalorder %s22, %s23
    %p34 = scmp.eq.s32.totalorder %s14, 0
    %p35 = por %p33, %p34
    %p36 = scmp.ne.s32.totalorder %s22, %s23
    %p37 = scmp.eq.s32.totalorder %s15, 1
    %p38 = por %p36, %p37
    %p40 = scmp.ne.s32.totalorder %s23, %s39
    %p41 = scmp.eq.s32.totalorder %s15, 0
    %p42 = por %p40, %p41
    %s44 = sadd.s32 %s43, 1
    %p47 = scmp.eq.s32.totalorder %s9, 1
    %p48 = scmp.ne.s32.totalorder %s43, %s45
    %p49 = scmp.eq.s32.totalorder %s9, 0
    %p50 = por %p48, %p49
    %p51 = scmp.ne.s32.totalorder %s43, %s45
    %p52 = scmp.eq.s32.totalorder %s14, 1
    %p53 = por %p51, %p52
    %p54 = scmp.ne.s32.totalorder %s45, %s46
    %p55 = scmp.eq.s32.totalorder %s14, 0
    %p56 = por %p54, %p55
    %p57 = scmp.ne.s32.totalorder %s45, %s46
    %p58 = scmp.eq.s32.totalorder %s15, 1
    %p59 = por %p57, %p58
    %p61 = scmp.ne.s32.totalorder %s46, %s60
    %p62 = scmp.eq.s32.totalorder %s15, 0
    %p63 = por %p61, %p62
    %s65 = sadd.s32 %s64, 1
    %p68 = scmp.eq.s32.totalorder %s9, 1
    %p69 = scmp.ne.s32.totalorder %s64, %s66
    %p70 = scmp.eq.s32.totalorder %s9, 0
    %p71 = por %p69, %p70
    %p72 = scmp.ne.s32.totalorder %s64, %s66
    %p73 = scmp.eq.s32.totalorder %s14, 1
    %p74 = por %p72, %p73
    %p75 = scmp.ne.s32.totalorder %s66, %s67
    %p76 = scmp.eq.s32.totalorder %s14, 0
    %p77 = por %p75, %p76
    %p78 = scmp.ne.s32.totalorder %s66, %s67
    %p79 = scmp.eq.s32.totalorder %s15, 1
    %p80 = por %p78, %p79
    %p82 = scmp.ne.s32.totalorder %s67, %s81
    %p83 = scmp.eq.s32.totalorder %s15, 0
    %p84 = por %p82, %p83
    %s85 = ssub.s32 %s9, %s16
    %p86 = scmp.eq.s32.totalorder %s85, 0
    %s88 = sadd.s32 %s87, 1
    %s89 = scalar_select %p86, %s87, %s88
    %p92 = pneg %p86
    %p93 = scmp.eq.s32.totalorder %s9, 1
    %p94 = por %p92, %p93
    %p95 = scmp.ne.s32.totalorder %s87, %s90
    %p96 = scmp.eq.s32.totalorder %s9, 0
    %p97 = por %p95, %p96
    %p98 = scmp.ne.s32.totalorder %s87, %s90
    %p99 = scmp.eq.s32.totalorder %s14, 1
    %p100 = por %p98, %p99
    %p101 = scmp.ne.s32.totalorder %s90, %s91
    %p102 = scmp.eq.s32.totalorder %s14, 0
    %p103 = por %p101, %p102
    %p104 = scmp.ne.s32.totalorder %s90, %s91
    %p105 = scmp.eq.s32.totalorder %s15, 1
    %p106 = por %p104, %p105
    %p108 = scmp.ne.s32.totalorder %s91, %s107
    %p109 = scmp.eq.s32.totalorder %s15, 0
    %p110 = por %p108, %p109
    %p111 = scmp.le.s32.totalorder 1, %s9
    %p112 = scmp.lt.s32.totalorder %s9, 3
    %p113 = pnand %p111, %p112
    %p114 = pneg %p113
    // Predicated region
    $region9: #{basic_decoder_forward.7} parent=5 // pred_check
      _
    $region10: #{basic_decoder_forward.7} parent=5 // pred_check_branch
      %116 = sbr.rel (%p113) target = $region12
    $region11: #{basic_decoder_forward.7} parent=5 // pred_region
      %s117 = ssub.s32 %s9, 1
      // Predicated region
      $region13: #{basic_decoder_forward.7} parent=11 // pred_check
        %p118 = pneg %p56
      $region14: #{basic_decoder_forward.7} parent=11 // pred_check_branch
        %120 = sbr.rel (%p118) target = $region16
      $region15: #{basic_decoder_forward.7} parent=11 // pred_region
        _
      $region16: #{basic_decoder_forward.7} parent=11 // pred_fallthru
        _
      // Predicated region
      $region17: #{basic_decoder_forward.7} parent=11 // pred_check
        %p121 = pneg %p77
      $region18: #{basic_decoder_forward.7} parent=11 // pred_check_branch
        %123 = sbr.rel (%p121) target = $region20
      $region19: #{basic_decoder_forward.7} parent=11 // pred_region
        _
      $region20: #{basic_decoder_forward.7} parent=11 // pred_fallthru
        _
    $region12: #{basic_decoder_forward.7} parent=5 // pred_fallthru
      _
    %p124 = scmp.lt.s32.totalorder %s9, 2
    // Predicated region
    $region21: #{basic_decoder_forward.7} parent=5 // pred_check
      %p125 = pneg %p124
    $region22: #{basic_decoder_forward.7} parent=5 // pred_check_branch
      %127 = sbr.rel (%p125) target = $region24
    $region23: #{basic_decoder_forward.7} parent=5 // pred_region
      // Predicated region
      $region25: #{basic_decoder_forward.7} parent=23 // pred_check
        %p128 = pneg %p29
      $region26: #{basic_decoder_forward.7} parent=23 // pred_check_branch
        %130 = sbr.rel (%p128) target = $region28
      $region27: #{basic_decoder_forward.7} parent=23 // pred_region
        %s131 = smul.u32 32, %s9
        %p132 = scmp.lt.s32.totalorder %s131, 63
        %s133 = scalar_select %p132, %s131, 63
        %s134 = smul.addr %s133, 3
        %s135 = smul.addr %s134, 4
        %s136 = scalar_lea.vmem %s0, %s135
        %s137 = smul.u32 32, %s9
      $region28: #{basic_decoder_forward.7} parent=23 // pred_fallthru
        _
    $region24: #{basic_decoder_forward.7} parent=5 // pred_fallthru
      _
    %p138 = scmp.le.s32.totalorder 1, %s9
    %p139 = scmp.lt.s32.totalorder %s9, 3
    %p140 = pnand %p138, %p139
    %p141 = pneg %p140
    // Predicated region
    $region29: #{basic_decoder_forward.7} parent=5 // pred_check
      _
    $region30: #{basic_decoder_forward.7} parent=5 // pred_check_branch
      %143 = sbr.rel (%p140) target = $region32
    $region31: #{basic_decoder_forward.7} parent=5 // pred_region
      %s144 = ssub.s32 %s9, 1
      %s145 = smul.u32 32, %s14
      %p146 = scmp.lt.s32.totalorder %s145, 63
      %s147 = scalar_select %p146, %s145, 63
      %s148 = smul.addr %s147, 3
      %s149 = smul.addr %s148, 4
      %s150 = scalar_lea.vmem %s0, %s149
      %p151 = pneg %p35
      %p152 = pneg %p32
      %p153 = pneg %p56
      %p154 = pneg %p53
      %p155 = pneg %p77
      %p156 = pneg %p74
      %p157 = pneg %p103
      %p158 = pneg %p100
      %s159 = smul.u32 32, %s14
      %p160 = scmp.lt.s32.totalorder %s159, 63
      %s161 = scalar_select %p160, %s159, 63
      %s162 = smul.addr %s161, 8
      %s163 = scalar_lea.vmem %s3, %s162
      %s164 = smul.u32 32, %s14
      %p165 = scmp.lt.s32.totalorder %s164, 63
      %s166 = scalar_select %p165, %s164, 63
      %s167 = smul.addr %s166, 3
      %s168 = smul.addr %s167, 4
      %s169 = scalar_lea.vmem %s0, %s168
      %s170 = smul.u32 32, %s14
      %s171 = smul.u32 32, %s14
      %p172 = scmp.lt.s32.totalorder %s171, 63
      %s173 = scalar_select %p172, %s171, 63
      %s174 = smul.addr %s173, 8
      %s175 = scalar_lea.vmem %s3, %s174
      %s176 = smul.u32 32, %s14
      %v178 = vld [vmem:[%s169] sm:$0xff]
      %v179 = vld [vmem:[%s169 + $0x8] sm:$0xf]
      %v180 = vld [vmem:[%s169 + $0xc] sm:$0xff]
      %v181 = vld [vmem:[%s169 + $0x14] sm:$0xf]
      %v182 = vld [vmem:[%s169 + $0x18] sm:$0xff]
      %v183 = vld [vmem:[%s169 + $0x20] sm:$0xf]
      %v184 = vld [vmem:[%s169 + $0x24] sm:$0xff]
      %v185 = vld [vmem:[%s169 + $0x2c] sm:$0xf]
      %v186 = vld [vmem:[%s169 + $0x30] sm:$0xff]
      %v187 = vld [vmem:[%s169 + $0x38] sm:$0xf]
      %v188 = vld [vmem:[%s169 + $0x3c] sm:$0xff]
      %v189 = vld [vmem:[%s169 + $0x44] sm:$0xf]
      %v190 = vld [vmem:[%s169 + $0x48] sm:$0xff]
      %v191 = vld [vmem:[%s169 + $0x50] sm:$0xf]
      %v192 = vld [vmem:[%s169 + $0x54] sm:$0xff]
      %v193 = vld [vmem:[%s169 + $0x5c] sm:$0xf]
      %v194 = vld [vmem:[%s169 + $0x60] sm:$0xff]
      %v195 = vld [vmem:[%s169 + $0x68] sm:$0xf]
      %v196 = vld [vmem:[%s169 + $0x6c] sm:$0xff]
      %v197 = vld [vmem:[%s169 + $0x74] sm:$0xf]
      %v198 = vld [vmem:[%s169 + $0x78] sm:$0xff]
      %v199 = vld [vmem:[%s169 + $0x80] sm:$0xf]
      %v200 = vld [vmem:[%s169 + $0x84] sm:$0xff]
      %v201 = vld [vmem:[%s169 + $0x8c] sm:$0xf]
      %v202 = vld [vmem:[%s169 + $0x90] sm:$0xff]
      %v203 = vld [vmem:[%s169 + $0x98] sm:$0xf]
      %v204 = vld [vmem:[%s169 + $0x9c] sm:$0xff]
      %v205 = vld [vmem:[%s169 + $0xa4] sm:$0xf]
      %v206 = vld [vmem:[%s169 + $0xa8] sm:$0xff]
      %v207 = vld [vmem:[%s169 + $0xb0] sm:$0xf]
      %v208 = vld [vmem:[%s169 + $0xb4] sm:$0xff]
      %v209 = vld [vmem:[%s169 + $0xbc] sm:$0xf]
      %v210 = vld [vmem:[%s169 + $0xc0] sm:$0xff]
      %v211 = vld [vmem:[%s169 + $0xc8] sm:$0xf]
      %v212 = vld [vmem:[%s169 + $0xcc] sm:$0xff]
      %v213 = vld [vmem:[%s169 + $0xd4] sm:$0xf]
      %v214 = vld [vmem:[%s169 + $0xd8] sm:$0xff]
      %v215 = vld [vmem:[%s169 + $0xe0] sm:$0xf]
      %v216 = vld [vmem:[%s169 + $0xe4] sm:$0xff]
      %v217 = vld [vmem:[%s169 + $0xec] sm:$0xf]
      %v218 = vld [vmem:[%s169 + $0xf0] sm:$0xff]
      %v219 = vld [vmem:[%s169 + $0xf8] sm:$0xf]
      %v220 = vld [vmem:[%s169 + $0xfc] sm:$0xff]
      %v221 = vld [vmem:[%s169 + $0x104] sm:$0xf]
      %v222 = vld [vmem:[%s169 + $0x108] sm:$0xff]
      %v223 = vld [vmem:[%s169 + $0x110] sm:$0xf]
      %v224 = vld [vmem:[%s169 + $0x114] sm:$0xff]
      %v225 = vld [vmem:[%s169 + $0x11c] sm:$0xf]
      %v226 = vld [vmem:[%s169 + $0x120] sm:$0xff]
      %v227 = vld [vmem:[%s169 + $0x128] sm:$0xf]
      %v228 = vld [vmem:[%s169 + $0x12c] sm:$0xff]
      %v229 = vld [vmem:[%s169 + $0x134] sm:$0xf]
      %v230 = vld [vmem:[%s169 + $0x138] sm:$0xff]
      %v231 = vld [vmem:[%s169 + $0x140] sm:$0xf]
      %v232 = vld [vmem:[%s169 + $0x144] sm:$0xff]
      %v233 = vld [vmem:[%s169 + $0x14c] sm:$0xf]
      %v234 = vld [vmem:[%s169 + $0x150] sm:$0xff]
      %v235 = vld [vmem:[%s169 + $0x158] sm:$0xf]
      %v236 = vld [vmem:[%s169 + $0x15c] sm:$0xff]
      %v237 = vld [vmem:[%s169 + $0x164] sm:$0xf]
      %v238 = vld [vmem:[%s169 + $0x168] sm:$0xff]
      %v239 = vld [vmem:[%s169 + $0x170] sm:$0xf]
      %v240 = vld [vmem:[%s169 + $0x174] sm:$0xff]
      %v241 = vld [vmem:[%s169 + $0x17c] sm:$0xf]
      %v242 = vld [vmem:[%s1] sm:$0xf]
      %v243 = vld [vmem:[%s1 + $0x4] sm:$0xf]
      %v244 = vld [vmem:[%s1 + $0x8] sm:$0xf]
      %v245 = vld [vmem:[%s1 + $0xc] sm:$0xf]
      %v246 = vld [vmem:[%s1 + $0x10] sm:$0xf]
      %v247 = vld [vmem:[%s1 + $0x14] sm:$0xf]
      %v248 = vld [vmem:[%s1 + $0x18] sm:$0xf]
      %v249 = vld [vmem:[%s1 + $0x1c] sm:$0xf]
      %v250 = vld [vmem:[%s1 + $0x20] sm:$0xf]
      %v251 = vld [vmem:[%s1 + $0x24] sm:$0xf]
      %v252 = vld [vmem:[%s1 + $0x28] sm:$0xf]
      %v253 = vld [vmem:[%s1 + $0x2c] sm:$0xf]
      %v254 = vld [vmem:[%s1 + $0x30] sm:$0xf]
      %v255 = vld [vmem:[%s1 + $0x34] sm:$0xf]
      %v256 = vld [vmem:[%s1 + $0x38] sm:$0xf]
      %v257 = vld [vmem:[%s1 + $0x3c] sm:$0xf]
      %v258 = vld [vmem:[%s1 + $0x40] sm:$0xf]
      %v259 = vld [vmem:[%s1 + $0x44] sm:$0xf]
      %v260 = vld [vmem:[%s1 + $0x48] sm:$0xf]
      %v261 = vld [vmem:[%s1 + $0x4c] sm:$0xf]
      %v262 = vld [vmem:[%s1 + $0x50] sm:$0xf]
      %v263 = vld [vmem:[%s1 + $0x54] sm:$0xf]
      %v264 = vld [vmem:[%s1 + $0x58] sm:$0xf]
      %v265 = vld [vmem:[%s1 + $0x5c] sm:$0xf]
      %v266 = vld [vmem:[%s1 + $0x60] sm:$0xf]
      %v267 = vld [vmem:[%s1 + $0x64] sm:$0xf]
      %v268 = vld [vmem:[%s1 + $0x68] sm:$0xf]
      %v269 = vld [vmem:[%s1 + $0x6c] sm:$0xf]
      %v270 = vld [vmem:[%s1 + $0x70] sm:$0xf]
      %v271 = vld [vmem:[%s1 + $0x74] sm:$0xf]
      %v272 = vld [vmem:[%s1 + $0x78] sm:$0xf]
      %v273 = vld [vmem:[%s1 + $0x7c] sm:$0xf]
      %v274 = vld [vmem:[%s1 + $0x80] sm:$0xf]
      %v275 = vld [vmem:[%s1 + $0x84] sm:$0xf]
      %v276 = vld [vmem:[%s1 + $0x88] sm:$0xf]
      %v277 = vld [vmem:[%s1 + $0x8c] sm:$0xf]
      %v278 = vld [vmem:[%s2] sm:$0x1]
      %v280 = vlaneseq
      %v281 = vshrl.u32 %v280, 7
      %v282 = vsub.s32 0, %v281
      %v283 = vrot.slane %v278, %v282
      %v349 = vunpack.c.l.b16 %v178
      %v350 = vunpack.c.h.b16 %v178
      %v351 = vunpack.c.l.b16 %v179
      %v352 = vunpack.c.l.b16 %v180
      %v353 = vunpack.c.h.b16 %v180
      %v354 = vunpack.c.l.b16 %v181
      %v355 = vunpack.c.l.b16 %v182
      %v356 = vunpack.c.h.b16 %v182
      %v357 = vunpack.c.l.b16 %v183
      %v358 = vunpack.c.l.b16 %v184
      %v359 = vunpack.c.h.b16 %v184
      %v360 = vunpack.c.l.b16 %v185
      %v361 = vunpack.c.l.b16 %v186
      %v362 = vunpack.c.h.b16 %v186
      %v363 = vunpack.c.l.b16 %v187
      %v364 = vunpack.c.l.b16 %v188
      %v365 = vunpack.c.h.b16 %v188
      %v366 = vunpack.c.l.b16 %v189
      %v367 = vunpack.c.l.b16 %v190
      %v368 = vunpack.c.h.b16 %v190
      %v369 = vunpack.c.l.b16 %v191
      %v370 = vunpack.c.l.b16 %v192
      %v371 = vunpack.c.h.b16 %v192
      %v372 = vunpack.c.l.b16 %v193
      %v373 = vunpack.c.l.b16 %v194
      %v374 = vunpack.c.h.b16 %v194
      %v375 = vunpack.c.l.b16 %v195
      %v376 = vunpack.c.l.b16 %v196
      %v377 = vunpack.c.h.b16 %v196
      %v378 = vunpack.c.l.b16 %v197
      %v379 = vunpack.c.l.b16 %v198
      %v380 = vunpack.c.h.b16 %v198
      %v381 = vunpack.c.l.b16 %v199
      %v382 = vunpack.c.l.b16 %v200
      %v383 = vunpack.c.h.b16 %v200
      %v384 = vunpack.c.l.b16 %v201
      %v385 = vunpack.c.l.b16 %v202
      %v386 = vunpack.c.h.b16 %v202
      %v387 = vunpack.c.l.b16 %v203
      %v388 = vunpack.c.l.b16 %v204
      %v389 = vunpack.c.h.b16 %v204
      %v390 = vunpack.c.l.b16 %v205
      %v391 = vunpack.c.l.b16 %v206
      %v392 = vunpack.c.h.b16 %v206
      %v393 = vunpack.c.l.b16 %v207
      %v394 = vunpack.c.l.b16 %v208
      %v395 = vunpack.c.h.b16 %v208
      %v396 = vunpack.c.l.b16 %v209
      %v397 = vunpack.c.l.b16 %v210
      %v398 = vunpack.c.h.b16 %v210
      %v399 = vunpack.c.l.b16 %v211
      %v400 = vunpack.c.l.b16 %v212
      %v401 = vunpack.c.h.b16 %v212
      %v402 = vunpack.c.l.b16 %v213
      %v403 = vunpack.c.l.b16 %v214
      %v404 = vunpack.c.h.b16 %v214
      %v405 = vunpack.c.l.b16 %v215
      %v406 = vunpack.c.l.b16 %v216
      %v407 = vunpack.c.h.b16 %v216
      %v408 = vunpack.c.l.b16 %v217
      %v409 = vunpack.c.l.b16 %v218
      %v410 = vunpack.c.h.b16 %v218
      %v411 = vunpack.c.l.b16 %v219
      %v412 = vunpack.c.l.b16 %v220
      %v413 = vunpack.c.h.b16 %v220
      %v414 = vunpack.c.l.b16 %v221
      %v415 = vunpack.c.l.b16 %v222
      %v416 = vunpack.c.h.b16 %v222
      %v417 = vunpack.c.l.b16 %v223
      %v418 = vunpack.c.l.b16 %v224
      %v419 = vunpack.c.h.b16 %v224
      %v420 = vunpack.c.l.b16 %v225
      %v421 = vunpack.c.l.b16 %v226
      %v422 = vunpack.c.h.b16 %v226
      %v423 = vunpack.c.l.b16 %v227
      %v424 = vunpack.c.l.b16 %v228
      %v425 = vunpack.c.h.b16 %v228
      %v426 = vunpack.c.l.b16 %v229
      %v427 = vunpack.c.l.b16 %v230
      %v428 = vunpack.c.h.b16 %v230
      %v429 = vunpack.c.l.b16 %v231
      %v430 = vunpack.c.l.b16 %v232
      %v431 = vunpack.c.h.b16 %v232
      %v432 = vunpack.c.l.b16 %v233
      %v433 = vunpack.c.l.b16 %v234
      %v434 = vunpack.c.h.b16 %v234
      %v435 = vunpack.c.l.b16 %v235
      %v436 = vunpack.c.l.b16 %v236
      %v437 = vunpack.c.h.b16 %v236
      %v438 = vunpack.c.l.b16 %v237
      %v439 = vunpack.c.l.b16 %v238
      %v440 = vunpack.c.h.b16 %v238
      %v441 = vunpack.c.l.b16 %v239
      %v442 = vunpack.c.l.b16 %v240
      %v443 = vunpack.c.h.b16 %v240
      %v444 = vunpack.c.l.b16 %v241
      %v445 = vpack.c.b16 %v352, %v349
      %v446 = vpack.c.b16 %v353, %v350
      %v447 = vpack.c.b16 %v354, %v351
      %v448 = vpack.c.b16 %v358, %v355
      %v449 = vpack.c.b16 %v359, %v356
      %v450 = vpack.c.b16 %v360, %v357
      %v451 = vpack.c.b16 %v364, %v361
      %v452 = vpack.c.b16 %v365, %v362
      %v453 = vpack.c.b16 %v366, %v363
      %v454 = vpack.c.b16 %v370, %v367
      %v455 = vpack.c.b16 %v371, %v368
      %v456 = vpack.c.b16 %v372, %v369
      %v457 = vpack.c.b16 %v376, %v373
      %v458 = vpack.c.b16 %v377, %v374
      %v459 = vpack.c.b16 %v378, %v375
      %v460 = vpack.c.b16 %v382, %v379
      %v461 = vpack.c.b16 %v383, %v380
      %v462 = vpack.c.b16 %v384, %v381
      %v463 = vpack.c.b16 %v388, %v385
      %v464 = vpack.c.b16 %v389, %v386
      %v465 = vpack.c.b16 %v390, %v387
      %v466 = vpack.c.b16 %v394, %v391
      %v467 = vpack.c.b16 %v395, %v392
      %v468 = vpack.c.b16 %v396, %v393
      %v469 = vpack.c.b16 %v400, %v397
      %v470 = vpack.c.b16 %v401, %v398
      %v471 = vpack.c.b16 %v402, %v399
      %v472 = vpack.c.b16 %v406, %v403
      %v473 = vpack.c.b16 %v407, %v404
      %v474 = vpack.c.b16 %v408, %v405
      %v475 = vpack.c.b16 %v412, %v409
      %v476 = vpack.c.b16 %v413, %v410
      %v477 = vpack.c.b16 %v414, %v411
      %v478 = vpack.c.b16 %v418, %v415
      %v479 = vpack.c.b16 %v419, %v416
      %v480 = vpack.c.b16 %v420, %v417
      %v481 = vpack.c.b16 %v424, %v421
      %v482 = vpack.c.b16 %v425, %v422
      %v483 = vpack.c.b16 %v426, %v423
      %v484 = vpack.c.b16 %v430, %v427
      %v485 = vpack.c.b16 %v431, %v428
      %v486 = vpack.c.b16 %v432, %v429
      %v487 = vpack.c.b16 %v436, %v433
      %v488 = vpack.c.b16 %v437, %v434
      %v489 = vpack.c.b16 %v438, %v435
      %v490 = vpack.c.b16 %v442, %v439
      %v491 = vpack.c.b16 %v443, %v440
      %v492 = vpack.c.b16 %v444, %v441
      %v561 = vunpack.c.l.b16 %v242
      %v562 = vunpack.c.l.b16 %v243
      %v563 = vunpack.c.l.b16 %v244
      %v564 = vunpack.c.l.b16 %v245
      %v565 = vunpack.c.l.b16 %v246
      %v566 = vunpack.c.l.b16 %v247
      %v567 = vunpack.c.l.b16 %v248
      %v568 = vunpack.c.l.b16 %v249
      %v569 = vunpack.c.l.b16 %v250
      %v570 = vunpack.c.l.b16 %v251
      %v571 = vunpack.c.l.b16 %v252
      %v572 = vunpack.c.l.b16 %v253
      %v573 = vunpack.c.l.b16 %v254
      %v574 = vunpack.c.l.b16 %v255
      %v575 = vunpack.c.l.b16 %v256
      %v576 = vunpack.c.l.b16 %v257
      %v577 = vunpack.c.l.b16 %v258
      %v578 = vunpack.c.l.b16 %v259
      %v579 = vunpack.c.l.b16 %v260
      %v580 = vunpack.c.l.b16 %v261
      %v581 = vunpack.c.l.b16 %v262
      %v582 = vunpack.c.l.b16 %v263
      %v583 = vunpack.c.l.b16 %v264
      %v584 = vunpack.c.l.b16 %v265
      %v585 = vunpack.c.l.b16 %v266
      %v586 = vunpack.c.l.b16 %v267
      %v587 = vunpack.c.l.b16 %v268
      %v588 = vunpack.c.l.b16 %v269
      %v589 = vunpack.c.l.b16 %v270
      %v590 = vunpack.c.l.b16 %v271
      %v591 = vunpack.c.l.b16 %v272
      %v592 = vunpack.c.l.b16 %v273
      %v593 = vunpack.c.l.b16 %v274
      %v594 = vunpack.c.l.b16 %v275
      %v595 = vunpack.c.l.b16 %v276
      %v596 = vunpack.c.l.b16 %v277
      %v597 = vpack.c.b16 %v562, %v561
      %v598 = vpack.c.b16 %v564, %v563
      %v599 = vpack.c.b16 %v566, %v565
      %v600 = vpack.c.b16 %v568, %v567
      %v601 = vpack.c.b16 %v570, %v569
      %v602 = vpack.c.b16 %v572, %v571
      %v603 = vpack.c.b16 %v574, %v573
      %v604 = vpack.c.b16 %v576, %v575
      %v605 = vpack.c.b16 %v578, %v577
      %v606 = vpack.c.b16 %v580, %v579
      %v607 = vpack.c.b16 %v582, %v581
      %v608 = vpack.c.b16 %v584, %v583
      %v609 = vpack.c.b16 %v586, %v585
      %v610 = vpack.c.b16 %v588, %v587
      %v611 = vpack.c.b16 %v590, %v589
      %v612 = vpack.c.b16 %v592, %v591
      %v613 = vpack.c.b16 %v594, %v593
      %v614 = vpack.c.b16 %v596, %v595
      %vm633 = vcmask 261120
      %v635 = vsel %vm633, %v447, 0
      %v638 = vsel %vm633, %v450, 0
      %v641 = vsel %vm633, %v453, 0
      %v644 = vsel %vm633, %v456, 0
      %v647 = vsel %vm633, %v459, 0
      %v650 = vsel %vm633, %v462, 0
      %v653 = vsel %vm633, %v465, 0
      %v656 = vsel %vm633, %v468, 0
      %v659 = vsel %vm633, %v471, 0
      %v662 = vsel %vm633, %v474, 0
      %v665 = vsel %vm633, %v477, 0
      %v668 = vsel %vm633, %v480, 0
      %v671 = vsel %vm633, %v483, 0
      %v674 = vsel %vm633, %v486, 0
      %v677 = vsel %vm633, %v489, 0
      %v680 = vsel %vm633, %v492, 0
      %682 = vmatprep.subr.bf16.mxu0 0
      %683 = vmatpush1.bf16.msra.mxu0 %v597
      %684 = vmatprep.subr.bf16.mxu0 0
      %685 = vmatpush1.bf16.msra.mxu0 %v598
      %686 = vmatprep.subr.bf16.mxu0 0
      %687 = vmatpush1.bf16.msra.mxu0 %v599
      %688 = vmatprep.subr.bf16.mxu0 0
      %689 = vmatpush1.bf16.msra.mxu0 %v600
      %690 = vmatprep.subr.bf16.mxu0 0
      %691 = vmatpush1.bf16.msra.mxu0 %v601
      %692 = vmatprep.subr.bf16.mxu0 0
      %693 = vmatpush1.bf16.msra.mxu0 %v602
      %694 = vmatprep.subr.bf16.mxu0 0
      %695 = vmatpush1.bf16.msra.mxu0 %v603
      %696 = vmatprep.subr.bf16.mxu0 0
      %697 = vmatpush1.bf16.msra.mxu0 %v604
      %698 = vmatprep.subr.bf16.mxu0 0
      %699 = vmatpush1.bf16.msra.mxu0 %v605
      %700 = vmatprep.subr.bf16.mxu0 0
      %701 = vmatpush1.bf16.msra.mxu0 %v606
      %702 = vmatprep.subr.bf16.mxu0 0
      %703 = vmatpush1.bf16.msra.mxu0 %v607
      %704 = vmatprep.subr.bf16.mxu0 0
      %705 = vmatpush1.bf16.msra.mxu0 %v608
      %706 = vmatprep.subr.bf16.mxu0 0
      %707 = vmatpush1.bf16.msra.mxu0 %v609
      %708 = vmatprep.subr.bf16.mxu0 0
      %709 = vmatpush1.bf16.msra.mxu0 %v610
      %710 = vmatprep.subr.bf16.mxu0 0
      %711 = vmatpush1.bf16.msra.mxu0 %v611
      %712 = vmatprep.subr.bf16.mxu0 0
      %713 = vmatpush1.bf16.msra.mxu0 %v612
      %714 = vmatprep.mubr.bf16.mxu0 %v446
      %715 = vmatmul.mubr.bf16.gmra.mrb[0].mxu0 %v445
      %v716 = vpop.f32.mrb[0].mxu0
      %v717 = vadd.f32 %v283, %v716
      %v718 = vpop.f32.mrb[0].mxu0
      %v719 = vpop.f32.mrb[0].mxu0
      %v720 = vadd.f32 %v283, %v719
      %v721 = vpop.f32.mrb[0].mxu0
      %722 = vmatprep.mubr.bf16.mxu0 %v449
      %723 = vmatmul.mubr.bf16.gmra.mrb[0].mxu0 %v448
      %v724 = vpop.f32.mrb[0].mxu0
      %v725 = vadd.f32 %v283, %v724
      %v726 = vpop.f32.mrb[0].mxu0
      %v727 = vpop.f32.mrb[0].mxu0
      %v728 = vadd.f32 %v283, %v727
      %v729 = vpop.f32.mrb[0].mxu0
      %730 = vmatprep.mubr.bf16.mxu0 %v452
      %731 = vmatmul.mubr.bf16.gmra.mrb[0].mxu0 %v451
      %v732 = vpop.f32.mrb[0].mxu0
      %v733 = vadd.f32 %v283, %v732
      %v734 = vpop.f32.mrb[0].mxu0
      %v735 = vpop.f32.mrb[0].mxu0
      %v736 = vadd.f32 %v283, %v735
      %v737 = vpop.f32.mrb[0].mxu0
      %738 = vmatprep.mubr.bf16.mxu0 %v455
      %739 = vmatmul.mubr.bf16.gmra.mrb[0].mxu0 %v454
      %v740 = vpop.f32.mrb[0].mxu0
      %v741 = vadd.f32 %v283, %v740
      %v742 = vpop.f32.mrb[0].mxu0
      %v743 = vpop.f32.mrb[0].mxu0
      %v744 = vadd.f32 %v283, %v743
      %v745 = vpop.f32.mrb[0].mxu0
      %746 = vmatprep.mubr.bf16.mxu0 %v458
      %747 = vmatmul.mubr.bf16.gmra.mrb[0].mxu0 %v457
      %v748 = vpop.f32.mrb[0].mxu0
      %v749 = vadd.f32 %v283, %v748
      %v750 = vpop.f32.mrb[0].mxu0
      %v751 = vpop.f32.mrb[0].mxu0
      %v752 = vadd.f32 %v283, %v751
      %v753 = vpop.f32.mrb[0].mxu0
      %754 = vmatprep.mubr.bf16.mxu0 %v461
      %755 = vmatmul.mubr.bf16.gmra.mrb[0].mxu0 %v460
      %v756 = vpop.f32.mrb[0].mxu0
      %v757 = vadd.f32 %v283, %v756
      %v758 = vpop.f32.mrb[0].mxu0
      %v759 = vpop.f32.mrb[0].mxu0
      %v760 = vadd.f32 %v283, %v759
      %v761 = vpop.f32.mrb[0].mxu0
      %762 = vmatprep.mubr.bf16.mxu0 %v464
      %763 = vmatmul.mubr.bf16.gmra.mrb[0].mxu0 %v463
      %v764 = vpop.f32.mrb[0].mxu0
      %v765 = vadd.f32 %v283, %v764
      %v766 = vpop.f32.mrb[0].mxu0
      %v767 = vpop.f32.mrb[0].mxu0
      %v768 = vadd.f32 %v283, %v767
      %v769 = vpop.f32.mrb[0].mxu0
      %770 = vmatprep.mubr.bf16.mxu0 %v467
      %771 = vmatmul.mubr.bf16.gmra.mrb[0].mxu0 %v466
      %v772 = vpop.f32.mrb[0].mxu0
      %v773 = vadd.f32 %v283, %v772
      %v774 = vpop.f32.mrb[0].mxu0
      %v775 = vpop.f32.mrb[0].mxu0
      %v776 = vadd.f32 %v283, %v775
      %v777 = vpop.f32.mrb[0].mxu0
      %778 = vmatprep.mubr.bf16.mxu0 %v470
      %779 = vmatmul.mubr.bf16.gmra.mrb[0].mxu0 %v469
      %v780 = vpop.f32.mrb[0].mxu0
      %v781 = vadd.f32 %v283, %v780
      %v782 = vpop.f32.mrb[0].mxu0
      %v783 = vpop.f32.mrb[0].mxu0
      %v784 = vadd.f32 %v283, %v783
      %v785 = vpop.f32.mrb[0].mxu0
      %786 = vmatprep.mubr.bf16.mxu0 %v473
      %787 = vmatmul.mubr.bf16.gmra.mrb[0].mxu0 %v472
      %v788 = vpop.f32.mrb[0].mxu0
      %v789 = vadd.f32 %v283, %v788
      %v790 = vpop.f32.mrb[0].mxu0
      %v791 = vpop.f32.mrb[0].mxu0
      %v792 = vadd.f32 %v283, %v791
      %v793 = vpop.f32.mrb[0].mxu0
      %794 = vmatprep.mubr.bf16.mxu0 %v476
      %795 = vmatmul.mubr.bf16.gmra.mrb[0].mxu0 %v475
      %v796 = vpop.f32.mrb[0].mxu0
      %v797 = vadd.f32 %v283, %v796
      %v798 = vpop.f32.mrb[0].mxu0
      %v799 = vpop.f32.mrb[0].mxu0
      %v800 = vadd.f32 %v283, %v799
      %v801 = vpop.f32.mrb[0].mxu0
      %802 = vmatprep.mubr.bf16.mxu0 %v479
      %803 = vmatmul.mubr.bf16.gmra.mrb[0].mxu0 %v478
      %v804 = vpop.f32.mrb[0].mxu0
      %v805 = vadd.f32 %v283, %v804
      %v806 = vpop.f32.mrb[0].mxu0
      %v807 = vpop.f32.mrb[0].mxu0
      %v808 = vadd.f32 %v283, %v807
      %v809 = vpop.f32.mrb[0].mxu0
      %810 = vmatprep.mubr.bf16.mxu0 %v482
      %811 = vmatmul.mubr.bf16.gmra.mrb[0].mxu0 %v481
      %v812 = vpop.f32.mrb[0].mxu0
      %v813 = vadd.f32 %v283, %v812
      %v814 = vpop.f32.mrb[0].mxu0
      %v815 = vpop.f32.mrb[0].mxu0
      %v816 = vadd.f32 %v283, %v815
      %v817 = vpop.f32.mrb[0].mxu0
      %818 = vmatprep.mubr.bf16.mxu0 %v485
      %819 = vmatmul.mubr.bf16.gmra.mrb[0].mxu0 %v484
      %v820 = vpop.f32.mrb[0].mxu0
      %v821 = vadd.f32 %v283, %v820
      %v822 = vpop.f32.mrb[0].mxu0
      %v823 = vpop.f32.mrb[0].mxu0
      %v824 = vadd.f32 %v283, %v823
      %v825 = vpop.f32.mrb[0].mxu0
      %826 = vmatprep.mubr.bf16.mxu0 %v488
      %827 = vmatmul.mubr.bf16.gmra.mrb[0].mxu0 %v487
      %v828 = vpop.f32.mrb[0].mxu0
      %v829 = vadd.f32 %v283, %v828
      %v830 = vpop.f32.mrb[0].mxu0
      %v831 = vpop.f32.mrb[0].mxu0
      %v832 = vadd.f32 %v283, %v831
      %v833 = vpop.f32.mrb[0].mxu0
      %834 = vmatprep.mubr.bf16.mxu0 %v491
      %835 = vmatmul.mubr.bf16.gmra.mrb[0].mxu0 %v490
      %v836 = vpop.f32.mrb[0].mxu0
      %v837 = vadd.f32 %v283, %v836
      %v838 = vpop.f32.mrb[0].mxu0
      %v839 = vpop.f32.mrb[0].mxu0
      %v840 = vadd.f32 %v283, %v839
      %v841 = vpop.f32.mrb[0].mxu0
      %842 = vdwg.mxu0
      %843 = vmatprep.subr.bf16.mxu0 0
      %844 = vmatpush1.bf16.msra.mxu0 %v613
      %845 = vmatprep.subr.bf16.mxu0 0
      %846 = vmatpush1.bf16.msra.mxu0 %v614
      %847 = vmatprep.subr.bf16.mxu0 0
      %848 = vmatpush1.bf16.msra.mxu0 0
      %849 = vmatprep.subr.bf16.mxu0 0
      %850 = vmatpush1.bf16.msra.mxu0 0
      %851 = vmatprep.subr.bf16.mxu0 0
      %852 = vmatpush1.bf16.msra.mxu0 0
      %853 = vmatprep.subr.bf16.mxu0 0
      %854 = vmatpush1.bf16.msra.mxu0 0
      %855 = vmatprep.subr.bf16.mxu0 0
      %856 = vmatpush1.bf16.msra.mxu0 0
      %857 = vmatprep.subr.bf16.mxu0 0
      %858 = vmatpush1.bf16.msra.mxu0 0
      %859 = vmatprep.subr.bf16.mxu0 0
      %860 = vmatpush1.bf16.msra.mxu0 0
      %861 = vmatprep.subr.bf16.mxu0 0
      %862 = vmatpush1.bf16.msra.mxu0 0
      %863 = vmatprep.subr.bf16.mxu0 0
      %864 = vmatpush1.bf16.msra.mxu0 0
      %865 = vmatprep.subr.bf16.mxu0 0
      %866 = vmatpush1.bf16.msra.mxu0 0
      %867 = vmatprep.subr.bf16.mxu0 0
      %868 = vmatpush1.bf16.msra.mxu0 0
      %869 = vmatprep.subr.bf16.mxu0 0
      %870 = vmatpush1.bf16.msra.mxu0 0
      %871 = vmatprep.subr.bf16.mxu0 0
      %872 = vmatpush1.bf16.msra.mxu0 0
      %873 = vmatprep.subr.bf16.mxu0 0
      %874 = vmatpush1.bf16.msra.mxu0 0
      %875 = vmatprep.mubr.bf16.mxu0 0
      %876 = vmatmul.mubr.bf16.gmra.mrb[0].mxu0 %v635
      %v877 = vpop.f32.mrb[0].mxu0
      %v878 = vadd.f32 %v717, %v877
      %v879 = vpop.f32.mrb[0].mxu0
      %v880 = vpop.f32.mrb[0].mxu0
      %v881 = vadd.f32 %v720, %v880
      %v882 = vpop.f32.mrb[0].mxu0
      %883 = vmatprep.mubr.bf16.mxu0 0
      %884 = vmatmul.mubr.bf16.gmra.mrb[0].mxu0 %v638
      %v885 = vpop.f32.mrb[0].mxu0
      %v886 = vadd.f32 %v725, %v885
      %v887 = vpop.f32.mrb[0].mxu0
      %v888 = vpop.f32.mrb[0].mxu0
      %v889 = vadd.f32 %v728, %v888
      %v890 = vpop.f32.mrb[0].mxu0
      %891 = vmatprep.mubr.bf16.mxu0 0
      %892 = vmatmul.mubr.bf16.gmra.mrb[0].mxu0 %v641
      %v893 = vpop.f32.mrb[0].mxu0
      %v894 = vadd.f32 %v733, %v893
      %v895 = vpop.f32.mrb[0].mxu0
      %v896 = vpop.f32.mrb[0].mxu0
      %v897 = vadd.f32 %v736, %v896
      %v898 = vpop.f32.mrb[0].mxu0
      %899 = vmatprep.mubr.bf16.mxu0 0
      %900 = vmatmul.mubr.bf16.gmra.mrb[0].mxu0 %v644
      %v901 = vpop.f32.mrb[0].mxu0
      %v902 = vadd.f32 %v741, %v901
      %v903 = vpop.f32.mrb[0].mxu0
      %v904 = vpop.f32.mrb[0].mxu0
      %v905 = vadd.f32 %v744, %v904
      %v906 = vpop.f32.mrb[0].mxu0
      %907 = vmatprep.mubr.bf16.mxu0 0
      %908 = vmatmul.mubr.bf16.gmra.mrb[0].mxu0 %v647
      %v909 = vpop.f32.mrb[0].mxu0
      %v910 = vadd.f32 %v749, %v909
      %v911 = vpop.f32.mrb[0].mxu0
      %v912 = vpop.f32.mrb[0].mxu0
      %v913 = vadd.f32 %v752, %v912
      %v914 = vpop.f32.mrb[0].mxu0
      %915 = vmatprep.mubr.bf16.mxu0 0
      %916 = vmatmul.mubr.bf16.gmra.mrb[0].mxu0 %v650
      %v917 = vpop.f32.mrb[0].mxu0
      %v918 = vadd.f32 %v757, %v917
      %v919 = vpop.f32.mrb[0].mxu0
      %v920 = vpop.f32.mrb[0].mxu0
      %v921 = vadd.f32 %v760, %v920
      %v922 = vpop.f32.mrb[0].mxu0
      %923 = vmatprep.mubr.bf16.mxu0 0
      %924 = vmatmul.mubr.bf16.gmra.mrb[0].mxu0 %v653
      %v925 = vpop.f32.mrb[0].mxu0
      %v926 = vadd.f32 %v765, %v925
      %v927 = vpop.f32.mrb[0].mxu0
      %v928 = vpop.f32.mrb[0].mxu0
      %v929 = vadd.f32 %v768, %v928
      %v930 = vpop.f32.mrb[0].mxu0
      %931 = vmatprep.mubr.bf16.mxu0 0
      %932 = vmatmul.mubr.bf16.gmra.mrb[0].mxu0 %v656
      %v933 = vpop.f32.mrb[0].mxu0
      %v934 = vadd.f32 %v773, %v933
      %v935 = vpop.f32.mrb[0].mxu0
      %v936 = vpop.f32.mrb[0].mxu0
      %v937 = vadd.f32 %v776, %v936
      %v938 = vpop.f32.mrb[0].mxu0
      %939 = vmatprep.mubr.bf16.mxu0 0
      %940 = vmatmul.mubr.bf16.gmra.mrb[0].mxu0 %v659
      %v941 = vpop.f32.mrb[0].mxu0
      %v942 = vadd.f32 %v781, %v941
      %v943 = vpop.f32.mrb[0].mxu0
      %v944 = vpop.f32.mrb[0].mxu0
      %v945 = vadd.f32 %v784, %v944
      %v946 = vpop.f32.mrb[0].mxu0
      %947 = vmatprep.mubr.bf16.mxu0 0
      %948 = vmatmul.mubr.bf16.gmra.mrb[0].mxu0 %v662
      %v949 = vpop.f32.mrb[0].mxu0
      %v950 = vadd.f32 %v789, %v949
      %v951 = vpop.f32.mrb[0].mxu0
      %v952 = vpop.f32.mrb[0].mxu0
      %v953 = vadd.f32 %v792, %v952
      %v954 = vpop.f32.mrb[0].mxu0
      %955 = vmatprep.mubr.bf16.mxu0 0
      %956 = vmatmul.mubr.bf16.gmra.mrb[0].mxu0 %v665
      %v957 = vpop.f32.mrb[0].mxu0
      %v958 = vadd.f32 %v797, %v957
      %v959 = vpop.f32.mrb[0].mxu0
      %v960 = vpop.f32.mrb[0].mxu0
      %v961 = vadd.f32 %v800, %v960
      %v962 = vpop.f32.mrb[0].mxu0
      %963 = vmatprep.mubr.bf16.mxu0 0
      %964 = vmatmul.mubr.bf16.gmra.mrb[0].mxu0 %v668
      %v965 = vpop.f32.mrb[0].mxu0
      %v966 = vadd.f32 %v805, %v965
      %v967 = vpop.f32.mrb[0].mxu0
      %v968 = vpop.f32.mrb[0].mxu0
      %v969 = vadd.f32 %v808, %v968
      %v970 = vpop.f32.mrb[0].mxu0
      %971 = vmatprep.mubr.bf16.mxu0 0
      %972 = vmatmul.mubr.bf16.gmra.mrb[0].mxu0 %v671
      %v973 = vpop.f32.mrb[0].mxu0
      %v974 = vadd.f32 %v813, %v973
      %v975 = vpop.f32.mrb[0].mxu0
      %v976 = vpop.f32.mrb[0].mxu0
      %v977 = vadd.f32 %v816, %v976
      %v978 = vpop.f32.mrb[0].mxu0
      %979 = vmatprep.mubr.bf16.mxu0 0
      %980 = vmatmul.mubr.bf16.gmra.mrb[0].mxu0 %v674
      %v981 = vpop.f32.mrb[0].mxu0
      %v982 = vadd.f32 %v821, %v981
      %v983 = vpop.f32.mrb[0].mxu0
      %v984 = vpop.f32.mrb[0].mxu0
      %v985 = vadd.f32 %v824, %v984
      %v986 = vpop.f32.mrb[0].mxu0
      %987 = vmatprep.mubr.bf16.mxu0 0
      %988 = vmatmul.mubr.bf16.gmra.mrb[0].mxu0 %v677
      %v989 = vpop.f32.mrb[0].mxu0
      %v990 = vadd.f32 %v829, %v989
      %v991 = vpop.f32.mrb[0].mxu0
      %v992 = vpop.f32.mrb[0].mxu0
      %v993 = vadd.f32 %v832, %v992
      %v994 = vpop.f32.mrb[0].mxu0
      %995 = vmatprep.mubr.bf16.mxu0 0
      %996 = vmatmul.mubr.bf16.gmra.mrb[0].mxu0 %v680
      %v997 = vpop.f32.mrb[0].mxu0
      %v998 = vadd.f32 %v837, %v997
      %v999 = vpop.f32.mrb[0].mxu0
      %v1000 = vpop.f32.mrb[0].mxu0
      %v1001 = vadd.f32 %v840, %v1000
      %v1002 = vpop.f32.mrb[0].mxu0
      %1003 = vdwg.mxu0
      %1004 = vst [vmem:[%s175] sm:$0xff] %v878
      %1005 = vst [vmem:[%s175 + $0x8] sm:$0xff] %v881
      %1006 = vst [vmem:[%s175 + $0x10] sm:$0xff] %v886
      %1007 = vst [vmem:[%s175 + $0x18] sm:$0xff] %v889
      %1008 = vst [vmem:[%s175 + $0x20] sm:$0xff] %v894
      %1009 = vst [vmem:[%s175 + $0x28] sm:$0xff] %v897
      %1010 = vst [vmem:[%s175 + $0x30] sm:$0xff] %v902
      %1011 = vst [vmem:[%s175 + $0x38] sm:$0xff] %v905
      %1012 = vst [vmem:[%s175 + $0x40] sm:$0xff] %v910
      %1013 = vst [vmem:[%s175 + $0x48] sm:$0xff] %v913
      %1014 = vst [vmem:[%s175 + $0x50] sm:$0xff] %v918
      %1015 = vst [vmem:[%s175 + $0x58] sm:$0xff] %v921
      %1016 = vst [vmem:[%s175 + $0x60] sm:$0xff] %v926
      %1017 = vst [vmem:[%s175 + $0x68] sm:$0xff] %v929
      %1018 = vst [vmem:[%s175 + $0x70] sm:$0xff] %v934
      %1019 = vst [vmem:[%s175 + $0x78] sm:$0xff] %v937
      %1020 = vst [vmem:[%s175 + $0x80] sm:$0xff] %v942
      %1021 = vst [vmem:[%s175 + $0x88] sm:$0xff] %v945
      %1022 = vst [vmem:[%s175 + $0x90] sm:$0xff] %v950
      %1023 = vst [vmem:[%s175 + $0x98] sm:$0xff] %v953
      %1024 = vst [vmem:[%s175 + $0xa0] sm:$0xff] %v958
      %1025 = vst [vmem:[%s175 + $0xa8] sm:$0xff] %v961
      %1026 = vst [vmem:[%s175 + $0xb0] sm:$0xff] %v966
      %1027 = vst [vmem:[%s175 + $0xb8] sm:$0xff] %v969
      %1028 = vst [vmem:[%s175 + $0xc0] sm:$0xff] %v974
      %1029 = vst [vmem:[%s175 + $0xc8] sm:$0xff] %v977
      %1030 = vst [vmem:[%s175 + $0xd0] sm:$0xff] %v982
      %1031 = vst [vmem:[%s175 + $0xd8] sm:$0xff] %v985
      %1032 = vst [vmem:[%s175 + $0xe0] sm:$0xff] %v990
      %1033 = vst [vmem:[%s175 + $0xe8] sm:$0xff] %v993
      %1034 = vst [vmem:[%s175 + $0xf0] sm:$0xff] %v998
      %1035 = vst [vmem:[%s175 + $0xf8] sm:$0xff] %v1001
      %s1036 = smul.u32 32, %s14
      %p1037 = scmp.lt.s32.totalorder %s1036, 63
      %s1038 = scalar_select %p1037, %s1036, 63
      %s1039 = smul.addr %s1038, 8
      %s1040 = scalar_lea.vmem %s3, %s1039
      // Predicated region
      $region33: #{basic_decoder_forward.7} parent=31 // pred_check
        %p1041 = pneg %p100
      $region34: #{basic_decoder_forward.7} parent=31 // pred_check_branch
        %1043 = sbr.rel (%p1041) target = $region36
      $region35: #{basic_decoder_forward.7} parent=31 // pred_region
        %s1044 = smul.u32 32, %s14
      $region36: #{basic_decoder_forward.7} parent=31 // pred_fallthru
        _
    $region32: #{basic_decoder_forward.7} parent=5 // pred_fallthru
      _
    %p1045 = scmp.le.s32.totalorder 2, %s9
    // Predicated region
    $region37: #{basic_decoder_forward.7} parent=5 // pred_check
      %p1046 = pneg %p1045
    $region38: #{basic_decoder_forward.7} parent=5 // pred_check_branch
      %1048 = sbr.rel (%p1046) target = $region40
    $region39: #{basic_decoder_forward.7} parent=5 // pred_region
      %s1049 = ssub.s32 %s9, 2
      // Predicated region
      $region41: #{basic_decoder_forward.7} parent=39 // pred_check
        %p1050 = pneg %p106
      $region42: #{basic_decoder_forward.7} parent=39 // pred_check_branch
        %1052 = sbr.rel (%p1050) target = $region44
      $region43: #{basic_decoder_forward.7} parent=39 // pred_region
        %s1053 = smul.u32 32, %s15
        %p1054 = scmp.lt.s32.totalorder %s1053, 63
        %s1055 = scalar_select %p1054, %s1053, 63
        %s1056 = smul.addr %s1055, 8
        %s1057 = scalar_lea.vmem %s3, %s1056
      $region44: #{basic_decoder_forward.7} parent=39 // pred_fallthru
        _
    $region40: #{basic_decoder_forward.7} parent=5 // pred_fallthru
      _
  $region6: #{basic_decoder_forward.7} parent=0 // loop_footer
    %s13 = sadd.s32 1, %s9
  $region7: #{basic_decoder_forward.7} parent=0 // loop_footer_branch
    %8 = sbr.rel target = $region3
  $region8: #{basic_decoder_forward.7} parent=0 // loop_exit
    _

</llo_original>
